<compile_context>
chip_gen: v7x
topology: tpu7x:2x2x1
jax: 0.10.0
libtpu: 0.0.40
codegen_flags: <defaults>
</compile_context>

<pallas_src>
import math

import jax
import jax.numpy as jnp
from jax.experimental import pallas as pl
from jax.experimental.pallas import tpu as pltpu

INPUT_FRAMES = 6
T_IN = INPUT_FRAMES - 1                       # conv channel dim after permute = 5
ENC = [T_IN, 32, 64, 128, 256, 512]           # conv1x1_encode widths (each + ReLU)
DEC = [512, 256, 128, 64, 32, 1]              # conv1x1_decode (+ReLU) ... decode_final
LAYER_DIMS = ENC + DEC[1:]                    # [5,32,64,128,256,512,256,128,64,32,1]
NUM_LAYERS = len(LAYER_DIMS) - 1              # 10 (ReLU after all but the last)
T_PAD = 8                                     # pad the 5-wide input feature dim to 8


def _mlp_kernel(x_ref, *refs):
    """refs = (w0, b0, w1, b1, ..., w9, b9, out_ref)."""
    out_ref = refs[-1]
    wb = refs[:-1]
    h = x_ref[...]                                            # (TM, T_PAD) f32
    # 9 MXU layers: explicit bf16 operands (1-pass MXU), f32 accumulate, f32 bias + ReLU.
    for li in range(NUM_LAYERS - 1):
        w = wb[2 * li][...]                                   # (cin, cout) bf16
        b = wb[2 * li + 1][...]                               # (1, cout)   f32
        h = jnp.dot(h.astype(jnp.bfloat16), w,
                    preferred_element_type=jnp.float32) + b
        h = jnp.maximum(h, 0.0)
    # decode_final (32 -> 1, no ReLU): VPU broadcast-mul + XLU lane reduce — keeps the
    # otherwise near-empty (TM,32)x(32,1) pass group off the MXU.
    w_last = wb[2 * (NUM_LAYERS - 1)][...]                    # (1, 32) f32
    b_last = wb[2 * (NUM_LAYERS - 1) + 1][...]                # (1, 1)  f32
    out_ref[...] = jnp.sum(h * w_last, axis=-1, keepdims=True) + b_last


def _round_up(a, b):
    return ((a + b - 1) // b) * b


def gtae_high_pred2_forward(x, params, tm=2048):
    """x: (n, c, p, t, 1) exactly like the PyTorch module's input; returns (n, c, p, 1, 1)."""
    n, c, p, t, v = x.shape
    assert v == 1 and t == T_IN, (x.shape, T_IN)

    # PyTorch's squeeze/permute glue is pure data movement around a per-location MLP.
    # x[..., 0] is already (n, c, p, t) -> flatten locations to rows directly (no
    # transposes), and the kernel output reshapes straight back to (n, c, p).
    rows = x[..., 0].reshape(n * c * p, t)                    # (M, t) f32
    m = rows.shape[0]

    # Tile sizing: multiple of 256 (clean MXU M-passes, sublane aligned), capped so the
    # grid keeps >= 2 tiles whenever there is enough work (v7x 2-TC load balance).
    tm = max(256, (int(tm) // 256) * 256)
    tm = min(tm, max(256, _round_up(pl.cdiv(m, 2), 256)))
    assert tm % 8 == 0

    m_pad = _round_up(m, tm)
    rows = jnp.pad(rows, ((0, m_pad - m), (0, T_PAD - t)))    # (M_pad, 8)

    args = [rows]
    specs = [pl.BlockSpec((tm, T_PAD), lambda i: (i, 0))]
    for li in range(NUM_LAYERS):
        w = params[f'w{li}'].astype(jnp.float32)
        b = params[f'b{li}'].astype(jnp.float32)
        if li == 0:                                   # pad first W up to the padded feature dim
            w = jnp.pad(w, ((0, T_PAD - w.shape[0]), (0, 0)))
        if li < NUM_LAYERS - 1:
            w = w.astype(jnp.bfloat16)                # bf16 MXU operands, f32 accumulate
        else:
            w = w.reshape(1, -1)                      # (1, 32) row for the VPU/XLU tail
        args.append(w)
        specs.append(pl.BlockSpec(w.shape, lambda i: (0, 0)))   # resident in VMEM
        args.append(b)
        specs.append(pl.BlockSpec(b.shape, lambda i: (0, 0)))

    flops = 2 * m_pad * sum(LAYER_DIMS[i] * LAYER_DIMS[i + 1] for i in range(NUM_LAYERS))
    param_bytes = sum(int(a.size) * a.dtype.itemsize for a in args[1:])
    bytes_accessed = int(rows.size) * 4 + m_pad * 4 + param_bytes

    out = pl.pallas_call(
        _mlp_kernel,
        out_shape=jax.ShapeDtypeStruct((m_pad, 1), jnp.float32),
        grid=(m_pad // tm,),
        in_specs=specs,
        out_specs=pl.BlockSpec((tm, 1), lambda i: (i, 0)),
        compiler_params=pltpu.CompilerParams(
            dimension_semantics=("parallel",),        # row tiles are independent
            vmem_limit_bytes=48 * 1024 * 1024),       # fits v7x's 64 MiB, headroom on v5e/v6e
        cost_estimate=pl.CostEstimate(
            flops=int(flops), transcendentals=0, bytes_accessed=int(bytes_accessed)),
    )(*args)

    # (M_pad, 1) -> drop padding -> (n, c, p) -> PyTorch unsqueeze layout (n, c, p, 1, 1)
    out = out[:m, 0].reshape(n, c, p)
    return out[:, :, :, None, None]


def init_params(key):
    ks = jax.random.split(key, 2 * NUM_LAYERS)
    prm = {}
    for li in range(NUM_LAYERS):
        cin, cout = LAYER_DIMS[li], LAYER_DIMS[li + 1]
        s = 1.0 / math.sqrt(cin)
        prm[f'w{li}'] = (s * jax.random.normal(ks[2 * li], (cin, cout))).astype(jnp.float32)
        prm[f'b{li}'] = (s * jax.random.normal(ks[2 * li + 1], (1, cout))).astype(jnp.float32)
    return prm


def reference_forward(x, params):
    """Pure-JAX (f32) mirror of GTAEHighPred2.forward, for checking."""
    h = jnp.transpose(x[..., 0], (0, 3, 2, 1))        # (n, t, p, c)
    for li in range(NUM_LAYERS):
        w = params[f'w{li}']                          # (cin, cout)
        b = params[f'b{li}']                          # (1, cout)
        h = jnp.einsum('nihw,io->nohw', h, w) + b.reshape(1, -1, 1, 1)
        if li < NUM_LAYERS - 1:
            h = jax.nn.relu(h)
    # (n, 1, p, c) -> permute(0,3,2,1) -> (n, c, p, 1) -> unsqueeze(-1)
    return jnp.transpose(h, (0, 3, 2, 1))[..., None]


if __name__ == "__main__":
    # input_frames=6 => conv channel dim (time) is 5.  Small deterministic shapes.
    N, C, P, T, V = 2, 4, 56, T_IN, 1                 # M = n*c*p = 448 rows
    key = jax.random.PRNGKey(0)
    kx, kp = jax.random.split(key)
    x = jax.random.normal(kx, (N, C, P, T, V), dtype=jnp.float32)
    params = init_params(kp)

    out = gtae_high_pred2_forward(x, params)          # tm auto-capped -> 2 grid tiles here
    out = jax.block_until_ready(out)
    assert out.shape == (N, C, P, 1, 1), out.shape

    ref = jax.block_until_ready(reference_forward(x, params))
    err = float(jnp.max(jnp.abs(out - ref)))
    scale = float(jnp.max(jnp.abs(ref))) + 1e-6
    # bf16 MXU operands through 9 layers vs a full-f32 reference: allow a few percent.
    assert err / scale < 5e-2, f"kernel/reference mismatch: abs={err}, rel={err / scale}"
    print("KERNEL_OK")
</pallas_src>

<mosaic_0001>
module attributes {stable_mosaic.version = 11 : i64} {
  func.func @_mlp_kernel(%arg0: i32, %arg1: memref<256x8xf32, #tpu.memory_space<vmem>>, %arg2: memref<8x32xbf16, #tpu.memory_space<vmem>>, %arg3: memref<1x32xf32, #tpu.memory_space<vmem>>, %arg4: memref<32x64xbf16, #tpu.memory_space<vmem>>, %arg5: memref<1x64xf32, #tpu.memory_space<vmem>>, %arg6: memref<64x128xbf16, #tpu.memory_space<vmem>>, %arg7: memref<1x128xf32, #tpu.memory_space<vmem>>, %arg8: memref<128x256xbf16, #tpu.memory_space<vmem>>, %arg9: memref<1x256xf32, #tpu.memory_space<vmem>>, %arg10: memref<256x512xbf16, #tpu.memory_space<vmem>>, %arg11: memref<1x512xf32, #tpu.memory_space<vmem>>, %arg12: memref<512x256xbf16, #tpu.memory_space<vmem>>, %arg13: memref<1x256xf32, #tpu.memory_space<vmem>>, %arg14: memref<256x128xbf16, #tpu.memory_space<vmem>>, %arg15: memref<1x128xf32, #tpu.memory_space<vmem>>, %arg16: memref<128x64xbf16, #tpu.memory_space<vmem>>, %arg17: memref<1x64xf32, #tpu.memory_space<vmem>>, %arg18: memref<64x32xbf16, #tpu.memory_space<vmem>>, %arg19: memref<1x32xf32, #tpu.memory_space<vmem>>, %arg20: memref<1x32xf32, #tpu.memory_space<vmem>>, %arg21: memref<1x1xf32, #tpu.memory_space<vmem>>, %arg22: memref<256x1xf32, #tpu.memory_space<vmem>>) attributes {dimension_semantics = [#tpu.dimension_semantics<parallel>], iteration_bounds = array<i64: 2>, scalar_prefetch = 0 : i64, scratch_operands = 0 : i64, tpu.core_type = #tpu.core_type<tc>, window_params = [{transform_indices = @transform_0, window_bounds = array<i64: 256, 8>}, {pipeline_mode = #tpu.pipeline_mode<synchronous>, transform_indices = @transform_1, window_bounds = array<i64: 8, 32>}, {pipeline_mode = #tpu.pipeline_mode<synchronous>, transform_indices = @transform_2, window_bounds = array<i64: 1, 32>}, {pipeline_mode = #tpu.pipeline_mode<synchronous>, transform_indices = @transform_3, window_bounds = array<i64: 32, 64>}, {pipeline_mode = #tpu.pipeline_mode<synchronous>, transform_indices = @transform_4, window_bounds = array<i64: 1, 64>}, {pipeline_mode = #tpu.pipeline_mode<synchronous>, transform_indices = @transform_5, window_bounds = array<i64: 64, 128>}, {pipeline_mode = #tpu.pipeline_mode<synchronous>, transform_indices = @transform_6, window_bounds = array<i64: 1, 128>}, {pipeline_mode = #tpu.pipeline_mode<synchronous>, transform_indices = @transform_7, window_bounds = array<i64: 128, 256>}, {pipeline_mode = #tpu.pipeline_mode<synchronous>, transform_indices = @transform_8, window_bounds = array<i64: 1, 256>}, {pipeline_mode = #tpu.pipeline_mode<synchronous>, transform_indices = @transform_9, window_bounds = array<i64: 256, 512>}, {pipeline_mode = #tpu.pipeline_mode<synchronous>, transform_indices = @transform_10, window_bounds = array<i64: 1, 512>}, {pipeline_mode = #tpu.pipeline_mode<synchronous>, transform_indices = @transform_11, window_bounds = array<i64: 512, 256>}, {pipeline_mode = #tpu.pipeline_mode<synchronous>, transform_indices = @transform_12, window_bounds = array<i64: 1, 256>}, {pipeline_mode = #tpu.pipeline_mode<synchronous>, transform_indices = @transform_13, window_bounds = array<i64: 256, 128>}, {pipeline_mode = #tpu.pipeline_mode<synchronous>, transform_indices = @transform_14, window_bounds = array<i64: 1, 128>}, {pipeline_mode = #tpu.pipeline_mode<synchronous>, transform_indices = @transform_15, window_bounds = array<i64: 128, 64>}, {pipeline_mode = #tpu.pipeline_mode<synchronous>, transform_indices = @transform_16, window_bounds = array<i64: 1, 64>}, {pipeline_mode = #tpu.pipeline_mode<synchronous>, transform_indices = @transform_17, window_bounds = array<i64: 64, 32>}, {pipeline_mode = #tpu.pipeline_mode<synchronous>, transform_indices = @transform_18, window_bounds = array<i64: 1, 32>}, {pipeline_mode = #tpu.pipeline_mode<synchronous>, transform_indices = @transform_19, window_bounds = array<i64: 1, 32>}, {pipeline_mode = #tpu.pipeline_mode<synchronous>, transform_indices = @transform_20, window_bounds = array<i64: 1, 1>}, {transform_indices = @transform_21, window_bounds = array<i64: 256, 1>}]} {
    %c0 = arith.constant 0 : index
    %c0_0 = arith.constant 0 : index
    %0 = vector.load %arg1[%c0, %c0_0] : memref<256x8xf32, #tpu.memory_space<vmem>>, vector<256x8xf32>
    %c0_1 = arith.constant 0 : index
    %c0_2 = arith.constant 0 : index
    %1 = vector.load %arg2[%c0_1, %c0_2] : memref<8x32xbf16, #tpu.memory_space<vmem>>, vector<8x32xbf16>
    %c0_3 = arith.constant 0 : index
    %c0_4 = arith.constant 0 : index
    %2 = vector.load %arg3[%c0_3, %c0_4] : memref<1x32xf32, #tpu.memory_space<vmem>>, vector<1x32xf32>
    %3 = arith.truncf %0 : vector<256x8xf32> to vector<256x8xbf16>
    %cst = arith.constant dense<0.000000e+00> : vector<256x32xf32>
    %4 = tpu.matmul %3, %1, %cst {dimension_numbers = #tpu.dot_dimension_numbers<[1], [0], [0], [1], [0, 0, 1, 1], [], []>} : vector<256x8xbf16>, vector<8x32xbf16>, vector<256x32xf32> -> vector<256x32xf32>
    %5 = vector.broadcast %2 : vector<1x32xf32> to vector<256x32xf32>
    %6 = arith.addf %4, %5 : vector<256x32xf32>
    %cst_5 = arith.constant 0.000000e+00 : f32
    %7 = vector.broadcast %cst_5 : f32 to vector<256x32xf32>
    %8 = arith.maximumf %6, %7 : vector<256x32xf32>
    %c0_6 = arith.constant 0 : index
    %c0_7 = arith.constant 0 : index
    %9 = vector.load %arg4[%c0_6, %c0_7] : memref<32x64xbf16, #tpu.memory_space<vmem>>, vector<32x64xbf16>
    %c0_8 = arith.constant 0 : index
    %c0_9 = arith.constant 0 : index
    %10 = vector.load %arg5[%c0_8, %c0_9] : memref<1x64xf32, #tpu.memory_space<vmem>>, vector<1x64xf32>
    %11 = arith.truncf %8 : vector<256x32xf32> to vector<256x32xbf16>
    %cst_10 = arith.constant dense<0.000000e+00> : vector<256x64xf32>
    %12 = tpu.matmul %11, %9, %cst_10 {dimension_numbers = #tpu.dot_dimension_numbers<[1], [0], [0], [1], [0, 0, 1, 1], [], []>} : vector<256x32xbf16>, vector<32x64xbf16>, vector<256x64xf32> -> vector<256x64xf32>
    %13 = vector.broadcast %10 : vector<1x64xf32> to vector<256x64xf32>
    %14 = arith.addf %12, %13 : vector<256x64xf32>
    %cst_11 = arith.constant 0.000000e+00 : f32
    %15 = vector.broadcast %cst_11 : f32 to vector<256x64xf32>
    %16 = arith.maximumf %14, %15 : vector<256x64xf32>
    %c0_12 = arith.constant 0 : index
    %c0_13 = arith.constant 0 : index
    %17 = vector.load %arg6[%c0_12, %c0_13] : memref<64x128xbf16, #tpu.memory_space<vmem>>, vector<64x128xbf16>
    %c0_14 = arith.constant 0 : index
    %c0_15 = arith.constant 0 : index
    %18 = vector.load %arg7[%c0_14, %c0_15] : memref<1x128xf32, #tpu.memory_space<vmem>>, vector<1x128xf32>
    %19 = arith.truncf %16 : vector<256x64xf32> to vector<256x64xbf16>
    %cst_16 = arith.constant dense<0.000000e+00> : vector<256x128xf32>
    %20 = tpu.matmul %19, %17, %cst_16 {dimension_numbers = #tpu.dot_dimension_numbers<[1], [0], [0], [1], [0, 0, 1, 1], [], []>} : vector<256x64xbf16>, vector<64x128xbf16>, vector<256x128xf32> -> vector<256x128xf32>
    %21 = vector.broadcast %18 : vector<1x128xf32> to vector<256x128xf32>
    %22 = arith.addf %20, %21 : vector<256x128xf32>
    %cst_17 = arith.constant 0.000000e+00 : f32
    %23 = vector.broadcast %cst_17 : f32 to vector<256x128xf32>
    %24 = arith.maximumf %22, %23 : vector<256x128xf32>
    %c0_18 = arith.constant 0 : index
    %c0_19 = arith.constant 0 : index
    %25 = vector.load %arg8[%c0_18, %c0_19] : memref<128x256xbf16, #tpu.memory_space<vmem>>, vector<128x256xbf16>
    %c0_20 = arith.constant 0 : index
    %c0_21 = arith.constant 0 : index
    %26 = vector.load %arg9[%c0_20, %c0_21] : memref<1x256xf32, #tpu.memory_space<vmem>>, vector<1x256xf32>
    %27 = arith.truncf %24 : vector<256x128xf32> to vector<256x128xbf16>
    %cst_22 = arith.constant dense<0.000000e+00> : vector<256x256xf32>
    %28 = tpu.matmul %27, %25, %cst_22 {dimension_numbers = #tpu.dot_dimension_numbers<[1], [0], [0], [1], [0, 0, 1, 1], [], []>} : vector<256x128xbf16>, vector<128x256xbf16>, vector<256x256xf32> -> vector<256x256xf32>
    %29 = vector.broadcast %26 : vector<1x256xf32> to vector<256x256xf32>
    %30 = arith.addf %28, %29 : vector<256x256xf32>
    %cst_23 = arith.constant 0.000000e+00 : f32
    %31 = vector.broadcast %cst_23 : f32 to vector<256x256xf32>
    %32 = arith.maximumf %30, %31 : vector<256x256xf32>
    %c0_24 = arith.constant 0 : index
    %c0_25 = arith.constant 0 : index
    %33 = vector.load %arg10[%c0_24, %c0_25] : memref<256x512xbf16, #tpu.memory_space<vmem>>, vector<256x512xbf16>
    %c0_26 = arith.constant 0 : index
    %c0_27 = arith.constant 0 : index
    %34 = vector.load %arg11[%c0_26, %c0_27] : memref<1x512xf32, #tpu.memory_space<vmem>>, vector<1x512xf32>
    %35 = arith.truncf %32 : vector<256x256xf32> to vector<256x256xbf16>
    %cst_28 = arith.constant dense<0.000000e+00> : vector<256x512xf32>
    %36 = tpu.matmul %35, %33, %cst_28 {dimension_numbers = #tpu.dot_dimension_numbers<[1], [0], [0], [1], [0, 0, 1, 1], [], []>} : vector<256x256xbf16>, vector<256x512xbf16>, vector<256x512xf32> -> vector<256x512xf32>
    %37 = vector.broadcast %34 : vector<1x512xf32> to vector<256x512xf32>
    %38 = arith.addf %36, %37 : vector<256x512xf32>
    %cst_29 = arith.constant 0.000000e+00 : f32
    %39 = vector.broadcast %cst_29 : f32 to vector<256x512xf32>
    %40 = arith.maximumf %38, %39 : vector<256x512xf32>
    %c0_30 = arith.constant 0 : index
    %c0_31 = arith.constant 0 : index
    %41 = vector.load %arg12[%c0_30, %c0_31] : memref<512x256xbf16, #tpu.memory_space<vmem>>, vector<512x256xbf16>
    %c0_32 = arith.constant 0 : index
    %c0_33 = arith.constant 0 : index
    %42 = vector.load %arg13[%c0_32, %c0_33] : memref<1x256xf32, #tpu.memory_space<vmem>>, vector<1x256xf32>
    %43 = arith.truncf %40 : vector<256x512xf32> to vector<256x512xbf16>
    %cst_34 = arith.constant dense<0.000000e+00> : vector<256x256xf32>
    %44 = tpu.matmul %43, %41, %cst_34 {dimension_numbers = #tpu.dot_dimension_numbers<[1], [0], [0], [1], [0, 0, 1, 1], [], []>} : vector<256x512xbf16>, vector<512x256xbf16>, vector<256x256xf32> -> vector<256x256xf32>
    %45 = vector.broadcast %42 : vector<1x256xf32> to vector<256x256xf32>
    %46 = arith.addf %44, %45 : vector<256x256xf32>
    %cst_35 = arith.constant 0.000000e+00 : f32
    %47 = vector.broadcast %cst_35 : f32 to vector<256x256xf32>
    %48 = arith.maximumf %46, %47 : vector<256x256xf32>
    %c0_36 = arith.constant 0 : index
    %c0_37 = arith.constant 0 : index
    %49 = vector.load %arg14[%c0_36, %c0_37] : memref<256x128xbf16, #tpu.memory_space<vmem>>, vector<256x128xbf16>
    %c0_38 = arith.constant 0 : index
    %c0_39 = arith.constant 0 : index
    %50 = vector.load %arg15[%c0_38, %c0_39] : memref<1x128xf32, #tpu.memory_space<vmem>>, vector<1x128xf32>
    %51 = arith.truncf %48 : vector<256x256xf32> to vector<256x256xbf16>
    %cst_40 = arith.constant dense<0.000000e+00> : vector<256x128xf32>
    %52 = tpu.matmul %51, %49, %cst_40 {dimension_numbers = #tpu.dot_dimension_numbers<[1], [0], [0], [1], [0, 0, 1, 1], [], []>} : vector<256x256xbf16>, vector<256x128xbf16>, vector<256x128xf32> -> vector<256x128xf32>
    %53 = vector.broadcast %50 : vector<1x128xf32> to vector<256x128xf32>
    %54 = arith.addf %52, %53 : vector<256x128xf32>
    %cst_41 = arith.constant 0.000000e+00 : f32
    %55 = vector.broadcast %cst_41 : f32 to vector<256x128xf32>
    %56 = arith.maximumf %54, %55 : vector<256x128xf32>
    %c0_42 = arith.constant 0 : index
    %c0_43 = arith.constant 0 : index
    %57 = vector.load %arg16[%c0_42, %c0_43] : memref<128x64xbf16, #tpu.memory_space<vmem>>, vector<128x64xbf16>
    %c0_44 = arith.constant 0 : index
    %c0_45 = arith.constant 0 : index
    %58 = vector.load %arg17[%c0_44, %c0_45] : memref<1x64xf32, #tpu.memory_space<vmem>>, vector<1x64xf32>
    %59 = arith.truncf %56 : vector<256x128xf32> to vector<256x128xbf16>
    %cst_46 = arith.constant dense<0.000000e+00> : vector<256x64xf32>
    %60 = tpu.matmul %59, %57, %cst_46 {dimension_numbers = #tpu.dot_dimension_numbers<[1], [0], [0], [1], [0, 0, 1, 1], [], []>} : vector<256x128xbf16>, vector<128x64xbf16>, vector<256x64xf32> -> vector<256x64xf32>
    %61 = vector.broadcast %58 : vector<1x64xf32> to vector<256x64xf32>
    %62 = arith.addf %60, %61 : vector<256x64xf32>
    %cst_47 = arith.constant 0.000000e+00 : f32
    %63 = vector.broadcast %cst_47 : f32 to vector<256x64xf32>
    %64 = arith.maximumf %62, %63 : vector<256x64xf32>
    %c0_48 = arith.constant 0 : index
    %c0_49 = arith.constant 0 : index
    %65 = vector.load %arg18[%c0_48, %c0_49] : memref<64x32xbf16, #tpu.memory_space<vmem>>, vector<64x32xbf16>
    %c0_50 = arith.constant 0 : index
    %c0_51 = arith.constant 0 : index
    %66 = vector.load %arg19[%c0_50, %c0_51] : memref<1x32xf32, #tpu.memory_space<vmem>>, vector<1x32xf32>
    %67 = arith.truncf %64 : vector<256x64xf32> to vector<256x64xbf16>
    %cst_52 = arith.constant dense<0.000000e+00> : vector<256x32xf32>
    %68 = tpu.matmul %67, %65, %cst_52 {dimension_numbers = #tpu.dot_dimension_numbers<[1], [0], [0], [1], [0, 0, 1, 1], [], []>} : vector<256x64xbf16>, vector<64x32xbf16>, vector<256x32xf32> -> vector<256x32xf32>
    %69 = vector.broadcast %66 : vector<1x32xf32> to vector<256x32xf32>
    %70 = arith.addf %68, %69 : vector<256x32xf32>
    %cst_53 = arith.constant 0.000000e+00 : f32
    %71 = vector.broadcast %cst_53 : f32 to vector<256x32xf32>
    %72 = arith.maximumf %70, %71 : vector<256x32xf32>
    %c0_54 = arith.constant 0 : index
    %c0_55 = arith.constant 0 : index
    %73 = vector.load %arg20[%c0_54, %c0_55] : memref<1x32xf32, #tpu.memory_space<vmem>>, vector<1x32xf32>
    %c0_56 = arith.constant 0 : index
    %c0_57 = arith.constant 0 : index
    %74 = vector.load %arg21[%c0_56, %c0_57] : memref<1x1xf32, #tpu.memory_space<vmem>>, vector<1x1xf32>
    %75 = vector.broadcast %73 : vector<1x32xf32> to vector<256x32xf32>
    %76 = arith.mulf %72, %75 : vector<256x32xf32>
    %cst_58 = arith.constant dense<0.000000e+00> : vector<256xf32>
    %77 = vector.multi_reduction <add>, %76, %cst_58 [1] : vector<256x32xf32> to vector<256xf32>
    %78 = vector.shape_cast %77 : vector<256xf32> to vector<256x1xf32>
    %79 = vector.broadcast %74 : vector<1x1xf32> to vector<256x1xf32>
    %80 = arith.addf %78, %79 : vector<256x1xf32>
    %c0_59 = arith.constant 0 : index
    %c0_60 = arith.constant 0 : index
    %81 = vector.load %arg22[%c0_59, %c0_60] : memref<256x1xf32, #tpu.memory_space<vmem>>, vector<256x1xf32>
    tpu.vector_store %arg22[%c0_59, %c0_60], %80 {strides = array<i32>} : memref<256x1xf32, #tpu.memory_space<vmem>>, vector<256x1xf32>,
    return
  }
  func.func @transform_0(%arg0: i32) -> (i32, i32) {
    %c0_i32 = arith.constant 0 : i32
    %c0_i32_0 = arith.constant 0 : i32
    return %arg0, %c0_i32 : i32, i32
  }
  func.func @transform_1(%arg0: i32) -> (i32, i32) {
    %c0_i32 = arith.constant 0 : i32
    %c0_i32_0 = arith.constant 0 : i32
    %c0_i32_1 = arith.constant 0 : i32
    return %c0_i32, %c0_i32_0 : i32, i32
  }
  func.func @transform_2(%arg0: i32) -> (i32, i32) {
    %c0_i32 = arith.constant 0 : i32
    %c0_i32_0 = arith.constant 0 : i32
    %c0_i32_1 = arith.constant 0 : i32
    return %c0_i32, %c0_i32_0 : i32, i32
  }
  func.func @transform_3(%arg0: i32) -> (i32, i32) {
    %c0_i32 = arith.constant 0 : i32
    %c0_i32_0 = arith.constant 0 : i32
    %c0_i32_1 = arith.constant 0 : i32
    return %c0_i32, %c0_i32_0 : i32, i32
  }
  func.func @transform_4(%arg0: i32) -> (i32, i32) {
    %c0_i32 = arith.constant 0 : i32
    %c0_i32_0 = arith.constant 0 : i32
    %c0_i32_1 = arith.constant 0 : i32
    return %c0_i32, %c0_i32_0 : i32, i32
  }
  func.func @transform_5(%arg0: i32) -> (i32, i32) {
    %c0_i32 = arith.constant 0 : i32
    %c0_i32_0 = arith.constant 0 : i32
    %c0_i32_1 = arith.constant 0 : i32
    return %c0_i32, %c0_i32_0 : i32, i32
  }
  func.func @transform_6(%arg0: i32) -> (i32, i32) {
    %c0_i32 = arith.constant 0 : i32
    %c0_i32_0 = arith.constant 0 : i32
    %c0_i32_1 = arith.constant 0 : i32
    return %c0_i32, %c0_i32_0 : i32, i32
  }
  func.func @transform_7(%arg0: i32) -> (i32, i32) {
    %c0_i32 = arith.constant 0 : i32
    %c0_i32_0 = arith.constant 0 : i32
    %c0_i32_1 = arith.constant 0 : i32
    return %c0_i32, %c0_i32_0 : i32, i32
  }
  func.func @transform_8(%arg0: i32) -> (i32, i32) {
    %c0_i32 = arith.constant 0 : i32
    %c0_i32_0 = arith.constant 0 : i32
    %c0_i32_1 = arith.constant 0 : i32
    return %c0_i32, %c0_i32_0 : i32, i32
  }
  func.func @transform_9(%arg0: i32) -> (i32, i32) {
    %c0_i32 = arith.constant 0 : i32
    %c0_i32_0 = arith.constant 0 : i32
    %c0_i32_1 = arith.constant 0 : i32
    return %c0_i32, %c0_i32_0 : i32, i32
  }
  func.func @transform_10(%arg0: i32) -> (i32, i32) {
    %c0_i32 = arith.constant 0 : i32
    %c0_i32_0 = arith.constant 0 : i32
    %c0_i32_1 = arith.constant 0 : i32
    return %c0_i32, %c0_i32_0 : i32, i32
  }
  func.func @transform_11(%arg0: i32) -> (i32, i32) {
    %c0_i32 = arith.constant 0 : i32
    %c0_i32_0 = arith.constant 0 : i32
    %c0_i32_1 = arith.constant 0 : i32
    return %c0_i32, %c0_i32_0 : i32, i32
  }
  func.func @transform_12(%arg0: i32) -> (i32, i32) {
    %c0_i32 = arith.constant 0 : i32
    %c0_i32_0 = arith.constant 0 : i32
    %c0_i32_1 = arith.constant 0 : i32
    return %c0_i32, %c0_i32_0 : i32, i32
  }
  func.func @transform_13(%arg0: i32) -> (i32, i32) {
    %c0_i32 = arith.constant 0 : i32
    %c0_i32_0 = arith.constant 0 : i32
    %c0_i32_1 = arith.constant 0 : i32
    return %c0_i32, %c0_i32_0 : i32, i32
  }
  func.func @transform_14(%arg0: i32) -> (i32, i32) {
    %c0_i32 = arith.constant 0 : i32
    %c0_i32_0 = arith.constant 0 : i32
    %c0_i32_1 = arith.constant 0 : i32
    return %c0_i32, %c0_i32_0 : i32, i32
  }
  func.func @transform_15(%arg0: i32) -> (i32, i32) {
    %c0_i32 = arith.constant 0 : i32
    %c0_i32_0 = arith.constant 0 : i32
    %c0_i32_1 = arith.constant 0 : i32
    return %c0_i32, %c0_i32_0 : i32, i32
  }
  func.func @transform_16(%arg0: i32) -> (i32, i32) {
    %c0_i32 = arith.constant 0 : i32
    %c0_i32_0 = arith.constant 0 : i32
    %c0_i32_1 = arith.constant 0 : i32
    return %c0_i32, %c0_i32_0 : i32, i32
  }
  func.func @transform_17(%arg0: i32) -> (i32, i32) {
    %c0_i32 = arith.constant 0 : i32
    %c0_i32_0 = arith.constant 0 : i32
    %c0_i32_1 = arith.constant 0 : i32
    return %c0_i32, %c0_i32_0 : i32, i32
  }
  func.func @transform_18(%arg0: i32) -> (i32, i32) {
    %c0_i32 = arith.constant 0 : i32
    %c0_i32_0 = arith.constant 0 : i32
    %c0_i32_1 = arith.constant 0 : i32
    return %c0_i32, %c0_i32_0 : i32, i32
  }
  func.func @transform_19(%arg0: i32) -> (i32, i32) {
    %c0_i32 = arith.constant 0 : i32
    %c0_i32_0 = arith.constant 0 : i32
    %c0_i32_1 = arith.constant 0 : i32
    return %c0_i32, %c0_i32_0 : i32, i32
  }
  func.func @transform_20(%arg0: i32) -> (i32, i32) {
    %c0_i32 = arith.constant 0 : i32
    %c0_i32_0 = arith.constant 0 : i32
    %c0_i32_1 = arith.constant 0 : i32
    return %c0_i32, %c0_i32_0 : i32, i32
  }
  func.func @transform_21(%arg0: i32) -> (i32, i32) {
    %c0_i32 = arith.constant 0 : i32
    %c0_i32_0 = arith.constant 0 : i32
    return %arg0, %c0_i32 : i32, i32
  }
}

</mosaic_0001>

<llo_original>
// kernel: tpu_custom_call.1
$region0: #{tpu_custom_call.1}
  #allocation0 [shape = 'u32[]', space=smem, size = 0x4, offset = 0x4, fixed_abs, tag = 'smem constant byte address 0x4 - core index']
  #allocation1 [shape = 'u32[144,128]{1,0:T(1,128)}', space=vmem, size = 0x12000, scoped, tag = 'internal scratch']
  #allocation2 [shape = 'f32[1,1]{1,0:T(1,128)S(1)}', space=vmem, size = 0x200, scoped, tag = 'scoped memory for tpu_custom_call.1']
  %s0 = inlined_call_operand.vmem [shape: f32[512,8], index: 0, kind: input, shape index: {}]
  %s1 = inlined_call_operand.vmem [shape: bf16[8,32], index: 1, kind: input, shape index: {}]
  %s2 = inlined_call_operand.vmem [shape: f32[1,32], index: 2, kind: input, shape index: {}]
  %s3 = inlined_call_operand.vmem [shape: bf16[32,64], index: 3, kind: input, shape index: {}]
  %s4 = inlined_call_operand.vmem [shape: f32[1,64], index: 4, kind: input, shape index: {}]
  %s5 = inlined_call_operand.vmem [shape: bf16[64,128], index: 5, kind: input, shape index: {}]
  %s6 = inlined_call_operand.vmem [shape: f32[1,128], index: 6, kind: input, shape index: {}]
  %s7 = inlined_call_operand.hbm [shape: bf16[128,256], index: 7, kind: input, shape index: {}]
  %s8 = inlined_call_operand.vmem [shape: f32[1,256], index: 8, kind: input, shape index: {}]
  %s9 = inlined_call_operand.vmem [shape: bf16[256,512], index: 9, kind: input, shape index: {}]
  %s10 = inlined_call_operand.vmem [shape: f32[1,512], index: 10, kind: input, shape index: {}]
  %s11 = inlined_call_operand.hbm [shape: bf16[512,256], index: 11, kind: input, shape index: {}]
  %s12 = inlined_call_operand.vmem [shape: f32[1,256], index: 12, kind: input, shape index: {}]
  %s13 = inlined_call_operand.hbm [shape: bf16[256,128], index: 13, kind: input, shape index: {}]
  %s14 = inlined_call_operand.vmem [shape: f32[1,128], index: 14, kind: input, shape index: {}]
  %s15 = inlined_call_operand.vmem [shape: bf16[128,64], index: 15, kind: input, shape index: {}]
  %s16 = inlined_call_operand.vmem [shape: f32[1,64], index: 16, kind: input, shape index: {}]
  %s17 = inlined_call_operand.vmem [shape: bf16[64,32], index: 17, kind: input, shape index: {}]
  %s18 = inlined_call_operand.vmem [shape: f32[1,32], index: 18, kind: input, shape index: {}]
  %s19 = inlined_call_operand.vmem [shape: f32[1,32], index: 19, kind: input, shape index: {}]
  %s20 = inlined_call_operand.<no memory space> [shape: f32[1,1], index: 20, kind: input, shape index: {}]
  %s21 = inlined_call_operand.vmem [shape: f32[512,1], index: 21, kind: output, shape index: {}]
  %s22 = sld [smem:[#allocation0]]
  $region129: #{tpu_custom_call.1} parent=0
    _
  %s24 = ssub.s32 1, %s22
  %s25 = scalar_select 0, %s24, %s22
  %v26 = vstv %s20
  %27 = vst [vmem:[#allocation2] sm:$0x1] %v26
  $region1: #{tpu_custom_call.1} parent=0
    #allocation3 [shape = 'u8[65536]{0}', space=vmem, size = 0x10000, scoped, tag = 'input window, operand 7, single buffered']
    #allocation4 [shape = 's32[2]{0}', space=sflag, size = 0x8, scoped, tag = 'scoped memory for tpu_custom_call.1']
    #allocation5 [shape = 'u8[262144]{0}', space=vmem, size = 0x40000, scoped, tag = 'input window, operand 11, single buffered']
    #allocation6 [shape = 's32[1]{0}', space=sflag, size = 0x4, scoped, tag = 'scoped memory for tpu_custom_call.1']
    #allocation7 [shape = 'u8[65536]{0}', space=vmem, size = 0x10000, scoped, tag = 'input window, operand 13, single buffered']
    %28 = vsyncpa [#allocation4], 0
    %29 = vsyncpa [#allocation6], 0
    loop: start=0, step=1, limit=4
    $region2: #{tpu_custom_call.1} parent=1 // loop_pre_header
      _
    $region3: #{tpu_custom_call.1} parent=1 // loop_header
      %s31 = sphi 0, %s35
      %p32 = scmp.ge.s32.totalorder %s31, 4
      %s41 = sphi 0, %s43
      %s44 = sphi 0, %s41
      %s45 = sphi 0, %s44
      %s61 = sphi 0, %s45
      %s65 = sphi 0, %s65
      %s67 = sphi 0, %s65
      %s68 = sphi 0, %s67
      %s82 = sphi 0, %s68
      %s86 = sphi 0, %s86
      %s88 = sphi 0, %s86
      %s89 = sphi 0, %s88
      %s103 = sphi 0, %s89
      %s107 = sphi 0, %s107
      %s109 = sphi 0, %s107
      %s110 = sphi 0, %s109
      %s124 = sphi 0, %s110
      %s128 = sphi 0, %s128
      %s130 = sphi 0, %s128
      %s131 = sphi 0, %s130
      %s145 = sphi 0, %s131
      %s149 = sphi 0, %s149
      %s151 = sphi 0, %s149
      %s152 = sphi 0, %s151
      %s166 = sphi 0, %s152
      %s170 = sphi 0, %s170
      %s172 = sphi 0, %s170
      %s173 = sphi 0, %s172
      %s187 = sphi 0, %s173
      %s191 = sphi 0, %s191
      %s193 = sphi 0, %s191
      %s194 = sphi 0, %s193
      %s208 = sphi 0, %s194
      %s212 = sphi 0, %s212
      %s214 = sphi 0, %s212
      %s215 = sphi 0, %s214
      %s229 = sphi 0, %s215
      %s233 = sphi 0, %s233
      %s235 = sphi 0, %s233
      %s236 = sphi 0, %s235
      %s250 = sphi 0, %s236
      %s254 = sphi 0, %s254
      %s256 = sphi 0, %s254
      %s257 = sphi 0, %s256
      %s271 = sphi 0, %s257
      %s275 = sphi 0, %s275
      %s277 = sphi 0, %s275
      %s278 = sphi 0, %s277
      %s292 = sphi 0, %s278
      %s296 = sphi 0, %s296
      %s298 = sphi 0, %s296
      %s299 = sphi 0, %s298
      %s313 = sphi 0, %s299
      %s317 = sphi 0, %s317
      %s319 = sphi 0, %s317
      %s320 = sphi 0, %s319
      %s334 = sphi 0, %s320
      %s338 = sphi 0, %s338
      %s340 = sphi 0, %s338
      %s341 = sphi 0, %s340
      %s355 = sphi 0, %s341
      %s359 = sphi 0, %s359
      %s361 = sphi 0, %s359
      %s362 = sphi 0, %s361
      %s376 = sphi 0, %s362
      %s380 = sphi 0, %s380
      %s382 = sphi 0, %s380
      %s383 = sphi 0, %s382
      %s397 = sphi 0, %s383
      %s401 = sphi 0, %s401
      %s403 = sphi 0, %s401
      %s404 = sphi 0, %s403
      %s418 = sphi 0, %s404
      %s422 = sphi 0, %s422
      %s424 = sphi 0, %s422
      %s425 = sphi 0, %s424
      %s439 = sphi 0, %s425
      %s443 = sphi 0, %s443
      %s445 = sphi 0, %s443
      %s446 = sphi 0, %s445
      %s460 = sphi 0, %s446
      %s464 = sphi 0, %s464
      %s466 = sphi 0, %s464
      %s467 = sphi 0, %s466
      %s481 = sphi 0, %s467
      %s487 = sphi 0, %s489
      %s490 = sphi 0, %s487
      %s491 = sphi 0, %s490
      %s507 = sphi 0, %s491
    $region4: #{tpu_custom_call.1} parent=1 // loop_header_branch
      %34 = sbr.rel (%p32) target = $region8
    $region5: #{tpu_custom_call.1} parent=1 // loop_body
      %s36 = ssub.s32 %s31, 1
      %s37 = ssub.s32 %s31, 2
      %s38 = sadd.s32 %s31, 1
      %s39 = ssub.s32 %s31, %s38
      %p40 = scmp.eq.s32.totalorder %s39, 0
      %s42 = sadd.s32 %s41, 1
      %s43 = scalar_select %p40, %s41, %s42
      %p46 = pneg %p40
      %p47 = scmp.eq.s32.totalorder %s31, 1
      %p48 = por %p46, %p47
      %p49 = scmp.ne.s32.totalorder %s41, %s44
      %p50 = scmp.eq.s32.totalorder %s31, 0
      %p51 = por %p49, %p50
      %p52 = scmp.ne.s32.totalorder %s41, %s44
      %p53 = scmp.eq.s32.totalorder %s36, 1
      %p54 = por %p52, %p53
      %p55 = scmp.ne.s32.totalorder %s44, %s45
      %p56 = scmp.eq.s32.totalorder %s36, 0
      %p57 = por %p55, %p56
      %p58 = scmp.ne.s32.totalorder %s44, %s45
      %p59 = scmp.eq.s32.totalorder %s37, 1
      %p60 = por %p58, %p59
      %p62 = scmp.ne.s32.totalorder %s45, %s61
      %p63 = scmp.eq.s32.totalorder %s37, 0
      %p64 = por %p62, %p63
      %s66 = sadd.s32 %s65, 1
      %p69 = scmp.eq.s32.totalorder %s31, 1
      %p70 = scmp.ne.s32.totalorder %s65, %s67
      %p71 = scmp.eq.s32.totalorder %s31, 0
      %p72 = por %p70, %p71
      %p73 = scmp.ne.s32.totalorder %s65, %s67
      %p74 = scmp.eq.s32.totalorder %s36, 1
      %p75 = por %p73, %p74
      %p76 = scmp.ne.s32.totalorder %s67, %s68
      %p77 = scmp.eq.s32.totalorder %s36, 0
      %p78 = por %p76, %p77
      %p79 = scmp.ne.s32.totalorder %s67, %s68
      %p80 = scmp.eq.s32.totalorder %s37, 1
      %p81 = por %p79, %p80
      %p83 = scmp.ne.s32.totalorder %s68, %s82
      %p84 = scmp.eq.s32.totalorder %s37, 0
      %p85 = por %p83, %p84
      %s87 = sadd.s32 %s86, 1
      %p90 = scmp.eq.s32.totalorder %s31, 1
      %p91 = scmp.ne.s32.totalorder %s86, %s88
      %p92 = scmp.eq.s32.totalorder %s31, 0
      %p93 = por %p91, %p92
      %p94 = scmp.ne.s32.totalorder %s86, %s88
      %p95 = scmp.eq.s32.totalorder %s36, 1
      %p96 = por %p94, %p95
      %p97 = scmp.ne.s32.totalorder %s88, %s89
      %p98 = scmp.eq.s32.totalorder %s36, 0
      %p99 = por %p97, %p98
      %p100 = scmp.ne.s32.totalorder %s88, %s89
      %p101 = scmp.eq.s32.totalorder %s37, 1
      %p102 = por %p100, %p101
      %p104 = scmp.ne.s32.totalorder %s89, %s103
      %p105 = scmp.eq.s32.totalorder %s37, 0
      %p106 = por %p104, %p105
      %s108 = sadd.s32 %s107, 1
      %p111 = scmp.eq.s32.totalorder %s31, 1
      %p112 = scmp.ne.s32.totalorder %s107, %s109
      %p113 = scmp.eq.s32.totalorder %s31, 0
      %p114 = por %p112, %p113
      %p115 = scmp.ne.s32.totalorder %s107, %s109
      %p116 = scmp.eq.s32.totalorder %s36, 1
      %p117 = por %p115, %p116
      %p118 = scmp.ne.s32.totalorder %s109, %s110
      %p119 = scmp.eq.s32.totalorder %s36, 0
      %p120 = por %p118, %p119
      %p121 = scmp.ne.s32.totalorder %s109, %s110
      %p122 = scmp.eq.s32.totalorder %s37, 1
      %p123 = por %p121, %p122
      %p125 = scmp.ne.s32.totalorder %s110, %s124
      %p126 = scmp.eq.s32.totalorder %s37, 0
      %p127 = por %p125, %p126
      %s129 = sadd.s32 %s128, 1
      %p132 = scmp.eq.s32.totalorder %s31, 1
      %p133 = scmp.ne.s32.totalorder %s128, %s130
      %p134 = scmp.eq.s32.totalorder %s31, 0
      %p135 = por %p133, %p134
      %p136 = scmp.ne.s32.totalorder %s128, %s130
      %p137 = scmp.eq.s32.totalorder %s36, 1
      %p138 = por %p136, %p137
      %p139 = scmp.ne.s32.totalorder %s130, %s131
      %p140 = scmp.eq.s32.totalorder %s36, 0
      %p141 = por %p139, %p140
      %p142 = scmp.ne.s32.totalorder %s130, %s131
      %p143 = scmp.eq.s32.totalorder %s37, 1
      %p144 = por %p142, %p143
      %p146 = scmp.ne.s32.totalorder %s131, %s145
      %p147 = scmp.eq.s32.totalorder %s37, 0
      %p148 = por %p146, %p147
      %s150 = sadd.s32 %s149, 1
      %p153 = scmp.eq.s32.totalorder %s31, 1
      %p154 = scmp.ne.s32.totalorder %s149, %s151
      %p155 = scmp.eq.s32.totalorder %s31, 0
      %p156 = por %p154, %p155
      %p157 = scmp.ne.s32.totalorder %s149, %s151
      %p158 = scmp.eq.s32.totalorder %s36, 1
      %p159 = por %p157, %p158
      %p160 = scmp.ne.s32.totalorder %s151, %s152
      %p161 = scmp.eq.s32.totalorder %s36, 0
      %p162 = por %p160, %p161
      %p163 = scmp.ne.s32.totalorder %s151, %s152
      %p164 = scmp.eq.s32.totalorder %s37, 1
      %p165 = por %p163, %p164
      %p167 = scmp.ne.s32.totalorder %s152, %s166
      %p168 = scmp.eq.s32.totalorder %s37, 0
      %p169 = por %p167, %p168
      %s171 = sadd.s32 %s170, 1
      %p174 = scmp.eq.s32.totalorder %s31, 1
      %p175 = scmp.ne.s32.totalorder %s170, %s172
      %p176 = scmp.eq.s32.totalorder %s31, 0
      %p177 = por %p175, %p176
      %p178 = scmp.ne.s32.totalorder %s170, %s172
      %p179 = scmp.eq.s32.totalorder %s36, 1
      %p180 = por %p178, %p179
      %p181 = scmp.ne.s32.totalorder %s172, %s173
      %p182 = scmp.eq.s32.totalorder %s36, 0
      %p183 = por %p181, %p182
      %p184 = scmp.ne.s32.totalorder %s172, %s173
      %p185 = scmp.eq.s32.totalorder %s37, 1
      %p186 = por %p184, %p185
      %p188 = scmp.ne.s32.totalorder %s173, %s187
      %p189 = scmp.eq.s32.totalorder %s37, 0
      %p190 = por %p188, %p189
      %s192 = sadd.s32 %s191, 1
      %p195 = scmp.eq.s32.totalorder %s31, 1
      %p196 = scmp.ne.s32.totalorder %s191, %s193
      %p197 = scmp.eq.s32.totalorder %s31, 0
      %p198 = por %p196, %p197
      %p199 = scmp.ne.s32.totalorder %s191, %s193
      %p200 = scmp.eq.s32.totalorder %s36, 1
      %p201 = por %p199, %p200
      %p202 = scmp.ne.s32.totalorder %s193, %s194
      %p203 = scmp.eq.s32.totalorder %s36, 0
      %p204 = por %p202, %p203
      %p205 = scmp.ne.s32.totalorder %s193, %s194
      %p206 = scmp.eq.s32.totalorder %s37, 1
      %p207 = por %p205, %p206
      %p209 = scmp.ne.s32.totalorder %s194, %s208
      %p210 = scmp.eq.s32.totalorder %s37, 0
      %p211 = por %p209, %p210
      %s213 = sadd.s32 %s212, 1
      %p216 = scmp.eq.s32.totalorder %s31, 1
      %p217 = scmp.ne.s32.totalorder %s212, %s214
      %p218 = scmp.eq.s32.totalorder %s31, 0
      %p219 = por %p217, %p218
      %p220 = scmp.ne.s32.totalorder %s212, %s214
      %p221 = scmp.eq.s32.totalorder %s36, 1
      %p222 = por %p220, %p221
      %p223 = scmp.ne.s32.totalorder %s214, %s215
      %p224 = scmp.eq.s32.totalorder %s36, 0
      %p225 = por %p223, %p224
      %p226 = scmp.ne.s32.totalorder %s214, %s215
      %p227 = scmp.eq.s32.totalorder %s37, 1
      %p228 = por %p226, %p227
      %p230 = scmp.ne.s32.totalorder %s215, %s229
      %p231 = scmp.eq.s32.totalorder %s37, 0
      %p232 = por %p230, %p231
      %s234 = sadd.s32 %s233, 1
      %p237 = scmp.eq.s32.totalorder %s31, 1
      %p238 = scmp.ne.s32.totalorder %s233, %s235
      %p239 = scmp.eq.s32.totalorder %s31, 0
      %p240 = por %p238, %p239
      %p241 = scmp.ne.s32.totalorder %s233, %s235
      %p242 = scmp.eq.s32.totalorder %s36, 1
      %p243 = por %p241, %p242
      %p244 = scmp.ne.s32.totalorder %s235, %s236
      %p245 = scmp.eq.s32.totalorder %s36, 0
      %p246 = por %p244, %p245
      %p247 = scmp.ne.s32.totalorder %s235, %s236
      %p248 = scmp.eq.s32.totalorder %s37, 1
      %p249 = por %p247, %p248
      %p251 = scmp.ne.s32.totalorder %s236, %s250
      %p252 = scmp.eq.s32.totalorder %s37, 0
      %p253 = por %p251, %p252
      %s255 = sadd.s32 %s254, 1
      %p258 = scmp.eq.s32.totalorder %s31, 1
      %p259 = scmp.ne.s32.totalorder %s254, %s256
      %p260 = scmp.eq.s32.totalorder %s31, 0
      %p261 = por %p259, %p260
      %p262 = scmp.ne.s32.totalorder %s254, %s256
      %p263 = scmp.eq.s32.totalorder %s36, 1
      %p264 = por %p262, %p263
      %p265 = scmp.ne.s32.totalorder %s256, %s257
      %p266 = scmp.eq.s32.totalorder %s36, 0
      %p267 = por %p265, %p266
      %p268 = scmp.ne.s32.totalorder %s256, %s257
      %p269 = scmp.eq.s32.totalorder %s37, 1
      %p270 = por %p268, %p269
      %p272 = scmp.ne.s32.totalorder %s257, %s271
      %p273 = scmp.eq.s32.totalorder %s37, 0
      %p274 = por %p272, %p273
      %s276 = sadd.s32 %s275, 1
      %p279 = scmp.eq.s32.totalorder %s31, 1
      %p280 = scmp.ne.s32.totalorder %s275, %s277
      %p281 = scmp.eq.s32.totalorder %s31, 0
      %p282 = por %p280, %p281
      %p283 = scmp.ne.s32.totalorder %s275, %s277
      %p284 = scmp.eq.s32.totalorder %s36, 1
      %p285 = por %p283, %p284
      %p286 = scmp.ne.s32.totalorder %s277, %s278
      %p287 = scmp.eq.s32.totalorder %s36, 0
      %p288 = por %p286, %p287
      %p289 = scmp.ne.s32.totalorder %s277, %s278
      %p290 = scmp.eq.s32.totalorder %s37, 1
      %p291 = por %p289, %p290
      %p293 = scmp.ne.s32.totalorder %s278, %s292
      %p294 = scmp.eq.s32.totalorder %s37, 0
      %p295 = por %p293, %p294
      %s297 = sadd.s32 %s296, 1
      %p300 = scmp.eq.s32.totalorder %s31, 1
      %p301 = scmp.ne.s32.totalorder %s296, %s298
      %p302 = scmp.eq.s32.totalorder %s31, 0
      %p303 = por %p301, %p302
      %p304 = scmp.ne.s32.totalorder %s296, %s298
      %p305 = scmp.eq.s32.totalorder %s36, 1
      %p306 = por %p304, %p305
      %p307 = scmp.ne.s32.totalorder %s298, %s299
      %p308 = scmp.eq.s32.totalorder %s36, 0
      %p309 = por %p307, %p308
      %p310 = scmp.ne.s32.totalorder %s298, %s299
      %p311 = scmp.eq.s32.totalorder %s37, 1
      %p312 = por %p310, %p311
      %p314 = scmp.ne.s32.totalorder %s299, %s313
      %p315 = scmp.eq.s32.totalorder %s37, 0
      %p316 = por %p314, %p315
      %s318 = sadd.s32 %s317, 1
      %p321 = scmp.eq.s32.totalorder %s31, 1
      %p322 = scmp.ne.s32.totalorder %s317, %s319
      %p323 = scmp.eq.s32.totalorder %s31, 0
      %p324 = por %p322, %p323
      %p325 = scmp.ne.s32.totalorder %s317, %s319
      %p326 = scmp.eq.s32.totalorder %s36, 1
      %p327 = por %p325, %p326
      %p328 = scmp.ne.s32.totalorder %s319, %s320
      %p329 = scmp.eq.s32.totalorder %s36, 0
      %p330 = por %p328, %p329
      %p331 = scmp.ne.s32.totalorder %s319, %s320
      %p332 = scmp.eq.s32.totalorder %s37, 1
      %p333 = por %p331, %p332
      %p335 = scmp.ne.s32.totalorder %s320, %s334
      %p336 = scmp.eq.s32.totalorder %s37, 0
      %p337 = por %p335, %p336
      %s339 = sadd.s32 %s338, 1
      %p342 = scmp.eq.s32.totalorder %s31, 1
      %p343 = scmp.ne.s32.totalorder %s338, %s340
      %p344 = scmp.eq.s32.totalorder %s31, 0
      %p345 = por %p343, %p344
      %p346 = scmp.ne.s32.totalorder %s338, %s340
      %p347 = scmp.eq.s32.totalorder %s36, 1
      %p348 = por %p346, %p347
      %p349 = scmp.ne.s32.totalorder %s340, %s341
      %p350 = scmp.eq.s32.totalorder %s36, 0
      %p351 = por %p349, %p350
      %p352 = scmp.ne.s32.totalorder %s340, %s341
      %p353 = scmp.eq.s32.totalorder %s37, 1
      %p354 = por %p352, %p353
      %p356 = scmp.ne.s32.totalorder %s341, %s355
      %p357 = scmp.eq.s32.totalorder %s37, 0
      %p358 = por %p356, %p357
      %s360 = sadd.s32 %s359, 1
      %p363 = scmp.eq.s32.totalorder %s31, 1
      %p364 = scmp.ne.s32.totalorder %s359, %s361
      %p365 = scmp.eq.s32.totalorder %s31, 0
      %p366 = por %p364, %p365
      %p367 = scmp.ne.s32.totalorder %s359, %s361
      %p368 = scmp.eq.s32.totalorder %s36, 1
      %p369 = por %p367, %p368
      %p370 = scmp.ne.s32.totalorder %s361, %s362
      %p371 = scmp.eq.s32.totalorder %s36, 0
      %p372 = por %p370, %p371
      %p373 = scmp.ne.s32.totalorder %s361, %s362
      %p374 = scmp.eq.s32.totalorder %s37, 1
      %p375 = por %p373, %p374
      %p377 = scmp.ne.s32.totalorder %s362, %s376
      %p378 = scmp.eq.s32.totalorder %s37, 0
      %p379 = por %p377, %p378
      %s381 = sadd.s32 %s380, 1
      %p384 = scmp.eq.s32.totalorder %s31, 1
      %p385 = scmp.ne.s32.totalorder %s380, %s382
      %p386 = scmp.eq.s32.totalorder %s31, 0
      %p387 = por %p385, %p386
      %p388 = scmp.ne.s32.totalorder %s380, %s382
      %p389 = scmp.eq.s32.totalorder %s36, 1
      %p390 = por %p388, %p389
      %p391 = scmp.ne.s32.totalorder %s382, %s383
      %p392 = scmp.eq.s32.totalorder %s36, 0
      %p393 = por %p391, %p392
      %p394 = scmp.ne.s32.totalorder %s382, %s383
      %p395 = scmp.eq.s32.totalorder %s37, 1
      %p396 = por %p394, %p395
      %p398 = scmp.ne.s32.totalorder %s383, %s397
      %p399 = scmp.eq.s32.totalorder %s37, 0
      %p400 = por %p398, %p399
      %s402 = sadd.s32 %s401, 1
      %p405 = scmp.eq.s32.totalorder %s31, 1
      %p406 = scmp.ne.s32.totalorder %s401, %s403
      %p407 = scmp.eq.s32.totalorder %s31, 0
      %p408 = por %p406, %p407
      %p409 = scmp.ne.s32.totalorder %s401, %s403
      %p410 = scmp.eq.s32.totalorder %s36, 1
      %p411 = por %p409, %p410
      %p412 = scmp.ne.s32.totalorder %s403, %s404
      %p413 = scmp.eq.s32.totalorder %s36, 0
      %p414 = por %p412, %p413
      %p415 = scmp.ne.s32.totalorder %s403, %s404
      %p416 = scmp.eq.s32.totalorder %s37, 1
      %p417 = por %p415, %p416
      %p419 = scmp.ne.s32.totalorder %s404, %s418
      %p420 = scmp.eq.s32.totalorder %s37, 0
      %p421 = por %p419, %p420
      %s423 = sadd.s32 %s422, 1
      %p426 = scmp.eq.s32.totalorder %s31, 1
      %p427 = scmp.ne.s32.totalorder %s422, %s424
      %p428 = scmp.eq.s32.totalorder %s31, 0
      %p429 = por %p427, %p428
      %p430 = scmp.ne.s32.totalorder %s422, %s424
      %p431 = scmp.eq.s32.totalorder %s36, 1
      %p432 = por %p430, %p431
      %p433 = scmp.ne.s32.totalorder %s424, %s425
      %p434 = scmp.eq.s32.totalorder %s36, 0
      %p435 = por %p433, %p434
      %p436 = scmp.ne.s32.totalorder %s424, %s425
      %p437 = scmp.eq.s32.totalorder %s37, 1
      %p438 = por %p436, %p437
      %p440 = scmp.ne.s32.totalorder %s425, %s439
      %p441 = scmp.eq.s32.totalorder %s37, 0
      %p442 = por %p440, %p441
      %s444 = sadd.s32 %s443, 1
      %p447 = scmp.eq.s32.totalorder %s31, 1
      %p448 = scmp.ne.s32.totalorder %s443, %s445
      %p449 = scmp.eq.s32.totalorder %s31, 0
      %p450 = por %p448, %p449
      %p451 = scmp.ne.s32.totalorder %s443, %s445
      %p452 = scmp.eq.s32.totalorder %s36, 1
      %p453 = por %p451, %p452
      %p454 = scmp.ne.s32.totalorder %s445, %s446
      %p455 = scmp.eq.s32.totalorder %s36, 0
      %p456 = por %p454, %p455
      %p457 = scmp.ne.s32.totalorder %s445, %s446
      %p458 = scmp.eq.s32.totalorder %s37, 1
      %p459 = por %p457, %p458
      %p461 = scmp.ne.s32.totalorder %s446, %s460
      %p462 = scmp.eq.s32.totalorder %s37, 0
      %p463 = por %p461, %p462
      %s465 = sadd.s32 %s464, 1
      %p468 = scmp.eq.s32.totalorder %s31, 1
      %p469 = scmp.ne.s32.totalorder %s464, %s466
      %p470 = scmp.eq.s32.totalorder %s31, 0
      %p471 = por %p469, %p470
      %p472 = scmp.ne.s32.totalorder %s464, %s466
      %p473 = scmp.eq.s32.totalorder %s36, 1
      %p474 = por %p472, %p473
      %p475 = scmp.ne.s32.totalorder %s466, %s467
      %p476 = scmp.eq.s32.totalorder %s36, 0
      %p477 = por %p475, %p476
      %p478 = scmp.ne.s32.totalorder %s466, %s467
      %p479 = scmp.eq.s32.totalorder %s37, 1
      %p480 = por %p478, %p479
      %p482 = scmp.ne.s32.totalorder %s467, %s481
      %p483 = scmp.eq.s32.totalorder %s37, 0
      %p484 = por %p482, %p483
      %s485 = ssub.s32 %s31, %s38
      %p486 = scmp.eq.s32.totalorder %s485, 0
      %s488 = sadd.s32 %s487, 1
      %s489 = scalar_select %p486, %s487, %s488
      %p492 = pneg %p486
      %p493 = scmp.eq.s32.totalorder %s31, 1
      %p494 = por %p492, %p493
      %p495 = scmp.ne.s32.totalorder %s487, %s490
      %p496 = scmp.eq.s32.totalorder %s31, 0
      %p497 = por %p495, %p496
      %p498 = scmp.ne.s32.totalorder %s487, %s490
      %p499 = scmp.eq.s32.totalorder %s36, 1
      %p500 = por %p498, %p499
      %p501 = scmp.ne.s32.totalorder %s490, %s491
      %p502 = scmp.eq.s32.totalorder %s36, 0
      %p503 = por %p501, %p502
      %p504 = scmp.ne.s32.totalorder %s490, %s491
      %p505 = scmp.eq.s32.totalorder %s37, 1
      %p506 = por %p504, %p505
      %p508 = scmp.ne.s32.totalorder %s491, %s507
      %p509 = scmp.eq.s32.totalorder %s37, 0
      %p510 = por %p508, %p509
      %p511 = scmp.le.s32.totalorder 1, %s31
      %p512 = scmp.lt.s32.totalorder %s31, 3
      %p513 = pnand %p511, %p512
      %p514 = pneg %p513
      // Predicated region
      $region9: #{tpu_custom_call.1} parent=5 // pred_check
        _
      $region10: #{tpu_custom_call.1} parent=5 // pred_check_branch
        %516 = sbr.rel (%p513) target = $region12
      $region11: #{tpu_custom_call.1} parent=5 // pred_region
        %s517 = ssub.s32 %s31, 1
        // Predicated region
        $region13: #{tpu_custom_call.1} parent=11 // pred_check
          %p518 = pneg %p78
        $region14: #{tpu_custom_call.1} parent=11 // pred_check_branch
          %520 = sbr.rel (%p518) target = $region16
        $region15: #{tpu_custom_call.1} parent=11 // pred_region
          _
        $region16: #{tpu_custom_call.1} parent=11 // pred_fallthru
          _
        // Predicated region
        $region17: #{tpu_custom_call.1} parent=11 // pred_check
          %p521 = pneg %p99
        $region18: #{tpu_custom_call.1} parent=11 // pred_check_branch
          %523 = sbr.rel (%p521) target = $region20
        $region19: #{tpu_custom_call.1} parent=11 // pred_region
          _
        $region20: #{tpu_custom_call.1} parent=11 // pred_fallthru
          _
        // Predicated region
        $region21: #{tpu_custom_call.1} parent=11 // pred_check
          %p524 = pneg %p120
        $region22: #{tpu_custom_call.1} parent=11 // pred_check_branch
          %526 = sbr.rel (%p524) target = $region24
        $region23: #{tpu_custom_call.1} parent=11 // pred_region
          _
        $region24: #{tpu_custom_call.1} parent=11 // pred_fallthru
          _
        // Predicated region
        $region25: #{tpu_custom_call.1} parent=11 // pred_check
          %p527 = pneg %p141
        $region26: #{tpu_custom_call.1} parent=11 // pred_check_branch
          %529 = sbr.rel (%p527) target = $region28
        $region27: #{tpu_custom_call.1} parent=11 // pred_region
          _
        $region28: #{tpu_custom_call.1} parent=11 // pred_fallthru
          _
        // Predicated region
        $region29: #{tpu_custom_call.1} parent=11 // pred_check
          %p530 = pneg %p162
        $region30: #{tpu_custom_call.1} parent=11 // pred_check_branch
          %532 = sbr.rel (%p530) target = $region32
        $region31: #{tpu_custom_call.1} parent=11 // pred_region
          _
        $region32: #{tpu_custom_call.1} parent=11 // pred_fallthru
          _
        // Predicated region
        $region33: #{tpu_custom_call.1} parent=11 // pred_check
          %p533 = pneg %p183
        $region34: #{tpu_custom_call.1} parent=11 // pred_check_branch
          %535 = sbr.rel (%p533) target = $region36
        $region35: #{tpu_custom_call.1} parent=11 // pred_region
          _
        $region36: #{tpu_custom_call.1} parent=11 // pred_fallthru
          _
        // Predicated region
        $region37: #{tpu_custom_call.1} parent=11 // pred_check
          %p536 = pneg %p204
        $region38: #{tpu_custom_call.1} parent=11 // pred_check_branch
          %538 = sbr.rel (%p536) target = $region40
        $region39: #{tpu_custom_call.1} parent=11 // pred_region
          %s540 = ssub.s32 2048, 2048
          %541 = vsyncadd [#allocation4], %s540
          %s542 = sshll.u32 [#allocation3], 4
          %s543 = int_to_ptr.vmem [resolvable:$true] %s542
          %548 = dma.hbm_to_vmem [thread:$0]  %s7, 2048, %s543, [#allocation4], 128, 128, 8
        $region40: #{tpu_custom_call.1} parent=11 // pred_fallthru
          _
        // Predicated region
        $region41: #{tpu_custom_call.1} parent=11 // pred_check
          %p549 = pneg %p225
        $region42: #{tpu_custom_call.1} parent=11 // pred_check_branch
          %551 = sbr.rel (%p549) target = $region44
        $region43: #{tpu_custom_call.1} parent=11 // pred_region
          _
        $region44: #{tpu_custom_call.1} parent=11 // pred_fallthru
          _
        // Predicated region
        $region45: #{tpu_custom_call.1} parent=11 // pred_check
          %p552 = pneg %p246
        $region46: #{tpu_custom_call.1} parent=11 // pred_check_branch
          %554 = sbr.rel (%p552) target = $region48
        $region47: #{tpu_custom_call.1} parent=11 // pred_region
          _
        $region48: #{tpu_custom_call.1} parent=11 // pred_fallthru
          _
        // Predicated region
        $region49: #{tpu_custom_call.1} parent=11 // pred_check
          %p555 = pneg %p267
        $region50: #{tpu_custom_call.1} parent=11 // pred_check_branch
          %557 = sbr.rel (%p555) target = $region52
        $region51: #{tpu_custom_call.1} parent=11 // pred_region
          _
        $region52: #{tpu_custom_call.1} parent=11 // pred_fallthru
          _
        // Predicated region
        $region53: #{tpu_custom_call.1} parent=11 // pred_check
          %p558 = pneg %p288
        $region54: #{tpu_custom_call.1} parent=11 // pred_check_branch
          %560 = sbr.rel (%p558) target = $region56
        $region55: #{tpu_custom_call.1} parent=11 // pred_region
          %s562 = ssub.s32 8192, 8192
          %563 = vsyncadd [#allocation6], %s562
          %s564 = sshll.u32 [#allocation5], 4
          %s565 = int_to_ptr.vmem [resolvable:$true] %s564
          %570 = dma.hbm_to_vmem [thread:$0]  %s11, 8192, %s565, [#allocation6], 128, 128, 8
        $region56: #{tpu_custom_call.1} parent=11 // pred_fallthru
          _
        // Predicated region
        $region57: #{tpu_custom_call.1} parent=11 // pred_check
          %p571 = pneg %p309
        $region58: #{tpu_custom_call.1} parent=11 // pred_check_branch
          %573 = sbr.rel (%p571) target = $region60
        $region59: #{tpu_custom_call.1} parent=11 // pred_region
          _
        $region60: #{tpu_custom_call.1} parent=11 // pred_fallthru
          _
        // Predicated region
        $region61: #{tpu_custom_call.1} parent=11 // pred_check
          %p574 = pneg %p330
        $region62: #{tpu_custom_call.1} parent=11 // pred_check_branch
          %576 = sbr.rel (%p574) target = $region64
        $region63: #{tpu_custom_call.1} parent=11 // pred_region
          %s578 = ssub.s32 2048, 2048
          %579 = vsyncadd [#allocation6], %s578
          %s580 = sshll.u32 [#allocation7], 4
          %s581 = int_to_ptr.vmem [resolvable:$true] %s580
          %586 = dma.hbm_to_vmem [thread:$0]  %s13, 2048, %s581, [#allocation6], 64, 64, 4
        $region64: #{tpu_custom_call.1} parent=11 // pred_fallthru
          _
        // Predicated region
        $region65: #{tpu_custom_call.1} parent=11 // pred_check
          %p587 = pneg %p351
        $region66: #{tpu_custom_call.1} parent=11 // pred_check_branch
          %589 = sbr.rel (%p587) target = $region68
        $region67: #{tpu_custom_call.1} parent=11 // pred_region
          _
        $region68: #{tpu_custom_call.1} parent=11 // pred_fallthru
          _
        // Predicated region
        $region69: #{tpu_custom_call.1} parent=11 // pred_check
          %p590 = pneg %p372
        $region70: #{tpu_custom_call.1} parent=11 // pred_check_branch
          %592 = sbr.rel (%p590) target = $region72
        $region71: #{tpu_custom_call.1} parent=11 // pred_region
          _
        $region72: #{tpu_custom_call.1} parent=11 // pred_fallthru
          _
        // Predicated region
        $region73: #{tpu_custom_call.1} parent=11 // pred_check
          %p593 = pneg %p393
        $region74: #{tpu_custom_call.1} parent=11 // pred_check_branch
          %595 = sbr.rel (%p593) target = $region76
        $region75: #{tpu_custom_call.1} parent=11 // pred_region
          _
        $region76: #{tpu_custom_call.1} parent=11 // pred_fallthru
          _
        // Predicated region
        $region77: #{tpu_custom_call.1} parent=11 // pred_check
          %p596 = pneg %p414
        $region78: #{tpu_custom_call.1} parent=11 // pred_check_branch
          %598 = sbr.rel (%p596) target = $region80
        $region79: #{tpu_custom_call.1} parent=11 // pred_region
          _
        $region80: #{tpu_custom_call.1} parent=11 // pred_fallthru
          _
        // Predicated region
        $region81: #{tpu_custom_call.1} parent=11 // pred_check
          %p599 = pneg %p435
        $region82: #{tpu_custom_call.1} parent=11 // pred_check_branch
          %601 = sbr.rel (%p599) target = $region84
        $region83: #{tpu_custom_call.1} parent=11 // pred_region
          _
        $region84: #{tpu_custom_call.1} parent=11 // pred_fallthru
          _
        // Predicated region
        $region85: #{tpu_custom_call.1} parent=11 // pred_check
          %p602 = pneg %p456
        $region86: #{tpu_custom_call.1} parent=11 // pred_check_branch
          %604 = sbr.rel (%p602) target = $region88
        $region87: #{tpu_custom_call.1} parent=11 // pred_region
          _
        $region88: #{tpu_custom_call.1} parent=11 // pred_fallthru
          _
        // Predicated region
        $region89: #{tpu_custom_call.1} parent=11 // pred_check
          %p605 = pneg %p477
        $region90: #{tpu_custom_call.1} parent=11 // pred_check_branch
          %607 = sbr.rel (%p605) target = $region92
        $region91: #{tpu_custom_call.1} parent=11 // pred_region
          _
        $region92: #{tpu_custom_call.1} parent=11 // pred_fallthru
          _
      $region12: #{tpu_custom_call.1} parent=5 // pred_fallthru
        _
      %p608 = scmp.lt.s32.totalorder %s31, 2
      // Predicated region
      $region93: #{tpu_custom_call.1} parent=5 // pred_check
        %p609 = pneg %p608
      $region94: #{tpu_custom_call.1} parent=5 // pred_check_branch
        %611 = sbr.rel (%p609) target = $region96
      $region95: #{tpu_custom_call.1} parent=5 // pred_region
        // Predicated region
        $region97: #{tpu_custom_call.1} parent=95 // pred_check
          %p612 = pneg %p51
        $region98: #{tpu_custom_call.1} parent=95 // pred_check_branch
          %614 = sbr.rel (%p612) target = $region100
        $region99: #{tpu_custom_call.1} parent=95 // pred_region
          %s615 = smul.u32 32, %s31
          %p616 = scmp.lt.s32.totalorder %s615, 63
          %s617 = scalar_select %p616, %s615, 63
          %s618 = smul.addr %s617, 8
          %s619 = scalar_lea.vmem %s0, %s618
          %s620 = smul.u32 32, %s31
        $region100: #{tpu_custom_call.1} parent=95 // pred_fallthru
          _
      $region96: #{tpu_custom_call.1} parent=5 // pred_fallthru
        _
      %p621 = scmp.le.s32.totalorder 1, %s31
      %p622 = scmp.lt.s32.totalorder %s31, 3
      %p623 = pnand %p621, %p622
      %p624 = pneg %p623
      // Predicated region
      $region101: #{tpu_custom_call.1} parent=5 // pred_check
        _
      $region102: #{tpu_custom_call.1} parent=5 // pred_check_branch
        %626 = sbr.rel (%p623) target = $region104
      $region103: #{tpu_custom_call.1} parent=5 // pred_region
        %s627 = ssub.s32 %s31, 1
        // Predicated region
        $region105: #{tpu_custom_call.1} parent=103 // pred_check
          %p628 = pneg %p204
        $region106: #{tpu_custom_call.1} parent=103 // pred_check_branch
          %630 = sbr.rel (%p628) target = $region108
        $region107: #{tpu_custom_call.1} parent=103 // pred_region
          %631 = dma.done [#allocation4], 2048
        $region108: #{tpu_custom_call.1} parent=103 // pred_fallthru
          _
        // Predicated region
        $region109: #{tpu_custom_call.1} parent=103 // pred_check
          %p632 = pneg %p288
        $region110: #{tpu_custom_call.1} parent=103 // pred_check_branch
          %634 = sbr.rel (%p632) target = $region112
        $region111: #{tpu_custom_call.1} parent=103 // pred_region
          %635 = dma.done [#allocation6], 8192
        $region112: #{tpu_custom_call.1} parent=103 // pred_fallthru
          _
        // Predicated region
        $region113: #{tpu_custom_call.1} parent=103 // pred_check
          %p636 = pneg %p330
        $region114: #{tpu_custom_call.1} parent=103 // pred_check_branch
          %638 = sbr.rel (%p636) target = $region116
        $region115: #{tpu_custom_call.1} parent=103 // pred_region
          %639 = dma.done [#allocation6], 2048
        $region116: #{tpu_custom_call.1} parent=103 // pred_fallthru
          _
        %s640 = smul.u32 32, %s36
        %p641 = scmp.lt.s32.totalorder %s640, 63
        %s642 = scalar_select %p641, %s640, 63
        %s643 = smul.addr %s642, 8
        %s644 = scalar_lea.vmem %s0, %s643
        %p645 = pneg %p57
        %p646 = pneg %p54
        %p647 = pneg %p78
        %p648 = pneg %p75
        %p649 = pneg %p99
        %p650 = pneg %p96
        %p651 = pneg %p120
        %p652 = pneg %p117
        %p653 = pneg %p141
        %p654 = pneg %p138
        %p655 = pneg %p162
        %p656 = pneg %p159
        %p657 = pneg %p183
        %p658 = pneg %p180
        %p659 = pneg %p204
        %p660 = pneg %p201
        %p661 = pneg %p225
        %p662 = pneg %p222
        %p663 = pneg %p246
        %p664 = pneg %p243
        %p665 = pneg %p267
        %p666 = pneg %p264
        %p667 = pneg %p288
        %p668 = pneg %p285
        %p669 = pneg %p309
        %p670 = pneg %p306
        %p671 = pneg %p330
        %p672 = pneg %p327
        %p673 = pneg %p351
        %p674 = pneg %p348
        %p675 = pneg %p372
        %p676 = pneg %p369
        %p677 = pneg %p393
        %p678 = pneg %p390
        %p679 = pneg %p414
        %p680 = pneg %p411
        %p681 = pneg %p435
        %p682 = pneg %p432
        %p683 = pneg %p456
        %p684 = pneg %p453
        %p685 = pneg %p477
        %p686 = pneg %p474
        %p687 = pneg %p503
        %p688 = pneg %p500
        %s689 = smul.u32 32, %s36
        %p690 = scmp.lt.s32.totalorder %s689, 63
        %s691 = scalar_select %p690, %s689, 63
        %s692 = smul.addr %s691, 8
        %s693 = scalar_lea.vmem %s21, %s692
        %s694 = smul.u32 32, %s36
        %p695 = scmp.lt.s32.totalorder %s694, 63
        %s696 = scalar_select %p695, %s694, 63
        %s697 = smul.addr %s696, 8
        %s698 = scalar_lea.vmem %s0, %s697
        %s699 = smul.u32 32, %s36
        %s700 = smul.u32 32, %s36
        %p701 = scmp.lt.s32.totalorder %s700, 63
        %s702 = scalar_select %p701, %s700, 63
        %s703 = smul.addr %s702, 8
        %s704 = scalar_lea.vmem %s21, %s703
        %s705 = smul.u32 32, %s36
        %v707 = vld [vmem:[%s698] sm:$0xff]
        %v708 = vld [vmem:[%s698 + $0x8] sm:$0xff]
        %v709 = vld [vmem:[%s698 + $0x10] sm:$0xff]
        %v710 = vld [vmem:[%s698 + $0x18] sm:$0xff]
        %v711 = vld [vmem:[%s698 + $0x20] sm:$0xff]
        %v712 = vld [vmem:[%s698 + $0x28] sm:$0xff]
        %v713 = vld [vmem:[%s698 + $0x30] sm:$0xff]
        %v714 = vld [vmem:[%s698 + $0x38] sm:$0xff]
        %v715 = vld [vmem:[%s698 + $0x40] sm:$0xff]
        %v716 = vld [vmem:[%s698 + $0x48] sm:$0xff]
        %v717 = vld [vmem:[%s698 + $0x50] sm:$0xff]
        %v718 = vld [vmem:[%s698 + $0x58] sm:$0xff]
        %v719 = vld [vmem:[%s698 + $0x60] sm:$0xff]
        %v720 = vld [vmem:[%s698 + $0x68] sm:$0xff]
        %v721 = vld [vmem:[%s698 + $0x70] sm:$0xff]
        %v722 = vld [vmem:[%s698 + $0x78] sm:$0xff]
        %v723 = vld [vmem:[%s698 + $0x80] sm:$0xff]
        %v724 = vld [vmem:[%s698 + $0x88] sm:$0xff]
        %v725 = vld [vmem:[%s698 + $0x90] sm:$0xff]
        %v726 = vld [vmem:[%s698 + $0x98] sm:$0xff]
        %v727 = vld [vmem:[%s698 + $0xa0] sm:$0xff]
        %v728 = vld [vmem:[%s698 + $0xa8] sm:$0xff]
        %v729 = vld [vmem:[%s698 + $0xb0] sm:$0xff]
        %v730 = vld [vmem:[%s698 + $0xb8] sm:$0xff]
        %v731 = vld [vmem:[%s698 + $0xc0] sm:$0xff]
        %v732 = vld [vmem:[%s698 + $0xc8] sm:$0xff]
        %v733 = vld [vmem:[%s698 + $0xd0] sm:$0xff]
        %v734 = vld [vmem:[%s698 + $0xd8] sm:$0xff]
        %v735 = vld [vmem:[%s698 + $0xe0] sm:$0xff]
        %v736 = vld [vmem:[%s698 + $0xe8] sm:$0xff]
        %v737 = vld [vmem:[%s698 + $0xf0] sm:$0xff]
        %v738 = vld [vmem:[%s698 + $0xf8] sm:$0xff]
        %v739 = vld [vmem:[%s1] sm:$0xf]
        %v740 = vld [vmem:[%s2] sm:$0x1]
        %v741 = vpack.c.bf16 %v708, %v707
        %v742 = vpack.c.bf16 %v710, %v709
        %v743 = vpack.c.bf16 %v712, %v711
        %v744 = vpack.c.bf16 %v714, %v713
        %v745 = vpack.c.bf16 %v716, %v715
        %v746 = vpack.c.bf16 %v718, %v717
        %v747 = vpack.c.bf16 %v720, %v719
        %v748 = vpack.c.bf16 %v722, %v721
        %v749 = vpack.c.bf16 %v724, %v723
        %v750 = vpack.c.bf16 %v726, %v725
        %v751 = vpack.c.bf16 %v728, %v727
        %v752 = vpack.c.bf16 %v730, %v729
        %v753 = vpack.c.bf16 %v732, %v731
        %v754 = vpack.c.bf16 %v734, %v733
        %v755 = vpack.c.bf16 %v736, %v735
        %v756 = vpack.c.bf16 %v738, %v737
        %v758 = vlaneseq
        %v759 = vshrl.u32 %v758, 7
        %v760 = vsub.s32 0, %v759
        %v761 = vrot.slane %v740, %v760
        %vm763 = vcmask 64512
        %v765 = vsel %vm763, %v741, 0
        %v768 = vsel %vm763, %v742, 0
        %v771 = vsel %vm763, %v743, 0
        %v774 = vsel %vm763, %v744, 0
        %v777 = vsel %vm763, %v745, 0
        %v780 = vsel %vm763, %v746, 0
        %v783 = vsel %vm763, %v747, 0
        %v786 = vsel %vm763, %v748, 0
        %v789 = vsel %vm763, %v749, 0
        %v792 = vsel %vm763, %v750, 0
        %v795 = vsel %vm763, %v751, 0
        %v798 = vsel %vm763, %v752, 0
        %v801 = vsel %vm763, %v753, 0
        %v804 = vsel %vm763, %v754, 0
        %v807 = vsel %vm763, %v755, 0
        %v810 = vsel %vm763, %v756, 0
        %vm812 = vcmask 1043456
        %v814 = vsel %vm812, %v739, 0
        %816 = vmatprep.subr.bf16.mxu0 0
        %817 = vmatpush1.bf16.msra.mxu0 %v814
        %818 = vmatprep.subr.bf16.mxu0 0
        %819 = vmatpush1.bf16.msra.mxu0 0
        %820 = vmatprep.subr.bf16.mxu0 0
        %821 = vmatpush1.bf16.msra.mxu0 0
        %822 = vmatprep.subr.bf16.mxu0 0
        %823 = vmatpush1.bf16.msra.mxu0 0
        %824 = vmatprep.subr.bf16.mxu0 0
        %825 = vmatpush1.bf16.msra.mxu0 0
        %826 = vmatprep.subr.bf16.mxu0 0
        %827 = vmatpush1.bf16.msra.mxu0 0
        %828 = vmatprep.subr.bf16.mxu0 0
        %829 = vmatpush1.bf16.msra.mxu0 0
        %830 = vmatprep.subr.bf16.mxu0 0
        %831 = vmatpush1.bf16.msra.mxu0 0
        %832 = vmatprep.subr.bf16.mxu0 0
        %833 = vmatpush1.bf16.msra.mxu0 0
        %834 = vmatprep.subr.bf16.mxu0 0
        %835 = vmatpush1.bf16.msra.mxu0 0
        %836 = vmatprep.subr.bf16.mxu0 0
        %837 = vmatpush1.bf16.msra.mxu0 0
        %838 = vmatprep.subr.bf16.mxu0 0
        %839 = vmatpush1.bf16.msra.mxu0 0
        %840 = vmatprep.subr.bf16.mxu0 0
        %841 = vmatpush1.bf16.msra.mxu0 0
        %842 = vmatprep.subr.bf16.mxu0 0
        %843 = vmatpush1.bf16.msra.mxu0 0
        %844 = vmatprep.subr.bf16.mxu0 0
        %845 = vmatpush1.bf16.msra.mxu0 0
        %846 = vmatprep.subr.bf16.mxu0 0
        %847 = vmatpush1.bf16.msra.mxu0 0
        %848 = vmatprep.mubr.bf16.mxu0 0
        %849 = vmatmul.mubr.bf16.gmra.mrb[0].mxu0 %v765
        %v850 = vpop.f32.mrb[0].mxu0
        %v851 = vadd.f32 %v761, %v850
        %v852 = vpop.f32.mrb[0].mxu0
        %v853 = vpop.f32.mrb[0].mxu0
        %v854 = vadd.f32 %v761, %v853
        %v855 = vpop.f32.mrb[0].mxu0
        %856 = vmatprep.mubr.bf16.mxu0 0
        %857 = vmatmul.mubr.bf16.gmra.mrb[0].mxu0 %v768
        %v858 = vpop.f32.mrb[0].mxu0
        %v859 = vadd.f32 %v761, %v858
        %v860 = vpop.f32.mrb[0].mxu0
        %v861 = vpop.f32.mrb[0].mxu0
        %v862 = vadd.f32 %v761, %v861
        %v863 = vpop.f32.mrb[0].mxu0
        %864 = vmatprep.mubr.bf16.mxu0 0
        %865 = vmatmul.mubr.bf16.gmra.mrb[0].mxu0 %v771
        %v866 = vpop.f32.mrb[0].mxu0
        %v867 = vadd.f32 %v761, %v866
        %v868 = vpop.f32.mrb[0].mxu0
        %v869 = vpop.f32.mrb[0].mxu0
        %v870 = vadd.f32 %v761, %v869
        %v871 = vpop.f32.mrb[0].mxu0
        %872 = vmatprep.mubr.bf16.mxu0 0
        %873 = vmatmul.mubr.bf16.gmra.mrb[0].mxu0 %v774
        %v874 = vpop.f32.mrb[0].mxu0
        %v875 = vadd.f32 %v761, %v874
        %v876 = vpop.f32.mrb[0].mxu0
        %v877 = vpop.f32.mrb[0].mxu0
        %v878 = vadd.f32 %v761, %v877
        %v879 = vpop.f32.mrb[0].mxu0
        %880 = vmatprep.mubr.bf16.mxu0 0
        %881 = vmatmul.mubr.bf16.gmra.mrb[0].mxu0 %v777
        %v882 = vpop.f32.mrb[0].mxu0
        %v883 = vadd.f32 %v761, %v882
        %v884 = vpop.f32.mrb[0].mxu0
        %v885 = vpop.f32.mrb[0].mxu0
        %v886 = vadd.f32 %v761, %v885
        %v887 = vpop.f32.mrb[0].mxu0
        %888 = vmatprep.mubr.bf16.mxu0 0
        %889 = vmatmul.mubr.bf16.gmra.mrb[0].mxu0 %v780
        %v890 = vpop.f32.mrb[0].mxu0
        %v891 = vadd.f32 %v761, %v890
        %v892 = vpop.f32.mrb[0].mxu0
        %v893 = vpop.f32.mrb[0].mxu0
        %v894 = vadd.f32 %v761, %v893
        %v895 = vpop.f32.mrb[0].mxu0
        %896 = vmatprep.mubr.bf16.mxu0 0
        %897 = vmatmul.mubr.bf16.gmra.mrb[0].mxu0 %v783
        %v898 = vpop.f32.mrb[0].mxu0
        %v899 = vadd.f32 %v761, %v898
        %v900 = vpop.f32.mrb[0].mxu0
        %v901 = vpop.f32.mrb[0].mxu0
        %v902 = vadd.f32 %v761, %v901
        %v903 = vpop.f32.mrb[0].mxu0
        %904 = vmatprep.mubr.bf16.mxu0 0
        %905 = vmatmul.mubr.bf16.gmra.mrb[0].mxu0 %v786
        %v906 = vpop.f32.mrb[0].mxu0
        %v907 = vadd.f32 %v761, %v906
        %v908 = vpop.f32.mrb[0].mxu0
        %v909 = vpop.f32.mrb[0].mxu0
        %v910 = vadd.f32 %v761, %v909
        %v911 = vpop.f32.mrb[0].mxu0
        %912 = vmatprep.mubr.bf16.mxu0 0
        %913 = vmatmul.mubr.bf16.gmra.mrb[0].mxu0 %v789
        %v914 = vpop.f32.mrb[0].mxu0
        %v915 = vadd.f32 %v761, %v914
        %v916 = vpop.f32.mrb[0].mxu0
        %v917 = vpop.f32.mrb[0].mxu0
        %v918 = vadd.f32 %v761, %v917
        %v919 = vpop.f32.mrb[0].mxu0
        %920 = vmatprep.mubr.bf16.mxu0 0
        %921 = vmatmul.mubr.bf16.gmra.mrb[0].mxu0 %v792
        %v922 = vpop.f32.mrb[0].mxu0
        %v923 = vadd.f32 %v761, %v922
        %v924 = vpop.f32.mrb[0].mxu0
        %v925 = vpop.f32.mrb[0].mxu0
        %v926 = vadd.f32 %v761, %v925
        %v927 = vpop.f32.mrb[0].mxu0
        %928 = vmatprep.mubr.bf16.mxu0 0
        %929 = vmatmul.mubr.bf16.gmra.mrb[0].mxu0 %v795
        %v930 = vpop.f32.mrb[0].mxu0
        %v931 = vadd.f32 %v761, %v930
        %v932 = vpop.f32.mrb[0].mxu0
        %v933 = vpop.f32.mrb[0].mxu0
        %v934 = vadd.f32 %v761, %v933
        %v935 = vpop.f32.mrb[0].mxu0
        %936 = vmatprep.mubr.bf16.mxu0 0
        %937 = vmatmul.mubr.bf16.gmra.mrb[0].mxu0 %v798
        %v938 = vpop.f32.mrb[0].mxu0
        %v939 = vadd.f32 %v761, %v938
        %v940 = vpop.f32.mrb[0].mxu0
        %v941 = vpop.f32.mrb[0].mxu0
        %v942 = vadd.f32 %v761, %v941
        %v943 = vpop.f32.mrb[0].mxu0
        %944 = vmatprep.mubr.bf16.mxu0 0
        %945 = vmatmul.mubr.bf16.gmra.mrb[0].mxu0 %v801
        %v946 = vpop.f32.mrb[0].mxu0
        %v947 = vadd.f32 %v761, %v946
        %v948 = vpop.f32.mrb[0].mxu0
        %v949 = vpop.f32.mrb[0].mxu0
        %v950 = vadd.f32 %v761, %v949
        %v951 = vpop.f32.mrb[0].mxu0
        %952 = vmatprep.mubr.bf16.mxu0 0
        %953 = vmatmul.mubr.bf16.gmra.mrb[0].mxu0 %v804
        %v954 = vpop.f32.mrb[0].mxu0
        %v955 = vadd.f32 %v761, %v954
        %v956 = vpop.f32.mrb[0].mxu0
        %v957 = vpop.f32.mrb[0].mxu0
        %v958 = vadd.f32 %v761, %v957
        %v959 = vpop.f32.mrb[0].mxu0
        %960 = vmatprep.mubr.bf16.mxu0 0
        %961 = vmatmul.mubr.bf16.gmra.mrb[0].mxu0 %v807
        %v962 = vpop.f32.mrb[0].mxu0
        %v963 = vadd.f32 %v761, %v962
        %v964 = vpop.f32.mrb[0].mxu0
        %v965 = vpop.f32.mrb[0].mxu0
        %v966 = vadd.f32 %v761, %v965
        %v967 = vpop.f32.mrb[0].mxu0
        %968 = vmatprep.mubr.bf16.mxu0 0
        %969 = vmatmul.mubr.bf16.gmra.mrb[0].mxu0 %v810
        %v970 = vpop.f32.mrb[0].mxu0
        %v971 = vadd.f32 %v761, %v970
        %v972 = vpop.f32.mrb[0].mxu0
        %v973 = vpop.f32.mrb[0].mxu0
        %v974 = vadd.f32 %v761, %v973
        %v975 = vpop.f32.mrb[0].mxu0
        %976 = vdwg.mxu0
        %v977 = vmax.f32 %v851, 0.0
        %v978 = vmax.f32 %v854, 0.0
        %v979 = vmax.f32 %v859, 0.0
        %v980 = vmax.f32 %v862, 0.0
        %v981 = vmax.f32 %v867, 0.0
        %v982 = vmax.f32 %v870, 0.0
        %v983 = vmax.f32 %v875, 0.0
        %v984 = vmax.f32 %v878, 0.0
        %v985 = vmax.f32 %v883, 0.0
        %v986 = vmax.f32 %v886, 0.0
        %v987 = vmax.f32 %v891, 0.0
        %v988 = vmax.f32 %v894, 0.0
        %v989 = vmax.f32 %v899, 0.0
        %v990 = vmax.f32 %v902, 0.0
        %v991 = vmax.f32 %v907, 0.0
        %v992 = vmax.f32 %v910, 0.0
        %v993 = vmax.f32 %v915, 0.0
        %v994 = vmax.f32 %v918, 0.0
        %v995 = vmax.f32 %v923, 0.0
        %v996 = vmax.f32 %v926, 0.0
        %v997 = vmax.f32 %v931, 0.0
        %v998 = vmax.f32 %v934, 0.0
        %v999 = vmax.f32 %v939, 0.0
        %v1000 = vmax.f32 %v942, 0.0
        %v1001 = vmax.f32 %v947, 0.0
        %v1002 = vmax.f32 %v950, 0.0
        %v1003 = vmax.f32 %v955, 0.0
        %v1004 = vmax.f32 %v958, 0.0
        %v1005 = vmax.f32 %v963, 0.0
        %v1006 = vmax.f32 %v966, 0.0
        %v1007 = vmax.f32 %v971, 0.0
        %v1008 = vmax.f32 %v974, 0.0
        %v1009 = vld [vmem:[%s3] sm:$0xf]
        %v1010 = vld [vmem:[%s3 + $0x4] sm:$0xf]
        %v1011 = vld [vmem:[%s3 + $0x8] sm:$0xf]
        %v1012 = vld [vmem:[%s3 + $0xc] sm:$0xf]
        %v1013 = vld [vmem:[%s4] sm:$0x1]
        %v1014 = vpack.c.bf16 %v978, %v977
        %v1015 = vpack.c.bf16 %v980, %v979
        %v1016 = vpack.c.bf16 %v982, %v981
        %v1017 = vpack.c.bf16 %v984, %v983
        %v1018 = vpack.c.bf16 %v986, %v985
        %v1019 = vpack.c.bf16 %v988, %v987
        %v1020 = vpack.c.bf16 %v990, %v989
        %v1021 = vpack.c.bf16 %v992, %v991
        %v1022 = vpack.c.bf16 %v994, %v993
        %v1023 = vpack.c.bf16 %v996, %v995
        %v1024 = vpack.c.bf16 %v998, %v997
        %v1025 = vpack.c.bf16 %v1000, %v999
        %v1026 = vpack.c.bf16 %v1002, %v1001
        %v1027 = vpack.c.bf16 %v1004, %v1003
        %v1028 = vpack.c.bf16 %v1006, %v1005
        %v1029 = vpack.c.bf16 %v1008, %v1007
        %v1031 = vlaneseq
        %v1032 = vshrl.u32 %v1031, 7
        %v1033 = vsub.s32 0, %v1032
        %v1034 = vrot.slane %v1013, %v1033
        %v1040 = vunpack.c.l.b16 %v1009
        %v1041 = vunpack.c.l.b16 %v1010
        %v1042 = vunpack.c.l.b16 %v1011
        %v1043 = vunpack.c.l.b16 %v1012
        %v1044 = vpack.c.b16 %v1041, %v1040
        %v1045 = vpack.c.b16 %v1043, %v1042
        %vm1048 = vcmask 261120
        %v1050 = vsel %vm1048, %v1014, 0
        %v1053 = vsel %vm1048, %v1015, 0
        %v1056 = vsel %vm1048, %v1016, 0
        %v1059 = vsel %vm1048, %v1017, 0
        %v1062 = vsel %vm1048, %v1018, 0
        %v1065 = vsel %vm1048, %v1019, 0
        %v1068 = vsel %vm1048, %v1020, 0
        %v1071 = vsel %vm1048, %v1021, 0
        %v1074 = vsel %vm1048, %v1022, 0
        %v1077 = vsel %vm1048, %v1023, 0
        %v1080 = vsel %vm1048, %v1024, 0
        %v1083 = vsel %vm1048, %v1025, 0
        %v1086 = vsel %vm1048, %v1026, 0
        %v1089 = vsel %vm1048, %v1027, 0
        %v1092 = vsel %vm1048, %v1028, 0
        %v1095 = vsel %vm1048, %v1029, 0
        %1097 = vmatprep.subr.bf16.mxu0 0
        %1098 = vmatpush1.bf16.msra.mxu0 %v1044
        %1099 = vmatprep.subr.bf16.mxu0 0
        %1100 = vmatpush1.bf16.msra.mxu0 %v1045
        %1101 = vmatprep.subr.bf16.mxu0 0
        %1102 = vmatpush1.bf16.msra.mxu0 0
        %1103 = vmatprep.subr.bf16.mxu0 0
        %1104 = vmatpush1.bf16.msra.mxu0 0
        %1105 = vmatprep.subr.bf16.mxu0 0
        %1106 = vmatpush1.bf16.msra.mxu0 0
        %1107 = vmatprep.subr.bf16.mxu0 0
        %1108 = vmatpush1.bf16.msra.mxu0 0
        %1109 = vmatprep.subr.bf16.mxu0 0
        %1110 = vmatpush1.bf16.msra.mxu0 0
        %1111 = vmatprep.subr.bf16.mxu0 0
        %1112 = vmatpush1.bf16.msra.mxu0 0
        %1113 = vmatprep.subr.bf16.mxu0 0
        %1114 = vmatpush1.bf16.msra.mxu0 0
        %1115 = vmatprep.subr.bf16.mxu0 0
        %1116 = vmatpush1.bf16.msra.mxu0 0
        %1117 = vmatprep.subr.bf16.mxu0 0
        %1118 = vmatpush1.bf16.msra.mxu0 0
        %1119 = vmatprep.subr.bf16.mxu0 0
        %1120 = vmatpush1.bf16.msra.mxu0 0
        %1121 = vmatprep.subr.bf16.mxu0 0
        %1122 = vmatpush1.bf16.msra.mxu0 0
        %1123 = vmatprep.subr.bf16.mxu0 0
        %1124 = vmatpush1.bf16.msra.mxu0 0
        %1125 = vmatprep.subr.bf16.mxu0 0
        %1126 = vmatpush1.bf16.msra.mxu0 0
        %1127 = vmatprep.subr.bf16.mxu0 0
        %1128 = vmatpush1.bf16.msra.mxu0 0
        %1129 = vmatprep.mubr.bf16.mxu0 0
        %1130 = vmatmul.mubr.bf16.gmra.mrb[0].mxu0 %v1050
        %v1131 = vpop.f32.mrb[0].mxu0
        %v1132 = vadd.f32 %v1034, %v1131
        %v1133 = vpop.f32.mrb[0].mxu0
        %v1134 = vpop.f32.mrb[0].mxu0
        %v1135 = vadd.f32 %v1034, %v1134
        %v1136 = vpop.f32.mrb[0].mxu0
        %1137 = vmatprep.mubr.bf16.mxu0 0
        %1138 = vmatmul.mubr.bf16.gmra.mrb[0].mxu0 %v1053
        %v1139 = vpop.f32.mrb[0].mxu0
        %v1140 = vadd.f32 %v1034, %v1139
        %v1141 = vpop.f32.mrb[0].mxu0
        %v1142 = vpop.f32.mrb[0].mxu0
        %v1143 = vadd.f32 %v1034, %v1142
        %v1144 = vpop.f32.mrb[0].mxu0
        %1145 = vmatprep.mubr.bf16.mxu0 0
        %1146 = vmatmul.mubr.bf16.gmra.mrb[0].mxu0 %v1056
        %v1147 = vpop.f32.mrb[0].mxu0
        %v1148 = vadd.f32 %v1034, %v1147
        %v1149 = vpop.f32.mrb[0].mxu0
        %v1150 = vpop.f32.mrb[0].mxu0
        %v1151 = vadd.f32 %v1034, %v1150
        %v1152 = vpop.f32.mrb[0].mxu0
        %1153 = vmatprep.mubr.bf16.mxu0 0
        %1154 = vmatmul.mubr.bf16.gmra.mrb[0].mxu0 %v1059
        %v1155 = vpop.f32.mrb[0].mxu0
        %v1156 = vadd.f32 %v1034, %v1155
        %v1157 = vpop.f32.mrb[0].mxu0
        %v1158 = vpop.f32.mrb[0].mxu0
        %v1159 = vadd.f32 %v1034, %v1158
        %v1160 = vpop.f32.mrb[0].mxu0
        %1161 = vmatprep.mubr.bf16.mxu0 0
        %1162 = vmatmul.mubr.bf16.gmra.mrb[0].mxu0 %v1062
        %v1163 = vpop.f32.mrb[0].mxu0
        %v1164 = vadd.f32 %v1034, %v1163
        %v1165 = vpop.f32.mrb[0].mxu0
        %v1166 = vpop.f32.mrb[0].mxu0
        %v1167 = vadd.f32 %v1034, %v1166
        %v1168 = vpop.f32.mrb[0].mxu0
        %1169 = vmatprep.mubr.bf16.mxu0 0
        %1170 = vmatmul.mubr.bf16.gmra.mrb[0].mxu0 %v1065
        %v1171 = vpop.f32.mrb[0].mxu0
        %v1172 = vadd.f32 %v1034, %v1171
        %v1173 = vpop.f32.mrb[0].mxu0
        %v1174 = vpop.f32.mrb[0].mxu0
        %v1175 = vadd.f32 %v1034, %v1174
        %v1176 = vpop.f32.mrb[0].mxu0
        %1177 = vmatprep.mubr.bf16.mxu0 0
        %1178 = vmatmul.mubr.bf16.gmra.mrb[0].mxu0 %v1068
        %v1179 = vpop.f32.mrb[0].mxu0
        %v1180 = vadd.f32 %v1034, %v1179
        %v1181 = vpop.f32.mrb[0].mxu0
        %v1182 = vpop.f32.mrb[0].mxu0
        %v1183 = vadd.f32 %v1034, %v1182
        %v1184 = vpop.f32.mrb[0].mxu0
        %1185 = vmatprep.mubr.bf16.mxu0 0
        %1186 = vmatmul.mubr.bf16.gmra.mrb[0].mxu0 %v1071
        %v1187 = vpop.f32.mrb[0].mxu0
        %v1188 = vadd.f32 %v1034, %v1187
        %v1189 = vpop.f32.mrb[0].mxu0
        %v1190 = vpop.f32.mrb[0].mxu0
        %v1191 = vadd.f32 %v1034, %v1190
        %v1192 = vpop.f32.mrb[0].mxu0
        %1193 = vmatprep.mubr.bf16.mxu0 0
        %1194 = vmatmul.mubr.bf16.gmra.mrb[0].mxu0 %v1074
        %v1195 = vpop.f32.mrb[0].mxu0
        %v1196 = vadd.f32 %v1034, %v1195
        %v1197 = vpop.f32.mrb[0].mxu0
        %v1198 = vpop.f32.mrb[0].mxu0
        %v1199 = vadd.f32 %v1034, %v1198
        %v1200 = vpop.f32.mrb[0].mxu0
        %1201 = vmatprep.mubr.bf16.mxu0 0
        %1202 = vmatmul.mubr.bf16.gmra.mrb[0].mxu0 %v1077
        %v1203 = vpop.f32.mrb[0].mxu0
        %v1204 = vadd.f32 %v1034, %v1203
        %v1205 = vpop.f32.mrb[0].mxu0
        %v1206 = vpop.f32.mrb[0].mxu0
        %v1207 = vadd.f32 %v1034, %v1206
        %v1208 = vpop.f32.mrb[0].mxu0
        %1209 = vmatprep.mubr.bf16.mxu0 0
        %1210 = vmatmul.mubr.bf16.gmra.mrb[0].mxu0 %v1080
        %v1211 = vpop.f32.mrb[0].mxu0
        %v1212 = vadd.f32 %v1034, %v1211
        %v1213 = vpop.f32.mrb[0].mxu0
        %v1214 = vpop.f32.mrb[0].mxu0
        %v1215 = vadd.f32 %v1034, %v1214
        %v1216 = vpop.f32.mrb[0].mxu0
        %1217 = vmatprep.mubr.bf16.mxu0 0
        %1218 = vmatmul.mubr.bf16.gmra.mrb[0].mxu0 %v1083
        %v1219 = vpop.f32.mrb[0].mxu0
        %v1220 = vadd.f32 %v1034, %v1219
        %v1221 = vpop.f32.mrb[0].mxu0
        %v1222 = vpop.f32.mrb[0].mxu0
        %v1223 = vadd.f32 %v1034, %v1222
        %v1224 = vpop.f32.mrb[0].mxu0
        %1225 = vmatprep.mubr.bf16.mxu0 0
        %1226 = vmatmul.mubr.bf16.gmra.mrb[0].mxu0 %v1086
        %v1227 = vpop.f32.mrb[0].mxu0
        %v1228 = vadd.f32 %v1034, %v1227
        %v1229 = vpop.f32.mrb[0].mxu0
        %v1230 = vpop.f32.mrb[0].mxu0
        %v1231 = vadd.f32 %v1034, %v1230
        %v1232 = vpop.f32.mrb[0].mxu0
        %1233 = vmatprep.mubr.bf16.mxu0 0
        %1234 = vmatmul.mubr.bf16.gmra.mrb[0].mxu0 %v1089
        %v1235 = vpop.f32.mrb[0].mxu0
        %v1236 = vadd.f32 %v1034, %v1235
        %v1237 = vpop.f32.mrb[0].mxu0
        %v1238 = vpop.f32.mrb[0].mxu0
        %v1239 = vadd.f32 %v1034, %v1238
        %v1240 = vpop.f32.mrb[0].mxu0
        %1241 = vmatprep.mubr.bf16.mxu0 0
        %1242 = vmatmul.mubr.bf16.gmra.mrb[0].mxu0 %v1092
        %v1243 = vpop.f32.mrb[0].mxu0
        %v1244 = vadd.f32 %v1034, %v1243
        %v1245 = vpop.f32.mrb[0].mxu0
        %v1246 = vpop.f32.mrb[0].mxu0
        %v1247 = vadd.f32 %v1034, %v1246
        %v1248 = vpop.f32.mrb[0].mxu0
        %1249 = vmatprep.mubr.bf16.mxu0 0
        %1250 = vmatmul.mubr.bf16.gmra.mrb[0].mxu0 %v1095
        %v1251 = vpop.f32.mrb[0].mxu0
        %v1252 = vadd.f32 %v1034, %v1251
        %v1253 = vpop.f32.mrb[0].mxu0
        %v1254 = vpop.f32.mrb[0].mxu0
        %v1255 = vadd.f32 %v1034, %v1254
        %v1256 = vpop.f32.mrb[0].mxu0
        %1257 = vdwg.mxu0
        %v1258 = vmax.f32 %v1132, 0.0
        %v1259 = vmax.f32 %v1135, 0.0
        %v1260 = vmax.f32 %v1140, 0.0
        %v1261 = vmax.f32 %v1143, 0.0
        %v1262 = vmax.f32 %v1148, 0.0
        %v1263 = vmax.f32 %v1151, 0.0
        %v1264 = vmax.f32 %v1156, 0.0
        %v1265 = vmax.f32 %v1159, 0.0
        %v1266 = vmax.f32 %v1164, 0.0
        %v1267 = vmax.f32 %v1167, 0.0
        %v1268 = vmax.f32 %v1172, 0.0
        %v1269 = vmax.f32 %v1175, 0.0
        %v1270 = vmax.f32 %v1180, 0.0
        %v1271 = vmax.f32 %v1183, 0.0
        %v1272 = vmax.f32 %v1188, 0.0
        %v1273 = vmax.f32 %v1191, 0.0
        %v1274 = vmax.f32 %v1196, 0.0
        %v1275 = vmax.f32 %v1199, 0.0
        %v1276 = vmax.f32 %v1204, 0.0
        %v1277 = vmax.f32 %v1207, 0.0
        %v1278 = vmax.f32 %v1212, 0.0
        %v1279 = vmax.f32 %v1215, 0.0
        %v1280 = vmax.f32 %v1220, 0.0
        %v1281 = vmax.f32 %v1223, 0.0
        %v1282 = vmax.f32 %v1228, 0.0
        %v1283 = vmax.f32 %v1231, 0.0
        %v1284 = vmax.f32 %v1236, 0.0
        %v1285 = vmax.f32 %v1239, 0.0
        %v1286 = vmax.f32 %v1244, 0.0
        %v1287 = vmax.f32 %v1247, 0.0
        %v1288 = vmax.f32 %v1252, 0.0
        %v1289 = vmax.f32 %v1255, 0.0
        %v1290 = vld [vmem:[%s5] sm:$0xf]
        %v1291 = vld [vmem:[%s5 + $0x4] sm:$0xf]
        %v1292 = vld [vmem:[%s5 + $0x8] sm:$0xf]
        %v1293 = vld [vmem:[%s5 + $0xc] sm:$0xf]
        %v1294 = vld [vmem:[%s5 + $0x10] sm:$0xf]
        %v1295 = vld [vmem:[%s5 + $0x14] sm:$0xf]
        %v1296 = vld [vmem:[%s5 + $0x18] sm:$0xf]
        %v1297 = vld [vmem:[%s5 + $0x1c] sm:$0xf]
        %v1298 = vld [vmem:[%s6] sm:$0x1]
        %v1299 = vpack.c.bf16 %v1259, %v1258
        %v1300 = vpack.c.bf16 %v1261, %v1260
        %v1301 = vpack.c.bf16 %v1263, %v1262
        %v1302 = vpack.c.bf16 %v1265, %v1264
        %v1303 = vpack.c.bf16 %v1267, %v1266
        %v1304 = vpack.c.bf16 %v1269, %v1268
        %v1305 = vpack.c.bf16 %v1271, %v1270
        %v1306 = vpack.c.bf16 %v1273, %v1272
        %v1307 = vpack.c.bf16 %v1275, %v1274
        %v1308 = vpack.c.bf16 %v1277, %v1276
        %v1309 = vpack.c.bf16 %v1279, %v1278
        %v1310 = vpack.c.bf16 %v1281, %v1280
        %v1311 = vpack.c.bf16 %v1283, %v1282
        %v1312 = vpack.c.bf16 %v1285, %v1284
        %v1313 = vpack.c.bf16 %v1287, %v1286
        %v1314 = vpack.c.bf16 %v1289, %v1288
        %v1316 = vlaneseq
        %v1317 = vshrl.u32 %v1316, 7
        %v1318 = vsub.s32 0, %v1317
        %v1319 = vrot.slane %v1298, %v1318
        %v1329 = vunpack.c.l.b16 %v1290
        %v1330 = vunpack.c.l.b16 %v1291
        %v1331 = vunpack.c.l.b16 %v1292
        %v1332 = vunpack.c.l.b16 %v1293
        %v1333 = vunpack.c.l.b16 %v1294
        %v1334 = vunpack.c.l.b16 %v1295
        %v1335 = vunpack.c.l.b16 %v1296
        %v1336 = vunpack.c.l.b16 %v1297
        %v1337 = vpack.c.b16 %v1330, %v1329
        %v1338 = vpack.c.b16 %v1332, %v1331
        %v1339 = vpack.c.b16 %v1334, %v1333
        %v1340 = vpack.c.b16 %v1336, %v1335
        %vm1345 = vcmask 523264
        %v1347 = vsel %vm1345, %v1299, 0
        %v1350 = vsel %vm1345, %v1300, 0
        %v1353 = vsel %vm1345, %v1301, 0
        %v1356 = vsel %vm1345, %v1302, 0
        %v1359 = vsel %vm1345, %v1303, 0
        %v1362 = vsel %vm1345, %v1304, 0
        %v1365 = vsel %vm1345, %v1305, 0
        %v1368 = vsel %vm1345, %v1306, 0
        %v1371 = vsel %vm1345, %v1307, 0
        %v1374 = vsel %vm1345, %v1308, 0
        %v1377 = vsel %vm1345, %v1309, 0
        %v1380 = vsel %vm1345, %v1310, 0
        %v1383 = vsel %vm1345, %v1311, 0
        %v1386 = vsel %vm1345, %v1312, 0
        %v1389 = vsel %vm1345, %v1313, 0
        %v1392 = vsel %vm1345, %v1314, 0
        %1394 = vmatprep.subr.bf16.mxu0 0
        %1395 = vmatpush1.bf16.msra.mxu0 %v1337
        %1396 = vmatprep.subr.bf16.mxu0 0
        %1397 = vmatpush1.bf16.msra.mxu0 %v1338
        %1398 = vmatprep.subr.bf16.mxu0 0
        %1399 = vmatpush1.bf16.msra.mxu0 %v1339
        %1400 = vmatprep.subr.bf16.mxu0 0
        %1401 = vmatpush1.bf16.msra.mxu0 %v1340
        %1402 = vmatprep.subr.bf16.mxu0 0
        %1403 = vmatpush1.bf16.msra.mxu0 0
        %1404 = vmatprep.subr.bf16.mxu0 0
        %1405 = vmatpush1.bf16.msra.mxu0 0
        %1406 = vmatprep.subr.bf16.mxu0 0
        %1407 = vmatpush1.bf16.msra.mxu0 0
        %1408 = vmatprep.subr.bf16.mxu0 0
        %1409 = vmatpush1.bf16.msra.mxu0 0
        %1410 = vmatprep.subr.bf16.mxu0 0
        %1411 = vmatpush1.bf16.msra.mxu0 0
        %1412 = vmatprep.subr.bf16.mxu0 0
        %1413 = vmatpush1.bf16.msra.mxu0 0
        %1414 = vmatprep.subr.bf16.mxu0 0
        %1415 = vmatpush1.bf16.msra.mxu0 0
        %1416 = vmatprep.subr.bf16.mxu0 0
        %1417 = vmatpush1.bf16.msra.mxu0 0
        %1418 = vmatprep.subr.bf16.mxu0 0
        %1419 = vmatpush1.bf16.msra.mxu0 0
        %1420 = vmatprep.subr.bf16.mxu0 0
        %1421 = vmatpush1.bf16.msra.mxu0 0
        %1422 = vmatprep.subr.bf16.mxu0 0
        %1423 = vmatpush1.bf16.msra.mxu0 0
        %1424 = vmatprep.subr.bf16.mxu0 0
        %1425 = vmatpush1.bf16.msra.mxu0 0
        %1426 = vmatprep.mubr.bf16.mxu0 0
        %1427 = vmatmul.mubr.bf16.gmra.mrb[0].mxu0 %v1347
        %v1428 = vpop.f32.mrb[0].mxu0
        %v1429 = vadd.f32 %v1319, %v1428
        %v1430 = vpop.f32.mrb[0].mxu0
        %v1431 = vpop.f32.mrb[0].mxu0
        %v1432 = vadd.f32 %v1319, %v1431
        %v1433 = vpop.f32.mrb[0].mxu0
        %1434 = vmatprep.mubr.bf16.mxu0 0
        %1435 = vmatmul.mubr.bf16.gmra.mrb[0].mxu0 %v1350
        %v1436 = vpop.f32.mrb[0].mxu0
        %v1437 = vadd.f32 %v1319, %v1436
        %v1438 = vpop.f32.mrb[0].mxu0
        %v1439 = vpop.f32.mrb[0].mxu0
        %v1440 = vadd.f32 %v1319, %v1439
        %v1441 = vpop.f32.mrb[0].mxu0
        %1442 = vmatprep.mubr.bf16.mxu0 0
        %1443 = vmatmul.mubr.bf16.gmra.mrb[0].mxu0 %v1353
        %v1444 = vpop.f32.mrb[0].mxu0
        %v1445 = vadd.f32 %v1319, %v1444
        %v1446 = vpop.f32.mrb[0].mxu0
        %v1447 = vpop.f32.mrb[0].mxu0
        %v1448 = vadd.f32 %v1319, %v1447
        %v1449 = vpop.f32.mrb[0].mxu0
        %1450 = vmatprep.mubr.bf16.mxu0 0
        %1451 = vmatmul.mubr.bf16.gmra.mrb[0].mxu0 %v1356
        %v1452 = vpop.f32.mrb[0].mxu0
        %v1453 = vadd.f32 %v1319, %v1452
        %v1454 = vpop.f32.mrb[0].mxu0
        %v1455 = vpop.f32.mrb[0].mxu0
        %v1456 = vadd.f32 %v1319, %v1455
        %v1457 = vpop.f32.mrb[0].mxu0
        %1458 = vmatprep.mubr.bf16.mxu0 0
        %1459 = vmatmul.mubr.bf16.gmra.mrb[0].mxu0 %v1359
        %v1460 = vpop.f32.mrb[0].mxu0
        %v1461 = vadd.f32 %v1319, %v1460
        %v1462 = vpop.f32.mrb[0].mxu0
        %v1463 = vpop.f32.mrb[0].mxu0
        %v1464 = vadd.f32 %v1319, %v1463
        %v1465 = vpop.f32.mrb[0].mxu0
        %1466 = vmatprep.mubr.bf16.mxu0 0
        %1467 = vmatmul.mubr.bf16.gmra.mrb[0].mxu0 %v1362
        %v1468 = vpop.f32.mrb[0].mxu0
        %v1469 = vadd.f32 %v1319, %v1468
        %v1470 = vpop.f32.mrb[0].mxu0
        %v1471 = vpop.f32.mrb[0].mxu0
        %v1472 = vadd.f32 %v1319, %v1471
        %v1473 = vpop.f32.mrb[0].mxu0
        %1474 = vmatprep.mubr.bf16.mxu0 0
        %1475 = vmatmul.mubr.bf16.gmra.mrb[0].mxu0 %v1365
        %v1476 = vpop.f32.mrb[0].mxu0
        %v1477 = vadd.f32 %v1319, %v1476
        %v1478 = vpop.f32.mrb[0].mxu0
        %v1479 = vpop.f32.mrb[0].mxu0
        %v1480 = vadd.f32 %v1319, %v1479
        %v1481 = vpop.f32.mrb[0].mxu0
        %1482 = vmatprep.mubr.bf16.mxu0 0
        %1483 = vmatmul.mubr.bf16.gmra.mrb[0].mxu0 %v1368
        %v1484 = vpop.f32.mrb[0].mxu0
        %v1485 = vadd.f32 %v1319, %v1484
        %v1486 = vpop.f32.mrb[0].mxu0
        %v1487 = vpop.f32.mrb[0].mxu0
        %v1488 = vadd.f32 %v1319, %v1487
        %v1489 = vpop.f32.mrb[0].mxu0
        %1490 = vmatprep.mubr.bf16.mxu0 0
        %1491 = vmatmul.mubr.bf16.gmra.mrb[0].mxu0 %v1371
        %v1492 = vpop.f32.mrb[0].mxu0
        %v1493 = vadd.f32 %v1319, %v1492
        %v1494 = vpop.f32.mrb[0].mxu0
        %v1495 = vpop.f32.mrb[0].mxu0
        %v1496 = vadd.f32 %v1319, %v1495
        %v1497 = vpop.f32.mrb[0].mxu0
        %1498 = vmatprep.mubr.bf16.mxu0 0
        %1499 = vmatmul.mubr.bf16.gmra.mrb[0].mxu0 %v1374
        %v1500 = vpop.f32.mrb[0].mxu0
        %v1501 = vadd.f32 %v1319, %v1500
        %v1502 = vpop.f32.mrb[0].mxu0
        %v1503 = vpop.f32.mrb[0].mxu0
        %v1504 = vadd.f32 %v1319, %v1503
        %v1505 = vpop.f32.mrb[0].mxu0
        %1506 = vmatprep.mubr.bf16.mxu0 0
        %1507 = vmatmul.mubr.bf16.gmra.mrb[0].mxu0 %v1377
        %v1508 = vpop.f32.mrb[0].mxu0
        %v1509 = vadd.f32 %v1319, %v1508
        %v1510 = vpop.f32.mrb[0].mxu0
        %v1511 = vpop.f32.mrb[0].mxu0
        %v1512 = vadd.f32 %v1319, %v1511
        %v1513 = vpop.f32.mrb[0].mxu0
        %1514 = vmatprep.mubr.bf16.mxu0 0
        %1515 = vmatmul.mubr.bf16.gmra.mrb[0].mxu0 %v1380
        %v1516 = vpop.f32.mrb[0].mxu0
        %v1517 = vadd.f32 %v1319, %v1516
        %v1518 = vpop.f32.mrb[0].mxu0
        %v1519 = vpop.f32.mrb[0].mxu0
        %v1520 = vadd.f32 %v1319, %v1519
        %v1521 = vpop.f32.mrb[0].mxu0
        %1522 = vmatprep.mubr.bf16.mxu0 0
        %1523 = vmatmul.mubr.bf16.gmra.mrb[0].mxu0 %v1383
        %v1524 = vpop.f32.mrb[0].mxu0
        %v1525 = vadd.f32 %v1319, %v1524
        %v1526 = vpop.f32.mrb[0].mxu0
        %v1527 = vpop.f32.mrb[0].mxu0
        %v1528 = vadd.f32 %v1319, %v1527
        %v1529 = vpop.f32.mrb[0].mxu0
        %1530 = vmatprep.mubr.bf16.mxu0 0
        %1531 = vmatmul.mubr.bf16.gmra.mrb[0].mxu0 %v1386
        %v1532 = vpop.f32.mrb[0].mxu0
        %v1533 = vadd.f32 %v1319, %v1532
        %v1534 = vpop.f32.mrb[0].mxu0
        %v1535 = vpop.f32.mrb[0].mxu0
        %v1536 = vadd.f32 %v1319, %v1535
        %v1537 = vpop.f32.mrb[0].mxu0
        %1538 = vmatprep.mubr.bf16.mxu0 0
        %1539 = vmatmul.mubr.bf16.gmra.mrb[0].mxu0 %v1389
        %v1540 = vpop.f32.mrb[0].mxu0
        %v1541 = vadd.f32 %v1319, %v1540
        %v1542 = vpop.f32.mrb[0].mxu0
        %v1543 = vpop.f32.mrb[0].mxu0
        %v1544 = vadd.f32 %v1319, %v1543
        %v1545 = vpop.f32.mrb[0].mxu0
        %1546 = vmatprep.mubr.bf16.mxu0 0
        %1547 = vmatmul.mubr.bf16.gmra.mrb[0].mxu0 %v1392
        %v1548 = vpop.f32.mrb[0].mxu0
        %v1549 = vadd.f32 %v1319, %v1548
        %v1550 = vpop.f32.mrb[0].mxu0
        %v1551 = vpop.f32.mrb[0].mxu0
        %v1552 = vadd.f32 %v1319, %v1551
        %v1553 = vpop.f32.mrb[0].mxu0
        %1554 = vdwg.mxu0
        %v1555 = vmax.f32 %v1429, 0.0
        %v1556 = vmax.f32 %v1432, 0.0
        %v1557 = vmax.f32 %v1437, 0.0
        %v1558 = vmax.f32 %v1440, 0.0
        %v1559 = vmax.f32 %v1445, 0.0
        %v1560 = vmax.f32 %v1448, 0.0
        %v1561 = vmax.f32 %v1453, 0.0
        %v1562 = vmax.f32 %v1456, 0.0
        %v1563 = vmax.f32 %v1461, 0.0
        %v1564 = vmax.f32 %v1464, 0.0
        %v1565 = vmax.f32 %v1469, 0.0
        %v1566 = vmax.f32 %v1472, 0.0
        %v1567 = vmax.f32 %v1477, 0.0
        %v1568 = vmax.f32 %v1480, 0.0
        %v1569 = vmax.f32 %v1485, 0.0
        %v1570 = vmax.f32 %v1488, 0.0
        %v1571 = vmax.f32 %v1493, 0.0
        %v1572 = vmax.f32 %v1496, 0.0
        %v1573 = vmax.f32 %v1501, 0.0
        %v1574 = vmax.f32 %v1504, 0.0
        %v1575 = vmax.f32 %v1509, 0.0
        %v1576 = vmax.f32 %v1512, 0.0
        %v1577 = vmax.f32 %v1517, 0.0
        %v1578 = vmax.f32 %v1520, 0.0
        %v1579 = vmax.f32 %v1525, 0.0
        %v1580 = vmax.f32 %v1528, 0.0
        %v1581 = vmax.f32 %v1533, 0.0
        %v1582 = vmax.f32 %v1536, 0.0
        %v1583 = vmax.f32 %v1541, 0.0
        %v1584 = vmax.f32 %v1544, 0.0
        %v1585 = vmax.f32 %v1549, 0.0
        %v1586 = vmax.f32 %v1552, 0.0
        %v1587 = vld [vmem:[#allocation3] sm:$0xff]
        %v1588 = vld [vmem:[#allocation3 + $0x8] sm:$0xff]
        %v1589 = vld [vmem:[#allocation3 + $0x10] sm:$0xff]
        %v1590 = vld [vmem:[#allocation3 + $0x18] sm:$0xff]
        %v1591 = vld [vmem:[#allocation3 + $0x20] sm:$0xff]
        %v1592 = vld [vmem:[#allocation3 + $0x28] sm:$0xff]
        %v1593 = vld [vmem:[#allocation3 + $0x30] sm:$0xff]
        %v1594 = vld [vmem:[#allocation3 + $0x38] sm:$0xff]
        %v1595 = vld [vmem:[#allocation3 + $0x40] sm:$0xff]
        %v1596 = vld [vmem:[#allocation3 + $0x48] sm:$0xff]
        %v1597 = vld [vmem:[#allocation3 + $0x50] sm:$0xff]
        %v1598 = vld [vmem:[#allocation3 + $0x58] sm:$0xff]
        %v1599 = vld [vmem:[#allocation3 + $0x60] sm:$0xff]
        %v1600 = vld [vmem:[#allocation3 + $0x68] sm:$0xff]
        %v1601 = vld [vmem:[#allocation3 + $0x70] sm:$0xff]
        %v1602 = vld [vmem:[#allocation3 + $0x78] sm:$0xff]
        %v1603 = vld [vmem:[%s8] sm:$0x3]
        %v1604 = vpack.c.bf16 %v1556, %v1555
        %v1605 = vpack.c.bf16 %v1558, %v1557
        %v1606 = vpack.c.bf16 %v1560, %v1559
        %v1607 = vpack.c.bf16 %v1562, %v1561
        %v1608 = vpack.c.bf16 %v1564, %v1563
        %v1609 = vpack.c.bf16 %v1566, %v1565
        %v1610 = vpack.c.bf16 %v1568, %v1567
        %v1611 = vpack.c.bf16 %v1570, %v1569
        %v1612 = vpack.c.bf16 %v1572, %v1571
        %v1613 = vpack.c.bf16 %v1574, %v1573
        %v1614 = vpack.c.bf16 %v1576, %v1575
        %v1615 = vpack.c.bf16 %v1578, %v1577
        %v1616 = vpack.c.bf16 %v1580, %v1579
        %v1617 = vpack.c.bf16 %v1582, %v1581
        %v1618 = vpack.c.bf16 %v1584, %v1583
        %v1619 = vpack.c.bf16 %v1586, %v1585
        %v1621 = vlaneseq
        %v1622 = vshrl.u32 %v1621, 7
        %v1623 = vsub.s32 0, %v1622
        %v1624 = vrot.slane %v1603, %v1623
        %v1625 = vlaneseq
        %v1626 = vshrl.u32 %v1625, 7
        %v1627 = vsub.s32 1, %v1626
        %v1628 = vrot.slane %v1603, %v1627
        %v1647 = vunpack.c.l.b16 %v1587
        %v1648 = vunpack.c.h.b16 %v1587
        %v1649 = vunpack.c.l.b16 %v1588
        %v1650 = vunpack.c.h.b16 %v1588
        %v1651 = vunpack.c.l.b16 %v1589
        %v1652 = vunpack.c.h.b16 %v1589
        %v1653 = vunpack.c.l.b16 %v1590
        %v1654 = vunpack.c.h.b16 %v1590
        %v1655 = vunpack.c.l.b16 %v1591
        %v1656 = vunpack.c.h.b16 %v1591
        %v1657 = vunpack.c.l.b16 %v1592
        %v1658 = vunpack.c.h.b16 %v1592
        %v1659 = vunpack.c.l.b16 %v1593
        %v1660 = vunpack.c.h.b16 %v1593
        %v1661 = vunpack.c.l.b16 %v1594
        %v1662 = vunpack.c.h.b16 %v1594
        %v1663 = vunpack.c.l.b16 %v1595
        %v1664 = vunpack.c.h.b16 %v1595
        %v1665 = vunpack.c.l.b16 %v1596
        %v1666 = vunpack.c.h.b16 %v1596
        %v1667 = vunpack.c.l.b16 %v1597
        %v1668 = vunpack.c.h.b16 %v1597
        %v1669 = vunpack.c.l.b16 %v1598
        %v1670 = vunpack.c.h.b16 %v1598
        %v1671 = vunpack.c.l.b16 %v1599
        %v1672 = vunpack.c.h.b16 %v1599
        %v1673 = vunpack.c.l.b16 %v1600
        %v1674 = vunpack.c.h.b16 %v1600
        %v1675 = vunpack.c.l.b16 %v1601
        %v1676 = vunpack.c.h.b16 %v1601
        %v1677 = vunpack.c.l.b16 %v1602
        %v1678 = vunpack.c.h.b16 %v1602
        %v1679 = vpack.c.b16 %v1649, %v1647
        %v1680 = vpack.c.b16 %v1650, %v1648
        %v1681 = vpack.c.b16 %v1653, %v1651
        %v1682 = vpack.c.b16 %v1654, %v1652
        %v1683 = vpack.c.b16 %v1657, %v1655
        %v1684 = vpack.c.b16 %v1658, %v1656
        %v1685 = vpack.c.b16 %v1661, %v1659
        %v1686 = vpack.c.b16 %v1662, %v1660
        %v1687 = vpack.c.b16 %v1665, %v1663
        %v1688 = vpack.c.b16 %v1666, %v1664
        %v1689 = vpack.c.b16 %v1669, %v1667
        %v1690 = vpack.c.b16 %v1670, %v1668
        %v1691 = vpack.c.b16 %v1673, %v1671
        %v1692 = vpack.c.b16 %v1674, %v1672
        %v1693 = vpack.c.b16 %v1677, %v1675
        %v1694 = vpack.c.b16 %v1678, %v1676
        %1711 = vmatprep.subr.bf16.mxu0 %v1680
        %1712 = vmatpush1.bf16.msra.mxu0 %v1679
        %1713 = vmatprep.subr.bf16.mxu0 %v1682
        %1714 = vmatpush1.bf16.msra.mxu0 %v1681
        %1715 = vmatprep.subr.bf16.mxu0 %v1684
        %1716 = vmatpush1.bf16.msra.mxu0 %v1683
        %1717 = vmatprep.subr.bf16.mxu0 %v1686
        %1718 = vmatpush1.bf16.msra.mxu0 %v1685
        %1719 = vmatprep.subr.bf16.mxu0 %v1688
        %1720 = vmatpush1.bf16.msra.mxu0 %v1687
        %1721 = vmatprep.subr.bf16.mxu0 %v1690
        %1722 = vmatpush1.bf16.msra.mxu0 %v1689
        %1723 = vmatprep.subr.bf16.mxu0 %v1692
        %1724 = vmatpush1.bf16.msra.mxu0 %v1691
        %1725 = vmatprep.subr.bf16.mxu0 %v1694
        %1726 = vmatpush1.bf16.msra.mxu0 %v1693
        %1727 = vmatprep.subr.bf16.mxu0 0
        %1728 = vmatpush1.bf16.msra.mxu0 0
        %1729 = vmatprep.subr.bf16.mxu0 0
        %1730 = vmatpush1.bf16.msra.mxu0 0
        %1731 = vmatprep.subr.bf16.mxu0 0
        %1732 = vmatpush1.bf16.msra.mxu0 0
        %1733 = vmatprep.subr.bf16.mxu0 0
        %1734 = vmatpush1.bf16.msra.mxu0 0
        %1735 = vmatprep.subr.bf16.mxu0 0
        %1736 = vmatpush1.bf16.msra.mxu0 0
        %1737 = vmatprep.subr.bf16.mxu0 0
        %1738 = vmatpush1.bf16.msra.mxu0 0
        %1739 = vmatprep.subr.bf16.mxu0 0
        %1740 = vmatpush1.bf16.msra.mxu0 0
        %1741 = vmatprep.subr.bf16.mxu0 0
        %1742 = vmatpush1.bf16.msra.mxu0 0
        %1743 = vmatprep.mubr.bf16.mxu0 0
        %1744 = vmatmul.mubr.bf16.gmra.mrb[0].mxu0 %v1604
        %v1745 = vpop.f32.mrb[0].mxu0
        %v1746 = vadd.f32 %v1624, %v1745
        %v1747 = vpop.f32.mrb[0].mxu0
        %v1748 = vadd.f32 %v1628, %v1747
        %v1749 = vpop.f32.mrb[0].mxu0
        %v1750 = vadd.f32 %v1624, %v1749
        %v1751 = vpop.f32.mrb[0].mxu0
        %v1752 = vadd.f32 %v1628, %v1751
        %1753 = vmatprep.mubr.bf16.mxu0 0
        %1754 = vmatmul.mubr.bf16.gmra.mrb[0].mxu0 %v1605
        %v1755 = vpop.f32.mrb[0].mxu0
        %v1756 = vadd.f32 %v1624, %v1755
        %v1757 = vpop.f32.mrb[0].mxu0
        %v1758 = vadd.f32 %v1628, %v1757
        %v1759 = vpop.f32.mrb[0].mxu0
        %v1760 = vadd.f32 %v1624, %v1759
        %v1761 = vpop.f32.mrb[0].mxu0
        %v1762 = vadd.f32 %v1628, %v1761
        %1763 = vmatprep.mubr.bf16.mxu0 0
        %1764 = vmatmul.mubr.bf16.gmra.mrb[0].mxu0 %v1606
        %v1765 = vpop.f32.mrb[0].mxu0
        %v1766 = vadd.f32 %v1624, %v1765
        %v1767 = vpop.f32.mrb[0].mxu0
        %v1768 = vadd.f32 %v1628, %v1767
        %v1769 = vpop.f32.mrb[0].mxu0
        %v1770 = vadd.f32 %v1624, %v1769
        %v1771 = vpop.f32.mrb[0].mxu0
        %v1772 = vadd.f32 %v1628, %v1771
        %1773 = vmatprep.mubr.bf16.mxu0 0
        %1774 = vmatmul.mubr.bf16.gmra.mrb[0].mxu0 %v1607
        %v1775 = vpop.f32.mrb[0].mxu0
        %v1776 = vadd.f32 %v1624, %v1775
        %v1777 = vpop.f32.mrb[0].mxu0
        %v1778 = vadd.f32 %v1628, %v1777
        %v1779 = vpop.f32.mrb[0].mxu0
        %v1780 = vadd.f32 %v1624, %v1779
        %v1781 = vpop.f32.mrb[0].mxu0
        %v1782 = vadd.f32 %v1628, %v1781
        %1783 = vmatprep.mubr.bf16.mxu0 0
        %1784 = vmatmul.mubr.bf16.gmra.mrb[0].mxu0 %v1608
        %v1785 = vpop.f32.mrb[0].mxu0
        %v1786 = vadd.f32 %v1624, %v1785
        %v1787 = vpop.f32.mrb[0].mxu0
        %v1788 = vadd.f32 %v1628, %v1787
        %v1789 = vpop.f32.mrb[0].mxu0
        %v1790 = vadd.f32 %v1624, %v1789
        %v1791 = vpop.f32.mrb[0].mxu0
        %v1792 = vadd.f32 %v1628, %v1791
        %1793 = vmatprep.mubr.bf16.mxu0 0
        %1794 = vmatmul.mubr.bf16.gmra.mrb[0].mxu0 %v1609
        %v1795 = vpop.f32.mrb[0].mxu0
        %v1796 = vadd.f32 %v1624, %v1795
        %v1797 = vpop.f32.mrb[0].mxu0
        %v1798 = vadd.f32 %v1628, %v1797
        %v1799 = vpop.f32.mrb[0].mxu0
        %v1800 = vadd.f32 %v1624, %v1799
        %v1801 = vpop.f32.mrb[0].mxu0
        %v1802 = vadd.f32 %v1628, %v1801
        %1803 = vmatprep.mubr.bf16.mxu0 0
        %1804 = vmatmul.mubr.bf16.gmra.mrb[0].mxu0 %v1610
        %v1805 = vpop.f32.mrb[0].mxu0
        %v1806 = vadd.f32 %v1624, %v1805
        %v1807 = vpop.f32.mrb[0].mxu0
        %v1808 = vadd.f32 %v1628, %v1807
        %v1809 = vpop.f32.mrb[0].mxu0
        %v1810 = vadd.f32 %v1624, %v1809
        %v1811 = vpop.f32.mrb[0].mxu0
        %v1812 = vadd.f32 %v1628, %v1811
        %1813 = vmatprep.mubr.bf16.mxu0 0
        %1814 = vmatmul.mubr.bf16.gmra.mrb[0].mxu0 %v1611
        %v1815 = vpop.f32.mrb[0].mxu0
        %v1816 = vadd.f32 %v1624, %v1815
        %v1817 = vpop.f32.mrb[0].mxu0
        %v1818 = vadd.f32 %v1628, %v1817
        %v1819 = vpop.f32.mrb[0].mxu0
        %v1820 = vadd.f32 %v1624, %v1819
        %v1821 = vpop.f32.mrb[0].mxu0
        %v1822 = vadd.f32 %v1628, %v1821
        %1823 = vmatprep.mubr.bf16.mxu0 0
        %1824 = vmatmul.mubr.bf16.gmra.mrb[0].mxu0 %v1612
        %v1825 = vpop.f32.mrb[0].mxu0
        %v1826 = vadd.f32 %v1624, %v1825
        %v1827 = vpop.f32.mrb[0].mxu0
        %v1828 = vadd.f32 %v1628, %v1827
        %v1829 = vpop.f32.mrb[0].mxu0
        %v1830 = vadd.f32 %v1624, %v1829
        %v1831 = vpop.f32.mrb[0].mxu0
        %v1832 = vadd.f32 %v1628, %v1831
        %1833 = vmatprep.mubr.bf16.mxu0 0
        %1834 = vmatmul.mubr.bf16.gmra.mrb[0].mxu0 %v1613
        %v1835 = vpop.f32.mrb[0].mxu0
        %v1836 = vadd.f32 %v1624, %v1835
        %v1837 = vpop.f32.mrb[0].mxu0
        %v1838 = vadd.f32 %v1628, %v1837
        %v1839 = vpop.f32.mrb[0].mxu0
        %v1840 = vadd.f32 %v1624, %v1839
        %v1841 = vpop.f32.mrb[0].mxu0
        %v1842 = vadd.f32 %v1628, %v1841
        %1843 = vmatprep.mubr.bf16.mxu0 0
        %1844 = vmatmul.mubr.bf16.gmra.mrb[0].mxu0 %v1614
        %v1845 = vpop.f32.mrb[0].mxu0
        %v1846 = vadd.f32 %v1624, %v1845
        %v1847 = vpop.f32.mrb[0].mxu0
        %v1848 = vadd.f32 %v1628, %v1847
        %v1849 = vpop.f32.mrb[0].mxu0
        %v1850 = vadd.f32 %v1624, %v1849
        %v1851 = vpop.f32.mrb[0].mxu0
        %v1852 = vadd.f32 %v1628, %v1851
        %1853 = vmatprep.mubr.bf16.mxu0 0
        %1854 = vmatmul.mubr.bf16.gmra.mrb[0].mxu0 %v1615
        %v1855 = vpop.f32.mrb[0].mxu0
        %v1856 = vadd.f32 %v1624, %v1855
        %v1857 = vpop.f32.mrb[0].mxu0
        %v1858 = vadd.f32 %v1628, %v1857
        %v1859 = vpop.f32.mrb[0].mxu0
        %v1860 = vadd.f32 %v1624, %v1859
        %v1861 = vpop.f32.mrb[0].mxu0
        %v1862 = vadd.f32 %v1628, %v1861
        %1863 = vmatprep.mubr.bf16.mxu0 0
        %1864 = vmatmul.mubr.bf16.gmra.mrb[0].mxu0 %v1616
        %v1865 = vpop.f32.mrb[0].mxu0
        %v1866 = vadd.f32 %v1624, %v1865
        %v1867 = vpop.f32.mrb[0].mxu0
        %v1868 = vadd.f32 %v1628, %v1867
        %v1869 = vpop.f32.mrb[0].mxu0
        %v1870 = vadd.f32 %v1624, %v1869
        %v1871 = vpop.f32.mrb[0].mxu0
        %v1872 = vadd.f32 %v1628, %v1871
        %1873 = vmatprep.mubr.bf16.mxu0 0
        %1874 = vmatmul.mubr.bf16.gmra.mrb[0].mxu0 %v1617
        %v1875 = vpop.f32.mrb[0].mxu0
        %v1876 = vadd.f32 %v1624, %v1875
        %v1877 = vpop.f32.mrb[0].mxu0
        %v1878 = vadd.f32 %v1628, %v1877
        %v1879 = vpop.f32.mrb[0].mxu0
        %v1880 = vadd.f32 %v1624, %v1879
        %v1881 = vpop.f32.mrb[0].mxu0
        %v1882 = vadd.f32 %v1628, %v1881
        %1883 = vmatprep.mubr.bf16.mxu0 0
        %1884 = vmatmul.mubr.bf16.gmra.mrb[0].mxu0 %v1618
        %v1885 = vpop.f32.mrb[0].mxu0
        %v1886 = vadd.f32 %v1624, %v1885
        %v1887 = vpop.f32.mrb[0].mxu0
        %v1888 = vadd.f32 %v1628, %v1887
        %v1889 = vpop.f32.mrb[0].mxu0
        %v1890 = vadd.f32 %v1624, %v1889
        %v1891 = vpop.f32.mrb[0].mxu0
        %v1892 = vadd.f32 %v1628, %v1891
        %1893 = vmatprep.mubr.bf16.mxu0 0
        %1894 = vmatmul.mubr.bf16.gmra.mrb[0].mxu0 %v1619
        %v1895 = vpop.f32.mrb[0].mxu0
        %v1896 = vadd.f32 %v1624, %v1895
        %v1897 = vpop.f32.mrb[0].mxu0
        %v1898 = vadd.f32 %v1628, %v1897
        %v1899 = vpop.f32.mrb[0].mxu0
        %v1900 = vadd.f32 %v1624, %v1899
        %v1901 = vpop.f32.mrb[0].mxu0
        %v1902 = vadd.f32 %v1628, %v1901
        %1903 = vdwg.mxu0
        %v1904 = vmax.f32 %v1746, 0.0
        %v1905 = vmax.f32 %v1748, 0.0
        %v1906 = vmax.f32 %v1750, 0.0
        %v1907 = vmax.f32 %v1752, 0.0
        %v1908 = vmax.f32 %v1756, 0.0
        %v1909 = vmax.f32 %v1758, 0.0
        %v1910 = vmax.f32 %v1760, 0.0
        %v1911 = vmax.f32 %v1762, 0.0
        %v1912 = vmax.f32 %v1766, 0.0
        %v1913 = vmax.f32 %v1768, 0.0
        %v1914 = vmax.f32 %v1770, 0.0
        %v1915 = vmax.f32 %v1772, 0.0
        %v1916 = vmax.f32 %v1776, 0.0
        %v1917 = vmax.f32 %v1778, 0.0
        %v1918 = vmax.f32 %v1780, 0.0
        %v1919 = vmax.f32 %v1782, 0.0
        %v1920 = vmax.f32 %v1786, 0.0
        %v1921 = vmax.f32 %v1788, 0.0
        %v1922 = vmax.f32 %v1790, 0.0
        %v1923 = vmax.f32 %v1792, 0.0
        %v1924 = vmax.f32 %v1796, 0.0
        %v1925 = vmax.f32 %v1798, 0.0
        %v1926 = vmax.f32 %v1800, 0.0
        %v1927 = vmax.f32 %v1802, 0.0
        %v1928 = vmax.f32 %v1806, 0.0
        %v1929 = vmax.f32 %v1808, 0.0
        %v1930 = vmax.f32 %v1810, 0.0
        %v1931 = vmax.f32 %v1812, 0.0
        %v1932 = vmax.f32 %v1816, 0.0
        %v1933 = vmax.f32 %v1818, 0.0
        %v1934 = vmax.f32 %v1820, 0.0
        %v1935 = vmax.f32 %v1822, 0.0
        %v1936 = vmax.f32 %v1826, 0.0
        %v1937 = vmax.f32 %v1828, 0.0
        %v1938 = vmax.f32 %v1830, 0.0
        %v1939 = vmax.f32 %v1832, 0.0
        %v1940 = vmax.f32 %v1836, 0.0
        %v1941 = vmax.f32 %v1838, 0.0
        %v1942 = vmax.f32 %v1840, 0.0
        %v1943 = vmax.f32 %v1842, 0.0
        %v1944 = vmax.f32 %v1846, 0.0
        %v1945 = vmax.f32 %v1848, 0.0
        %v1946 = vmax.f32 %v1850, 0.0
        %v1947 = vmax.f32 %v1852, 0.0
        %v1948 = vmax.f32 %v1856, 0.0
        %v1949 = vmax.f32 %v1858, 0.0
        %v1950 = vmax.f32 %v1860, 0.0
        %v1951 = vmax.f32 %v1862, 0.0
        %v1952 = vmax.f32 %v1866, 0.0
        %v1953 = vmax.f32 %v1868, 0.0
        %v1954 = vmax.f32 %v1870, 0.0
        %v1955 = vmax.f32 %v1872, 0.0
        %v1956 = vmax.f32 %v1876, 0.0
        %v1957 = vmax.f32 %v1878, 0.0
        %v1958 = vmax.f32 %v1880, 0.0
        %v1959 = vmax.f32 %v1882, 0.0
        %v1960 = vmax.f32 %v1886, 0.0
        %v1961 = vmax.f32 %v1888, 0.0
        %v1962 = vmax.f32 %v1890, 0.0
        %v1963 = vmax.f32 %v1892, 0.0
        %v1964 = vmax.f32 %v1896, 0.0
        %v1965 = vmax.f32 %v1898, 0.0
        %v1966 = vmax.f32 %v1900, 0.0
        %v1967 = vmax.f32 %v1902, 0.0
        %v1968 = vld [vmem:[%s9] sm:$0xff]
        %v1969 = vld [vmem:[%s9 + $0x8] sm:$0xff]
        %v1970 = vld [vmem:[%s9 + $0x10] sm:$0xff]
        %v1971 = vld [vmem:[%s9 + $0x18] sm:$0xff]
        %v1972 = vld [vmem:[%s9 + $0x20] sm:$0xff]
        %v1973 = vld [vmem:[%s9 + $0x28] sm:$0xff]
        %v1974 = vld [vmem:[%s9 + $0x30] sm:$0xff]
        %v1975 = vld [vmem:[%s9 + $0x38] sm:$0xff]
        %v1976 = vld [vmem:[%s9 + $0x40] sm:$0xff]
        %v1977 = vld [vmem:[%s9 + $0x48] sm:$0xff]
        %v1978 = vld [vmem:[%s9 + $0x50] sm:$0xff]
        %v1979 = vld [vmem:[%s9 + $0x58] sm:$0xff]
        %v1980 = vld [vmem:[%s9 + $0x60] sm:$0xff]
        %v1981 = vld [vmem:[%s9 + $0x68] sm:$0xff]
        %v1982 = vld [vmem:[%s9 + $0x70] sm:$0xff]
        %v1983 = vld [vmem:[%s9 + $0x78] sm:$0xff]
        %v1984 = vld [vmem:[%s9 + $0x80] sm:$0xff]
        %v1985 = vld [vmem:[%s9 + $0x88] sm:$0xff]
        %v1986 = vld [vmem:[%s9 + $0x90] sm:$0xff]
        %v1987 = vld [vmem:[%s9 + $0x98] sm:$0xff]
        %v1988 = vld [vmem:[%s9 + $0xa0] sm:$0xff]
        %v1989 = vld [vmem:[%s9 + $0xa8] sm:$0xff]
        %v1990 = vld [vmem:[%s9 + $0xb0] sm:$0xff]
        %v1991 = vld [vmem:[%s9 + $0xb8] sm:$0xff]
        %v1992 = vld [vmem:[%s9 + $0xc0] sm:$0xff]
        %v1993 = vld [vmem:[%s9 + $0xc8] sm:$0xff]
        %v1994 = vld [vmem:[%s9 + $0xd0] sm:$0xff]
        %v1995 = vld [vmem:[%s9 + $0xd8] sm:$0xff]
        %v1996 = vld [vmem:[%s9 + $0xe0] sm:$0xff]
        %v1997 = vld [vmem:[%s9 + $0xe8] sm:$0xff]
        %v1998 = vld [vmem:[%s9 + $0xf0] sm:$0xff]
        %v1999 = vld [vmem:[%s9 + $0xf8] sm:$0xff]
        %v2000 = vld [vmem:[%s9 + $0x100] sm:$0xff]
        %v2001 = vld [vmem:[%s9 + $0x108] sm:$0xff]
        %v2002 = vld [vmem:[%s9 + $0x110] sm:$0xff]
        %v2003 = vld [vmem:[%s9 + $0x118] sm:$0xff]
        %v2004 = vld [vmem:[%s9 + $0x120] sm:$0xff]
        %v2005 = vld [vmem:[%s9 + $0x128] sm:$0xff]
        %v2006 = vld [vmem:[%s9 + $0x130] sm:$0xff]
        %v2007 = vld [vmem:[%s9 + $0x138] sm:$0xff]
        %v2008 = vld [vmem:[%s9 + $0x140] sm:$0xff]
        %v2009 = vld [vmem:[%s9 + $0x148] sm:$0xff]
        %v2010 = vld [vmem:[%s9 + $0x150] sm:$0xff]
        %v2011 = vld [vmem:[%s9 + $0x158] sm:$0xff]
        %v2012 = vld [vmem:[%s9 + $0x160] sm:$0xff]
        %v2013 = vld [vmem:[%s9 + $0x168] sm:$0xff]
        %v2014 = vld [vmem:[%s9 + $0x170] sm:$0xff]
        %v2015 = vld [vmem:[%s9 + $0x178] sm:$0xff]
        %v2016 = vld [vmem:[%s9 + $0x180] sm:$0xff]
        %v2017 = vld [vmem:[%s9 + $0x188] sm:$0xff]
        %v2018 = vld [vmem:[%s9 + $0x190] sm:$0xff]
        %v2019 = vld [vmem:[%s9 + $0x198] sm:$0xff]
        %v2020 = vld [vmem:[%s9 + $0x1a0] sm:$0xff]
        %v2021 = vld [vmem:[%s9 + $0x1a8] sm:$0xff]
        %v2022 = vld [vmem:[%s9 + $0x1b0] sm:$0xff]
        %v2023 = vld [vmem:[%s9 + $0x1b8] sm:$0xff]
        %v2024 = vld [vmem:[%s9 + $0x1c0] sm:$0xff]
        %v2025 = vld [vmem:[%s9 + $0x1c8] sm:$0xff]
        %v2026 = vld [vmem:[%s9 + $0x1d0] sm:$0xff]
        %v2027 = vld [vmem:[%s9 + $0x1d8] sm:$0xff]
        %v2028 = vld [vmem:[%s9 + $0x1e0] sm:$0xff]
        %v2029 = vld [vmem:[%s9 + $0x1e8] sm:$0xff]
        %v2030 = vld [vmem:[%s9 + $0x1f0] sm:$0xff]
        %v2031 = vld [vmem:[%s9 + $0x1f8] sm:$0xff]
        %v2032 = vld [vmem:[%s10] sm:$0xf]
        %v2033 = vpack.c.bf16 %v1906, %v1904
        %v2034 = vpack.c.bf16 %v1907, %v1905
        %v2035 = vpack.c.bf16 %v1910, %v1908
        %v2036 = vpack.c.bf16 %v1911, %v1909
        %v2037 = vpack.c.bf16 %v1914, %v1912
        %v2038 = vpack.c.bf16 %v1915, %v1913
        %v2039 = vpack.c.bf16 %v1918, %v1916
        %v2040 = vpack.c.bf16 %v1919, %v1917
        %v2041 = vpack.c.bf16 %v1922, %v1920
        %v2042 = vpack.c.bf16 %v1923, %v1921
        %v2043 = vpack.c.bf16 %v1926, %v1924
        %v2044 = vpack.c.bf16 %v1927, %v1925
        %v2045 = vpack.c.bf16 %v1930, %v1928
        %v2046 = vpack.c.bf16 %v1931, %v1929
        %v2047 = vpack.c.bf16 %v1934, %v1932
        %v2048 = vpack.c.bf16 %v1935, %v1933
        %v2049 = vpack.c.bf16 %v1938, %v1936
        %v2050 = vpack.c.bf16 %v1939, %v1937
        %v2051 = vpack.c.bf16 %v1942, %v1940
        %v2052 = vpack.c.bf16 %v1943, %v1941
        %v2053 = vpack.c.bf16 %v1946, %v1944
        %v2054 = vpack.c.bf16 %v1947, %v1945
        %v2055 = vpack.c.bf16 %v1950, %v1948
        %v2056 = vpack.c.bf16 %v1951, %v1949
        %v2057 = vpack.c.bf16 %v1954, %v1952
        %v2058 = vpack.c.bf16 %v1955, %v1953
        %v2059 = vpack.c.bf16 %v1958, %v1956
        %v2060 = vpack.c.bf16 %v1959, %v1957
        %v2061 = vpack.c.bf16 %v1962, %v1960
        %v2062 = vpack.c.bf16 %v1963, %v1961
        %v2063 = vpack.c.bf16 %v1966, %v1964
        %v2064 = vpack.c.bf16 %v1967, %v1965
        %v2066 = vlaneseq
        %v2067 = vshrl.u32 %v2066, 7
        %v2068 = vsub.s32 0, %v2067
        %v2069 = vrot.slane %v2032, %v2068
        %v2070 = vlaneseq
        %v2071 = vshrl.u32 %v2070, 7
        %v2072 = vsub.s32 1, %v2071
        %v2073 = vrot.slane %v2032, %v2072
        %v2074 = vlaneseq
        %v2075 = vshrl.u32 %v2074, 7
        %v2076 = vsub.s32 2, %v2075
        %v2077 = vrot.slane %v2032, %v2076
        %v2078 = vlaneseq
        %v2079 = vshrl.u32 %v2078, 7
        %v2080 = vsub.s32 3, %v2079
        %v2081 = vrot.slane %v2032, %v2080
        %v2150 = vunpack.c.l.b16 %v1968
        %v2151 = vunpack.c.h.b16 %v1968
        %v2152 = vunpack.c.l.b16 %v1969
        %v2153 = vunpack.c.h.b16 %v1969
        %v2154 = vunpack.c.l.b16 %v1970
        %v2155 = vunpack.c.h.b16 %v1970
        %v2156 = vunpack.c.l.b16 %v1971
        %v2157 = vunpack.c.h.b16 %v1971
        %v2158 = vunpack.c.l.b16 %v1972
        %v2159 = vunpack.c.h.b16 %v1972
        %v2160 = vunpack.c.l.b16 %v1973
        %v2161 = vunpack.c.h.b16 %v1973
        %v2162 = vunpack.c.l.b16 %v1974
        %v2163 = vunpack.c.h.b16 %v1974
        %v2164 = vunpack.c.l.b16 %v1975
        %v2165 = vunpack.c.h.b16 %v1975
        %v2166 = vunpack.c.l.b16 %v1976
        %v2167 = vunpack.c.h.b16 %v1976
        %v2168 = vunpack.c.l.b16 %v1977
        %v2169 = vunpack.c.h.b16 %v1977
        %v2170 = vunpack.c.l.b16 %v1978
        %v2171 = vunpack.c.h.b16 %v1978
        %v2172 = vunpack.c.l.b16 %v1979
        %v2173 = vunpack.c.h.b16 %v1979
        %v2174 = vunpack.c.l.b16 %v1980
        %v2175 = vunpack.c.h.b16 %v1980
        %v2176 = vunpack.c.l.b16 %v1981
        %v2177 = vunpack.c.h.b16 %v1981
        %v2178 = vunpack.c.l.b16 %v1982
        %v2179 = vunpack.c.h.b16 %v1982
        %v2180 = vunpack.c.l.b16 %v1983
        %v2181 = vunpack.c.h.b16 %v1983
        %v2182 = vunpack.c.l.b16 %v1984
        %v2183 = vunpack.c.h.b16 %v1984
        %v2184 = vunpack.c.l.b16 %v1985
        %v2185 = vunpack.c.h.b16 %v1985
        %v2186 = vunpack.c.l.b16 %v1986
        %v2187 = vunpack.c.h.b16 %v1986
        %v2188 = vunpack.c.l.b16 %v1987
        %v2189 = vunpack.c.h.b16 %v1987
        %v2190 = vunpack.c.l.b16 %v1988
        %v2191 = vunpack.c.h.b16 %v1988
        %v2192 = vunpack.c.l.b16 %v1989
        %v2193 = vunpack.c.h.b16 %v1989
        %v2194 = vunpack.c.l.b16 %v1990
        %v2195 = vunpack.c.h.b16 %v1990
        %v2196 = vunpack.c.l.b16 %v1991
        %v2197 = vunpack.c.h.b16 %v1991
        %v2198 = vunpack.c.l.b16 %v1992
        %v2199 = vunpack.c.h.b16 %v1992
        %v2200 = vunpack.c.l.b16 %v1993
        %v2201 = vunpack.c.h.b16 %v1993
        %v2202 = vunpack.c.l.b16 %v1994
        %v2203 = vunpack.c.h.b16 %v1994
        %v2204 = vunpack.c.l.b16 %v1995
        %v2205 = vunpack.c.h.b16 %v1995
        %v2206 = vunpack.c.l.b16 %v1996
        %v2207 = vunpack.c.h.b16 %v1996
        %v2208 = vunpack.c.l.b16 %v1997
        %v2209 = vunpack.c.h.b16 %v1997
        %v2210 = vunpack.c.l.b16 %v1998
        %v2211 = vunpack.c.h.b16 %v1998
        %v2212 = vunpack.c.l.b16 %v1999
        %v2213 = vunpack.c.h.b16 %v1999
        %v2214 = vunpack.c.l.b16 %v2000
        %v2215 = vunpack.c.h.b16 %v2000
        %v2216 = vunpack.c.l.b16 %v2001
        %v2217 = vunpack.c.h.b16 %v2001
        %v2218 = vunpack.c.l.b16 %v2002
        %v2219 = vunpack.c.h.b16 %v2002
        %v2220 = vunpack.c.l.b16 %v2003
        %v2221 = vunpack.c.h.b16 %v2003
        %v2222 = vunpack.c.l.b16 %v2004
        %v2223 = vunpack.c.h.b16 %v2004
        %v2224 = vunpack.c.l.b16 %v2005
        %v2225 = vunpack.c.h.b16 %v2005
        %v2226 = vunpack.c.l.b16 %v2006
        %v2227 = vunpack.c.h.b16 %v2006
        %v2228 = vunpack.c.l.b16 %v2007
        %v2229 = vunpack.c.h.b16 %v2007
        %v2230 = vunpack.c.l.b16 %v2008
        %v2231 = vunpack.c.h.b16 %v2008
        %v2232 = vunpack.c.l.b16 %v2009
        %v2233 = vunpack.c.h.b16 %v2009
        %v2234 = vunpack.c.l.b16 %v2010
        %v2235 = vunpack.c.h.b16 %v2010
        %v2236 = vunpack.c.l.b16 %v2011
        %v2237 = vunpack.c.h.b16 %v2011
        %v2238 = vunpack.c.l.b16 %v2012
        %v2239 = vunpack.c.h.b16 %v2012
        %v2240 = vunpack.c.l.b16 %v2013
        %v2241 = vunpack.c.h.b16 %v2013
        %v2242 = vunpack.c.l.b16 %v2014
        %v2243 = vunpack.c.h.b16 %v2014
        %v2244 = vunpack.c.l.b16 %v2015
        %v2245 = vunpack.c.h.b16 %v2015
        %v2246 = vunpack.c.l.b16 %v2016
        %v2247 = vunpack.c.h.b16 %v2016
        %v2248 = vunpack.c.l.b16 %v2017
        %v2249 = vunpack.c.h.b16 %v2017
        %v2250 = vunpack.c.l.b16 %v2018
        %v2251 = vunpack.c.h.b16 %v2018
        %v2252 = vunpack.c.l.b16 %v2019
        %v2253 = vunpack.c.h.b16 %v2019
        %v2254 = vunpack.c.l.b16 %v2020
        %v2255 = vunpack.c.h.b16 %v2020
        %v2256 = vunpack.c.l.b16 %v2021
        %v2257 = vunpack.c.h.b16 %v2021
        %v2258 = vunpack.c.l.b16 %v2022
        %v2259 = vunpack.c.h.b16 %v2022
        %v2260 = vunpack.c.l.b16 %v2023
        %v2261 = vunpack.c.h.b16 %v2023
        %v2262 = vunpack.c.l.b16 %v2024
        %v2263 = vunpack.c.h.b16 %v2024
        %v2264 = vunpack.c.l.b16 %v2025
        %v2265 = vunpack.c.h.b16 %v2025
        %v2266 = vunpack.c.l.b16 %v2026
        %v2267 = vunpack.c.h.b16 %v2026
        %v2268 = vunpack.c.l.b16 %v2027
        %v2269 = vunpack.c.h.b16 %v2027
        %v2270 = vunpack.c.l.b16 %v2028
        %v2271 = vunpack.c.h.b16 %v2028
        %v2272 = vunpack.c.l.b16 %v2029
        %v2273 = vunpack.c.h.b16 %v2029
        %v2274 = vunpack.c.l.b16 %v2030
        %v2275 = vunpack.c.h.b16 %v2030
        %v2276 = vunpack.c.l.b16 %v2031
        %v2277 = vunpack.c.h.b16 %v2031
        %v2278 = vpack.c.b16 %v2154, %v2150
        %v2279 = vpack.c.b16 %v2155, %v2151
        %v2280 = vpack.c.b16 %v2156, %v2152
        %v2281 = vpack.c.b16 %v2157, %v2153
        %v2282 = vpack.c.b16 %v2162, %v2158
        %v2283 = vpack.c.b16 %v2163, %v2159
        %v2284 = vpack.c.b16 %v2164, %v2160
        %v2285 = vpack.c.b16 %v2165, %v2161
        %v2286 = vpack.c.b16 %v2170, %v2166
        %v2287 = vpack.c.b16 %v2171, %v2167
        %v2288 = vpack.c.b16 %v2172, %v2168
        %v2289 = vpack.c.b16 %v2173, %v2169
        %v2290 = vpack.c.b16 %v2178, %v2174
        %v2291 = vpack.c.b16 %v2179, %v2175
        %v2292 = vpack.c.b16 %v2180, %v2176
        %v2293 = vpack.c.b16 %v2181, %v2177
        %v2294 = vpack.c.b16 %v2186, %v2182
        %v2295 = vpack.c.b16 %v2187, %v2183
        %v2296 = vpack.c.b16 %v2188, %v2184
        %v2297 = vpack.c.b16 %v2189, %v2185
        %v2298 = vpack.c.b16 %v2194, %v2190
        %v2299 = vpack.c.b16 %v2195, %v2191
        %v2300 = vpack.c.b16 %v2196, %v2192
        %v2301 = vpack.c.b16 %v2197, %v2193
        %v2302 = vpack.c.b16 %v2202, %v2198
        %v2303 = vpack.c.b16 %v2203, %v2199
        %v2304 = vpack.c.b16 %v2204, %v2200
        %v2305 = vpack.c.b16 %v2205, %v2201
        %v2306 = vpack.c.b16 %v2210, %v2206
        %v2307 = vpack.c.b16 %v2211, %v2207
        %v2308 = vpack.c.b16 %v2212, %v2208
        %v2309 = vpack.c.b16 %v2213, %v2209
        %v2310 = vpack.c.b16 %v2218, %v2214
        %v2311 = vpack.c.b16 %v2219, %v2215
        %v2312 = vpack.c.b16 %v2220, %v2216
        %v2313 = vpack.c.b16 %v2221, %v2217
        %v2314 = vpack.c.b16 %v2226, %v2222
        %v2315 = vpack.c.b16 %v2227, %v2223
        %v2316 = vpack.c.b16 %v2228, %v2224
        %v2317 = vpack.c.b16 %v2229, %v2225
        %v2318 = vpack.c.b16 %v2234, %v2230
        %v2319 = vpack.c.b16 %v2235, %v2231
        %v2320 = vpack.c.b16 %v2236, %v2232
        %v2321 = vpack.c.b16 %v2237, %v2233
        %v2322 = vpack.c.b16 %v2242, %v2238
        %v2323 = vpack.c.b16 %v2243, %v2239
        %v2324 = vpack.c.b16 %v2244, %v2240
        %v2325 = vpack.c.b16 %v2245, %v2241
        %v2326 = vpack.c.b16 %v2250, %v2246
        %v2327 = vpack.c.b16 %v2251, %v2247
        %v2328 = vpack.c.b16 %v2252, %v2248
        %v2329 = vpack.c.b16 %v2253, %v2249
        %v2330 = vpack.c.b16 %v2258, %v2254
        %v2331 = vpack.c.b16 %v2259, %v2255
        %v2332 = vpack.c.b16 %v2260, %v2256
        %v2333 = vpack.c.b16 %v2261, %v2257
        %v2334 = vpack.c.b16 %v2266, %v2262
        %v2335 = vpack.c.b16 %v2267, %v2263
        %v2336 = vpack.c.b16 %v2268, %v2264
        %v2337 = vpack.c.b16 %v2269, %v2265
        %v2338 = vpack.c.b16 %v2274, %v2270
        %v2339 = vpack.c.b16 %v2275, %v2271
        %v2340 = vpack.c.b16 %v2276, %v2272
        %v2341 = vpack.c.b16 %v2277, %v2273
        %2406 = vmatprep.subr.bf16.mxu0 %v2279
        %2407 = vmatpush1.bf16.msra.mxu0 %v2278
        %2408 = vmatprep.subr.bf16.mxu0 %v2283
        %2409 = vmatpush1.bf16.msra.mxu0 %v2282
        %2410 = vmatprep.subr.bf16.mxu0 %v2287
        %2411 = vmatpush1.bf16.msra.mxu0 %v2286
        %2412 = vmatprep.subr.bf16.mxu0 %v2291
        %2413 = vmatpush1.bf16.msra.mxu0 %v2290
        %2414 = vmatprep.subr.bf16.mxu0 %v2295
        %2415 = vmatpush1.bf16.msra.mxu0 %v2294
        %2416 = vmatprep.subr.bf16.mxu0 %v2299
        %2417 = vmatpush1.bf16.msra.mxu0 %v2298
        %2418 = vmatprep.subr.bf16.mxu0 %v2303
        %2419 = vmatpush1.bf16.msra.mxu0 %v2302
        %2420 = vmatprep.subr.bf16.mxu0 %v2307
        %2421 = vmatpush1.bf16.msra.mxu0 %v2306
        %2422 = vmatprep.subr.bf16.mxu0 %v2311
        %2423 = vmatpush1.bf16.msra.mxu0 %v2310
        %2424 = vmatprep.subr.bf16.mxu0 %v2315
        %2425 = vmatpush1.bf16.msra.mxu0 %v2314
        %2426 = vmatprep.subr.bf16.mxu0 %v2319
        %2427 = vmatpush1.bf16.msra.mxu0 %v2318
        %2428 = vmatprep.subr.bf16.mxu0 %v2323
        %2429 = vmatpush1.bf16.msra.mxu0 %v2322
        %2430 = vmatprep.subr.bf16.mxu0 %v2327
        %2431 = vmatpush1.bf16.msra.mxu0 %v2326
        %2432 = vmatprep.subr.bf16.mxu0 %v2331
        %2433 = vmatpush1.bf16.msra.mxu0 %v2330
        %2434 = vmatprep.subr.bf16.mxu0 %v2335
        %2435 = vmatpush1.bf16.msra.mxu0 %v2334
        %2436 = vmatprep.subr.bf16.mxu0 %v2339
        %2437 = vmatpush1.bf16.msra.mxu0 %v2338
        %2438 = vmatprep.mubr.bf16.mxu0 %v2034
        %2439 = vmatmul.mubr.bf16.gmra.mrb[0].mxu0 %v2033
        %v2440 = vpop.f32.mrb[0].mxu0
        %v2441 = vadd.f32 %v2069, %v2440
        %v2442 = vpop.f32.mrb[0].mxu0
        %v2443 = vadd.f32 %v2073, %v2442
        %v2444 = vpop.f32.mrb[0].mxu0
        %v2445 = vadd.f32 %v2069, %v2444
        %v2446 = vpop.f32.mrb[0].mxu0
        %v2447 = vadd.f32 %v2073, %v2446
        %2448 = vmatprep.mubr.bf16.mxu0 %v2036
        %2449 = vmatmul.mubr.bf16.gmra.mrb[0].mxu0 %v2035
        %v2450 = vpop.f32.mrb[0].mxu0
        %v2451 = vadd.f32 %v2069, %v2450
        %v2452 = vpop.f32.mrb[0].mxu0
        %v2453 = vadd.f32 %v2073, %v2452
        %v2454 = vpop.f32.mrb[0].mxu0
        %v2455 = vadd.f32 %v2069, %v2454
        %v2456 = vpop.f32.mrb[0].mxu0
        %v2457 = vadd.f32 %v2073, %v2456
        %2458 = vmatprep.mubr.bf16.mxu0 %v2038
        %2459 = vmatmul.mubr.bf16.gmra.mrb[0].mxu0 %v2037
        %v2460 = vpop.f32.mrb[0].mxu0
        %v2461 = vadd.f32 %v2069, %v2460
        %v2462 = vpop.f32.mrb[0].mxu0
        %v2463 = vadd.f32 %v2073, %v2462
        %v2464 = vpop.f32.mrb[0].mxu0
        %v2465 = vadd.f32 %v2069, %v2464
        %v2466 = vpop.f32.mrb[0].mxu0
        %v2467 = vadd.f32 %v2073, %v2466
        %2468 = vmatprep.mubr.bf16.mxu0 %v2040
        %2469 = vmatmul.mubr.bf16.gmra.mrb[0].mxu0 %v2039
        %v2470 = vpop.f32.mrb[0].mxu0
        %v2471 = vadd.f32 %v2069, %v2470
        %v2472 = vpop.f32.mrb[0].mxu0
        %v2473 = vadd.f32 %v2073, %v2472
        %v2474 = vpop.f32.mrb[0].mxu0
        %v2475 = vadd.f32 %v2069, %v2474
        %v2476 = vpop.f32.mrb[0].mxu0
        %v2477 = vadd.f32 %v2073, %v2476
        %2478 = vmatprep.mubr.bf16.mxu0 %v2042
        %2479 = vmatmul.mubr.bf16.gmra.mrb[0].mxu0 %v2041
        %v2480 = vpop.f32.mrb[0].mxu0
        %v2481 = vadd.f32 %v2069, %v2480
        %v2482 = vpop.f32.mrb[0].mxu0
        %v2483 = vadd.f32 %v2073, %v2482
        %v2484 = vpop.f32.mrb[0].mxu0
        %v2485 = vadd.f32 %v2069, %v2484
        %v2486 = vpop.f32.mrb[0].mxu0
        %v2487 = vadd.f32 %v2073, %v2486
        %2488 = vmatprep.mubr.bf16.mxu0 %v2044
        %2489 = vmatmul.mubr.bf16.gmra.mrb[0].mxu0 %v2043
        %v2490 = vpop.f32.mrb[0].mxu0
        %v2491 = vadd.f32 %v2069, %v2490
        %v2492 = vpop.f32.mrb[0].mxu0
        %v2493 = vadd.f32 %v2073, %v2492
        %v2494 = vpop.f32.mrb[0].mxu0
        %v2495 = vadd.f32 %v2069, %v2494
        %v2496 = vpop.f32.mrb[0].mxu0
        %v2497 = vadd.f32 %v2073, %v2496
        %2498 = vmatprep.mubr.bf16.mxu0 %v2046
        %2499 = vmatmul.mubr.bf16.gmra.mrb[0].mxu0 %v2045
        %v2500 = vpop.f32.mrb[0].mxu0
        %v2501 = vadd.f32 %v2069, %v2500
        %v2502 = vpop.f32.mrb[0].mxu0
        %v2503 = vadd.f32 %v2073, %v2502
        %v2504 = vpop.f32.mrb[0].mxu0
        %v2505 = vadd.f32 %v2069, %v2504
        %v2506 = vpop.f32.mrb[0].mxu0
        %v2507 = vadd.f32 %v2073, %v2506
        %2508 = vmatprep.mubr.bf16.mxu0 %v2048
        %2509 = vmatmul.mubr.bf16.gmra.mrb[0].mxu0 %v2047
        %v2510 = vpop.f32.mrb[0].mxu0
        %v2511 = vadd.f32 %v2069, %v2510
        %v2512 = vpop.f32.mrb[0].mxu0
        %v2513 = vadd.f32 %v2073, %v2512
        %v2514 = vpop.f32.mrb[0].mxu0
        %v2515 = vadd.f32 %v2069, %v2514
        %v2516 = vpop.f32.mrb[0].mxu0
        %v2517 = vadd.f32 %v2073, %v2516
        %2518 = vmatprep.mubr.bf16.mxu0 %v2050
        %2519 = vmatmul.mubr.bf16.gmra.mrb[0].mxu0 %v2049
        %v2520 = vpop.f32.mrb[0].mxu0
        %v2521 = vadd.f32 %v2069, %v2520
        %v2522 = vpop.f32.mrb[0].mxu0
        %v2523 = vadd.f32 %v2073, %v2522
        %v2524 = vpop.f32.mrb[0].mxu0
        %v2525 = vadd.f32 %v2069, %v2524
        %v2526 = vpop.f32.mrb[0].mxu0
        %v2527 = vadd.f32 %v2073, %v2526
        %2528 = vmatprep.mubr.bf16.mxu0 %v2052
        %2529 = vmatmul.mubr.bf16.gmra.mrb[0].mxu0 %v2051
        %v2530 = vpop.f32.mrb[0].mxu0
        %v2531 = vadd.f32 %v2069, %v2530
        %v2532 = vpop.f32.mrb[0].mxu0
        %v2533 = vadd.f32 %v2073, %v2532
        %v2534 = vpop.f32.mrb[0].mxu0
        %v2535 = vadd.f32 %v2069, %v2534
        %v2536 = vpop.f32.mrb[0].mxu0
        %v2537 = vadd.f32 %v2073, %v2536
        %2538 = vmatprep.mubr.bf16.mxu0 %v2054
        %2539 = vmatmul.mubr.bf16.gmra.mrb[0].mxu0 %v2053
        %v2540 = vpop.f32.mrb[0].mxu0
        %v2541 = vadd.f32 %v2069, %v2540
        %v2542 = vpop.f32.mrb[0].mxu0
        %v2543 = vadd.f32 %v2073, %v2542
        %v2544 = vpop.f32.mrb[0].mxu0
        %v2545 = vadd.f32 %v2069, %v2544
        %v2546 = vpop.f32.mrb[0].mxu0
        %v2547 = vadd.f32 %v2073, %v2546
        %2548 = vmatprep.mubr.bf16.mxu0 %v2056
        %2549 = vmatmul.mubr.bf16.gmra.mrb[0].mxu0 %v2055
        %v2550 = vpop.f32.mrb[0].mxu0
        %v2551 = vadd.f32 %v2069, %v2550
        %v2552 = vpop.f32.mrb[0].mxu0
        %v2553 = vadd.f32 %v2073, %v2552
        %v2554 = vpop.f32.mrb[0].mxu0
        %v2555 = vadd.f32 %v2069, %v2554
        %v2556 = vpop.f32.mrb[0].mxu0
        %v2557 = vadd.f32 %v2073, %v2556
        %2558 = vmatprep.mubr.bf16.mxu0 %v2058
        %2559 = vmatmul.mubr.bf16.gmra.mrb[0].mxu0 %v2057
        %v2560 = vpop.f32.mrb[0].mxu0
        %v2561 = vadd.f32 %v2069, %v2560
        %v2562 = vpop.f32.mrb[0].mxu0
        %v2563 = vadd.f32 %v2073, %v2562
        %v2564 = vpop.f32.mrb[0].mxu0
        %v2565 = vadd.f32 %v2069, %v2564
        %v2566 = vpop.f32.mrb[0].mxu0
        %v2567 = vadd.f32 %v2073, %v2566
        %2568 = vmatprep.mubr.bf16.mxu0 %v2060
        %2569 = vmatmul.mubr.bf16.gmra.mrb[0].mxu0 %v2059
        %v2570 = vpop.f32.mrb[0].mxu0
        %v2571 = vadd.f32 %v2069, %v2570
        %v2572 = vpop.f32.mrb[0].mxu0
        %v2573 = vadd.f32 %v2073, %v2572
        %v2574 = vpop.f32.mrb[0].mxu0
        %v2575 = vadd.f32 %v2069, %v2574
        %v2576 = vpop.f32.mrb[0].mxu0
        %v2577 = vadd.f32 %v2073, %v2576
        %2578 = vmatprep.mubr.bf16.mxu0 %v2062
        %2579 = vmatmul.mubr.bf16.gmra.mrb[0].mxu0 %v2061
        %v2580 = vpop.f32.mrb[0].mxu0
        %v2581 = vadd.f32 %v2069, %v2580
        %v2582 = vpop.f32.mrb[0].mxu0
        %v2583 = vadd.f32 %v2073, %v2582
        %v2584 = vpop.f32.mrb[0].mxu0
        %v2585 = vadd.f32 %v2069, %v2584
        %v2586 = vpop.f32.mrb[0].mxu0
        %v2587 = vadd.f32 %v2073, %v2586
        %2588 = vmatprep.mubr.bf16.mxu0 %v2064
        %2589 = vmatmul.mubr.bf16.gmra.mrb[0].mxu0 %v2063
        %v2590 = vpop.f32.mrb[0].mxu0
        %v2591 = vadd.f32 %v2069, %v2590
        %v2592 = vpop.f32.mrb[0].mxu0
        %v2593 = vadd.f32 %v2073, %v2592
        %v2594 = vpop.f32.mrb[0].mxu0
        %v2595 = vadd.f32 %v2069, %v2594
        %v2596 = vpop.f32.mrb[0].mxu0
        %v2597 = vadd.f32 %v2073, %v2596
        %2598 = vdwg.mxu0
        %2599 = vmatprep.subr.bf16.mxu0 %v2281
        %2600 = vmatpush1.bf16.msra.mxu0 %v2280
        %2601 = vmatprep.subr.bf16.mxu0 %v2285
        %2602 = vmatpush1.bf16.msra.mxu0 %v2284
        %2603 = vmatprep.subr.bf16.mxu0 %v2289
        %2604 = vmatpush1.bf16.msra.mxu0 %v2288
        %2605 = vmatprep.subr.bf16.mxu0 %v2293
        %2606 = vmatpush1.bf16.msra.mxu0 %v2292
        %2607 = vmatprep.subr.bf16.mxu0 %v2297
        %2608 = vmatpush1.bf16.msra.mxu0 %v2296
        %2609 = vmatprep.subr.bf16.mxu0 %v2301
        %2610 = vmatpush1.bf16.msra.mxu0 %v2300
        %2611 = vmatprep.subr.bf16.mxu0 %v2305
        %2612 = vmatpush1.bf16.msra.mxu0 %v2304
        %2613 = vmatprep.subr.bf16.mxu0 %v2309
        %2614 = vmatpush1.bf16.msra.mxu0 %v2308
        %2615 = vmatprep.subr.bf16.mxu0 %v2313
        %2616 = vmatpush1.bf16.msra.mxu0 %v2312
        %2617 = vmatprep.subr.bf16.mxu0 %v2317
        %2618 = vmatpush1.bf16.msra.mxu0 %v2316
        %2619 = vmatprep.subr.bf16.mxu0 %v2321
        %2620 = vmatpush1.bf16.msra.mxu0 %v2320
        %2621 = vmatprep.subr.bf16.mxu0 %v2325
        %2622 = vmatpush1.bf16.msra.mxu0 %v2324
        %2623 = vmatprep.subr.bf16.mxu0 %v2329
        %2624 = vmatpush1.bf16.msra.mxu0 %v2328
        %2625 = vmatprep.subr.bf16.mxu0 %v2333
        %2626 = vmatpush1.bf16.msra.mxu0 %v2332
        %2627 = vmatprep.subr.bf16.mxu0 %v2337
        %2628 = vmatpush1.bf16.msra.mxu0 %v2336
        %2629 = vmatprep.subr.bf16.mxu0 %v2341
        %2630 = vmatpush1.bf16.msra.mxu0 %v2340
        %2631 = vmatprep.mubr.bf16.mxu0 %v2034
        %2632 = vmatmul.mubr.bf16.gmra.mrb[0].mxu0 %v2033
        %v2633 = vpop.f32.mrb[0].mxu0
        %v2634 = vadd.f32 %v2077, %v2633
        %v2635 = vpop.f32.mrb[0].mxu0
        %v2636 = vadd.f32 %v2081, %v2635
        %v2637 = vpop.f32.mrb[0].mxu0
        %v2638 = vadd.f32 %v2077, %v2637
        %v2639 = vpop.f32.mrb[0].mxu0
        %v2640 = vadd.f32 %v2081, %v2639
        %2641 = vmatprep.mubr.bf16.mxu0 %v2036
        %2642 = vmatmul.mubr.bf16.gmra.mrb[0].mxu0 %v2035
        %v2643 = vpop.f32.mrb[0].mxu0
        %v2644 = vadd.f32 %v2077, %v2643
        %v2645 = vpop.f32.mrb[0].mxu0
        %v2646 = vadd.f32 %v2081, %v2645
        %v2647 = vpop.f32.mrb[0].mxu0
        %v2648 = vadd.f32 %v2077, %v2647
        %v2649 = vpop.f32.mrb[0].mxu0
        %v2650 = vadd.f32 %v2081, %v2649
        %2651 = vmatprep.mubr.bf16.mxu0 %v2038
        %2652 = vmatmul.mubr.bf16.gmra.mrb[0].mxu0 %v2037
        %v2653 = vpop.f32.mrb[0].mxu0
        %v2654 = vadd.f32 %v2077, %v2653
        %v2655 = vpop.f32.mrb[0].mxu0
        %v2656 = vadd.f32 %v2081, %v2655
        %v2657 = vpop.f32.mrb[0].mxu0
        %v2658 = vadd.f32 %v2077, %v2657
        %v2659 = vpop.f32.mrb[0].mxu0
        %v2660 = vadd.f32 %v2081, %v2659
        %2661 = vmatprep.mubr.bf16.mxu0 %v2040
        %2662 = vmatmul.mubr.bf16.gmra.mrb[0].mxu0 %v2039
        %v2663 = vpop.f32.mrb[0].mxu0
        %v2664 = vadd.f32 %v2077, %v2663
        %v2665 = vpop.f32.mrb[0].mxu0
        %v2666 = vadd.f32 %v2081, %v2665
        %v2667 = vpop.f32.mrb[0].mxu0
        %v2668 = vadd.f32 %v2077, %v2667
        %v2669 = vpop.f32.mrb[0].mxu0
        %v2670 = vadd.f32 %v2081, %v2669
        %2671 = vmatprep.mubr.bf16.mxu0 %v2042
        %2672 = vmatmul.mubr.bf16.gmra.mrb[0].mxu0 %v2041
        %v2673 = vpop.f32.mrb[0].mxu0
        %v2674 = vadd.f32 %v2077, %v2673
        %v2675 = vpop.f32.mrb[0].mxu0
        %v2676 = vadd.f32 %v2081, %v2675
        %v2677 = vpop.f32.mrb[0].mxu0
        %v2678 = vadd.f32 %v2077, %v2677
        %v2679 = vpop.f32.mrb[0].mxu0
        %v2680 = vadd.f32 %v2081, %v2679
        %2681 = vmatprep.mubr.bf16.mxu0 %v2044
        %2682 = vmatmul.mubr.bf16.gmra.mrb[0].mxu0 %v2043
        %v2683 = vpop.f32.mrb[0].mxu0
        %v2684 = vadd.f32 %v2077, %v2683
        %v2685 = vpop.f32.mrb[0].mxu0
        %v2686 = vadd.f32 %v2081, %v2685
        %v2687 = vpop.f32.mrb[0].mxu0
        %v2688 = vadd.f32 %v2077, %v2687
        %v2689 = vpop.f32.mrb[0].mxu0
        %v2690 = vadd.f32 %v2081, %v2689
        %2691 = vmatprep.mubr.bf16.mxu0 %v2046
        %2692 = vmatmul.mubr.bf16.gmra.mrb[0].mxu0 %v2045
        %v2693 = vpop.f32.mrb[0].mxu0
        %v2694 = vadd.f32 %v2077, %v2693
        %v2695 = vpop.f32.mrb[0].mxu0
        %v2696 = vadd.f32 %v2081, %v2695
        %v2697 = vpop.f32.mrb[0].mxu0
        %v2698 = vadd.f32 %v2077, %v2697
        %v2699 = vpop.f32.mrb[0].mxu0
        %v2700 = vadd.f32 %v2081, %v2699
        %2701 = vmatprep.mubr.bf16.mxu0 %v2048
        %2702 = vmatmul.mubr.bf16.gmra.mrb[0].mxu0 %v2047
        %v2703 = vpop.f32.mrb[0].mxu0
        %v2704 = vadd.f32 %v2077, %v2703
        %v2705 = vpop.f32.mrb[0].mxu0
        %v2706 = vadd.f32 %v2081, %v2705
        %v2707 = vpop.f32.mrb[0].mxu0
        %v2708 = vadd.f32 %v2077, %v2707
        %v2709 = vpop.f32.mrb[0].mxu0
        %v2710 = vadd.f32 %v2081, %v2709
        %2711 = vmatprep.mubr.bf16.mxu0 %v2050
        %2712 = vmatmul.mubr.bf16.gmra.mrb[0].mxu0 %v2049
        %v2713 = vpop.f32.mrb[0].mxu0
        %v2714 = vadd.f32 %v2077, %v2713
        %v2715 = vpop.f32.mrb[0].mxu0
        %v2716 = vadd.f32 %v2081, %v2715
        %v2717 = vpop.f32.mrb[0].mxu0
        %v2718 = vadd.f32 %v2077, %v2717
        %v2719 = vpop.f32.mrb[0].mxu0
        %v2720 = vadd.f32 %v2081, %v2719
        %2721 = vmatprep.mubr.bf16.mxu0 %v2052
        %2722 = vmatmul.mubr.bf16.gmra.mrb[0].mxu0 %v2051
        %v2723 = vpop.f32.mrb[0].mxu0
        %v2724 = vadd.f32 %v2077, %v2723
        %v2725 = vpop.f32.mrb[0].mxu0
        %v2726 = vadd.f32 %v2081, %v2725
        %v2727 = vpop.f32.mrb[0].mxu0
        %v2728 = vadd.f32 %v2077, %v2727
        %v2729 = vpop.f32.mrb[0].mxu0
        %v2730 = vadd.f32 %v2081, %v2729
        %2731 = vmatprep.mubr.bf16.mxu0 %v2054
        %2732 = vmatmul.mubr.bf16.gmra.mrb[0].mxu0 %v2053
        %v2733 = vpop.f32.mrb[0].mxu0
        %v2734 = vadd.f32 %v2077, %v2733
        %v2735 = vpop.f32.mrb[0].mxu0
        %v2736 = vadd.f32 %v2081, %v2735
        %v2737 = vpop.f32.mrb[0].mxu0
        %v2738 = vadd.f32 %v2077, %v2737
        %v2739 = vpop.f32.mrb[0].mxu0
        %v2740 = vadd.f32 %v2081, %v2739
        %2741 = vmatprep.mubr.bf16.mxu0 %v2056
        %2742 = vmatmul.mubr.bf16.gmra.mrb[0].mxu0 %v2055
        %v2743 = vpop.f32.mrb[0].mxu0
        %v2744 = vadd.f32 %v2077, %v2743
        %v2745 = vpop.f32.mrb[0].mxu0
        %v2746 = vadd.f32 %v2081, %v2745
        %v2747 = vpop.f32.mrb[0].mxu0
        %v2748 = vadd.f32 %v2077, %v2747
        %v2749 = vpop.f32.mrb[0].mxu0
        %v2750 = vadd.f32 %v2081, %v2749
        %2751 = vmatprep.mubr.bf16.mxu0 %v2058
        %2752 = vmatmul.mubr.bf16.gmra.mrb[0].mxu0 %v2057
        %v2753 = vpop.f32.mrb[0].mxu0
        %v2754 = vadd.f32 %v2077, %v2753
        %v2755 = vpop.f32.mrb[0].mxu0
        %v2756 = vadd.f32 %v2081, %v2755
        %v2757 = vpop.f32.mrb[0].mxu0
        %v2758 = vadd.f32 %v2077, %v2757
        %v2759 = vpop.f32.mrb[0].mxu0
        %v2760 = vadd.f32 %v2081, %v2759
        %2761 = vmatprep.mubr.bf16.mxu0 %v2060
        %2762 = vmatmul.mubr.bf16.gmra.mrb[0].mxu0 %v2059
        %v2763 = vpop.f32.mrb[0].mxu0
        %v2764 = vadd.f32 %v2077, %v2763
        %v2765 = vpop.f32.mrb[0].mxu0
        %v2766 = vadd.f32 %v2081, %v2765
        %v2767 = vpop.f32.mrb[0].mxu0
        %v2768 = vadd.f32 %v2077, %v2767
        %v2769 = vpop.f32.mrb[0].mxu0
        %v2770 = vadd.f32 %v2081, %v2769
        %2771 = vmatprep.mubr.bf16.mxu0 %v2062
        %2772 = vmatmul.mubr.bf16.gmra.mrb[0].mxu0 %v2061
        %v2773 = vpop.f32.mrb[0].mxu0
        %v2774 = vadd.f32 %v2077, %v2773
        %v2775 = vpop.f32.mrb[0].mxu0
        %v2776 = vadd.f32 %v2081, %v2775
        %v2777 = vpop.f32.mrb[0].mxu0
        %v2778 = vadd.f32 %v2077, %v2777
        %v2779 = vpop.f32.mrb[0].mxu0
        %v2780 = vadd.f32 %v2081, %v2779
        %2781 = vmatprep.mubr.bf16.mxu0 %v2064
        %2782 = vmatmul.mubr.bf16.gmra.mrb[0].mxu0 %v2063
        %v2783 = vpop.f32.mrb[0].mxu0
        %v2784 = vadd.f32 %v2077, %v2783
        %v2785 = vpop.f32.mrb[0].mxu0
        %v2786 = vadd.f32 %v2081, %v2785
        %v2787 = vpop.f32.mrb[0].mxu0
        %v2788 = vadd.f32 %v2077, %v2787
        %v2789 = vpop.f32.mrb[0].mxu0
        %v2790 = vadd.f32 %v2081, %v2789
        %2791 = vdwg.mxu0
        %v2792 = vmax.f32 %v2441, 0.0
        %v2793 = vmax.f32 %v2443, 0.0
        %v2794 = vmax.f32 %v2634, 0.0
        %v2795 = vmax.f32 %v2636, 0.0
        %v2796 = vmax.f32 %v2445, 0.0
        %v2797 = vmax.f32 %v2447, 0.0
        %v2798 = vmax.f32 %v2638, 0.0
        %v2799 = vmax.f32 %v2640, 0.0
        %v2800 = vmax.f32 %v2451, 0.0
        %v2801 = vmax.f32 %v2453, 0.0
        %v2802 = vmax.f32 %v2644, 0.0
        %v2803 = vmax.f32 %v2646, 0.0
        %v2804 = vmax.f32 %v2455, 0.0
        %v2805 = vmax.f32 %v2457, 0.0
        %v2806 = vmax.f32 %v2648, 0.0
        %v2807 = vmax.f32 %v2650, 0.0
        %v2808 = vmax.f32 %v2461, 0.0
        %v2809 = vmax.f32 %v2463, 0.0
        %v2810 = vmax.f32 %v2654, 0.0
        %v2811 = vmax.f32 %v2656, 0.0
        %v2812 = vmax.f32 %v2465, 0.0
        %v2813 = vmax.f32 %v2467, 0.0
        %v2814 = vmax.f32 %v2658, 0.0
        %v2815 = vmax.f32 %v2660, 0.0
        %v2816 = vmax.f32 %v2471, 0.0
        %v2817 = vmax.f32 %v2473, 0.0
        %v2818 = vmax.f32 %v2664, 0.0
        %v2819 = vmax.f32 %v2666, 0.0
        %v2820 = vmax.f32 %v2475, 0.0
        %v2821 = vmax.f32 %v2477, 0.0
        %v2822 = vmax.f32 %v2668, 0.0
        %v2823 = vmax.f32 %v2670, 0.0
        %v2824 = vmax.f32 %v2481, 0.0
        %v2825 = vmax.f32 %v2483, 0.0
        %v2826 = vmax.f32 %v2674, 0.0
        %v2827 = vmax.f32 %v2676, 0.0
        %v2828 = vmax.f32 %v2485, 0.0
        %v2829 = vmax.f32 %v2487, 0.0
        %v2830 = vmax.f32 %v2678, 0.0
        %v2831 = vmax.f32 %v2680, 0.0
        %v2832 = vmax.f32 %v2491, 0.0
        %v2833 = vmax.f32 %v2493, 0.0
        %v2834 = vmax.f32 %v2684, 0.0
        %v2835 = vmax.f32 %v2686, 0.0
        %v2836 = vmax.f32 %v2495, 0.0
        %v2837 = vmax.f32 %v2497, 0.0
        %v2838 = vmax.f32 %v2688, 0.0
        %v2839 = vmax.f32 %v2690, 0.0
        %v2840 = vmax.f32 %v2501, 0.0
        %v2841 = vmax.f32 %v2503, 0.0
        %v2842 = vmax.f32 %v2694, 0.0
        %v2843 = vmax.f32 %v2696, 0.0
        %v2844 = vmax.f32 %v2505, 0.0
        %v2845 = vmax.f32 %v2507, 0.0
        %v2846 = vmax.f32 %v2698, 0.0
        %v2847 = vmax.f32 %v2700, 0.0
        %v2848 = vmax.f32 %v2511, 0.0
        %v2849 = vmax.f32 %v2513, 0.0
        %v2850 = vmax.f32 %v2704, 0.0
        %v2851 = vmax.f32 %v2706, 0.0
        %v2852 = vmax.f32 %v2515, 0.0
        %v2853 = vmax.f32 %v2517, 0.0
        %v2854 = vmax.f32 %v2708, 0.0
        %v2855 = vmax.f32 %v2710, 0.0
        %v2856 = vmax.f32 %v2521, 0.0
        %v2857 = vmax.f32 %v2523, 0.0
        %v2858 = vmax.f32 %v2714, 0.0
        %v2859 = vmax.f32 %v2716, 0.0
        %v2860 = vmax.f32 %v2525, 0.0
        %v2861 = vmax.f32 %v2527, 0.0
        %v2862 = vmax.f32 %v2718, 0.0
        %v2863 = vmax.f32 %v2720, 0.0
        %v2864 = vmax.f32 %v2531, 0.0
        %v2865 = vmax.f32 %v2533, 0.0
        %v2866 = vmax.f32 %v2724, 0.0
        %v2867 = vmax.f32 %v2726, 0.0
        %v2868 = vmax.f32 %v2535, 0.0
        %v2869 = vmax.f32 %v2537, 0.0
        %v2870 = vmax.f32 %v2728, 0.0
        %v2871 = vmax.f32 %v2730, 0.0
        %v2872 = vmax.f32 %v2541, 0.0
        %v2873 = vmax.f32 %v2543, 0.0
        %v2874 = vmax.f32 %v2734, 0.0
        %v2875 = vmax.f32 %v2736, 0.0
        %v2876 = vmax.f32 %v2545, 0.0
        %v2877 = vmax.f32 %v2547, 0.0
        %v2878 = vmax.f32 %v2738, 0.0
        %v2879 = vmax.f32 %v2740, 0.0
        %v2880 = vmax.f32 %v2551, 0.0
        %v2881 = vmax.f32 %v2553, 0.0
        %v2882 = vmax.f32 %v2744, 0.0
        %v2883 = vmax.f32 %v2746, 0.0
        %v2884 = vmax.f32 %v2555, 0.0
        %v2885 = vmax.f32 %v2557, 0.0
        %v2886 = vmax.f32 %v2748, 0.0
        %v2887 = vmax.f32 %v2750, 0.0
        %v2888 = vmax.f32 %v2561, 0.0
        %v2889 = vmax.f32 %v2563, 0.0
        %v2890 = vmax.f32 %v2754, 0.0
        %v2891 = vmax.f32 %v2756, 0.0
        %v2892 = vmax.f32 %v2565, 0.0
        %v2893 = vmax.f32 %v2567, 0.0
        %v2894 = vmax.f32 %v2758, 0.0
        %v2895 = vmax.f32 %v2760, 0.0
        %v2896 = vmax.f32 %v2571, 0.0
        %v2897 = vmax.f32 %v2573, 0.0
        %v2898 = vmax.f32 %v2764, 0.0
        %v2899 = vmax.f32 %v2766, 0.0
        %v2900 = vmax.f32 %v2575, 0.0
        %v2901 = vmax.f32 %v2577, 0.0
        %v2902 = vmax.f32 %v2768, 0.0
        %v2903 = vmax.f32 %v2770, 0.0
        %v2904 = vmax.f32 %v2581, 0.0
        %v2905 = vmax.f32 %v2583, 0.0
        %v2906 = vmax.f32 %v2774, 0.0
        %v2907 = vmax.f32 %v2776, 0.0
        %v2908 = vmax.f32 %v2585, 0.0
        %v2909 = vmax.f32 %v2587, 0.0
        %v2910 = vmax.f32 %v2778, 0.0
        %v2911 = vmax.f32 %v2780, 0.0
        %v2912 = vmax.f32 %v2591, 0.0
        %v2913 = vmax.f32 %v2593, 0.0
        %v2914 = vmax.f32 %v2784, 0.0
        %v2915 = vmax.f32 %v2786, 0.0
        %v2916 = vmax.f32 %v2595, 0.0
        %v2917 = vmax.f32 %v2597, 0.0
        %v2918 = vmax.f32 %v2788, 0.0
        %v2919 = vmax.f32 %v2790, 0.0
        %v2920 = vld [vmem:[#allocation5] sm:$0xff]
        %v2921 = vld [vmem:[#allocation5 + $0x8] sm:$0xff]
        %v2922 = vld [vmem:[#allocation5 + $0x10] sm:$0xff]
        %v2923 = vld [vmem:[#allocation5 + $0x18] sm:$0xff]
        %v2924 = vld [vmem:[#allocation5 + $0x20] sm:$0xff]
        %v2925 = vld [vmem:[#allocation5 + $0x28] sm:$0xff]
        %v2926 = vld [vmem:[#allocation5 + $0x30] sm:$0xff]
        %v2927 = vld [vmem:[#allocation5 + $0x38] sm:$0xff]
        %v2928 = vld [vmem:[#allocation5 + $0x40] sm:$0xff]
        %v2929 = vld [vmem:[#allocation5 + $0x48] sm:$0xff]
        %v2930 = vld [vmem:[#allocation5 + $0x50] sm:$0xff]
        %v2931 = vld [vmem:[#allocation5 + $0x58] sm:$0xff]
        %v2932 = vld [vmem:[#allocation5 + $0x60] sm:$0xff]
        %v2933 = vld [vmem:[#allocation5 + $0x68] sm:$0xff]
        %v2934 = vld [vmem:[#allocation5 + $0x70] sm:$0xff]
        %v2935 = vld [vmem:[#allocation5 + $0x78] sm:$0xff]
        %v2936 = vld [vmem:[#allocation5 + $0x80] sm:$0xff]
        %v2937 = vld [vmem:[#allocation5 + $0x88] sm:$0xff]
        %v2938 = vld [vmem:[#allocation5 + $0x90] sm:$0xff]
        %v2939 = vld [vmem:[#allocation5 + $0x98] sm:$0xff]
        %v2940 = vld [vmem:[#allocation5 + $0xa0] sm:$0xff]
        %v2941 = vld [vmem:[#allocation5 + $0xa8] sm:$0xff]
        %v2942 = vld [vmem:[#allocation5 + $0xb0] sm:$0xff]
        %v2943 = vld [vmem:[#allocation5 + $0xb8] sm:$0xff]
        %v2944 = vld [vmem:[#allocation5 + $0xc0] sm:$0xff]
        %v2945 = vld [vmem:[#allocation5 + $0xc8] sm:$0xff]
        %v2946 = vld [vmem:[#allocation5 + $0xd0] sm:$0xff]
        %v2947 = vld [vmem:[#allocation5 + $0xd8] sm:$0xff]
        %v2948 = vld [vmem:[#allocation5 + $0xe0] sm:$0xff]
        %v2949 = vld [vmem:[#allocation5 + $0xe8] sm:$0xff]
        %v2950 = vld [vmem:[#allocation5 + $0xf0] sm:$0xff]
        %v2951 = vld [vmem:[#allocation5 + $0xf8] sm:$0xff]
        %v2952 = vld [vmem:[#allocation5 + $0x100] sm:$0xff]
        %v2953 = vld [vmem:[#allocation5 + $0x108] sm:$0xff]
        %v2954 = vld [vmem:[#allocation5 + $0x110] sm:$0xff]
        %v2955 = vld [vmem:[#allocation5 + $0x118] sm:$0xff]
        %v2956 = vld [vmem:[#allocation5 + $0x120] sm:$0xff]
        %v2957 = vld [vmem:[#allocation5 + $0x128] sm:$0xff]
        %v2958 = vld [vmem:[#allocation5 + $0x130] sm:$0xff]
        %v2959 = vld [vmem:[#allocation5 + $0x138] sm:$0xff]
        %v2960 = vld [vmem:[#allocation5 + $0x140] sm:$0xff]
        %v2961 = vld [vmem:[#allocation5 + $0x148] sm:$0xff]
        %v2962 = vld [vmem:[#allocation5 + $0x150] sm:$0xff]
        %v2963 = vld [vmem:[#allocation5 + $0x158] sm:$0xff]
        %v2964 = vld [vmem:[#allocation5 + $0x160] sm:$0xff]
        %v2965 = vld [vmem:[#allocation5 + $0x168] sm:$0xff]
        %v2966 = vld [vmem:[#allocation5 + $0x170] sm:$0xff]
        %v2967 = vld [vmem:[#allocation5 + $0x178] sm:$0xff]
        %v2968 = vld [vmem:[#allocation5 + $0x180] sm:$0xff]
        %v2969 = vld [vmem:[#allocation5 + $0x188] sm:$0xff]
        %v2970 = vld [vmem:[#allocation5 + $0x190] sm:$0xff]
        %v2971 = vld [vmem:[#allocation5 + $0x198] sm:$0xff]
        %v2972 = vld [vmem:[#allocation5 + $0x1a0] sm:$0xff]
        %v2973 = vld [vmem:[#allocation5 + $0x1a8] sm:$0xff]
        %v2974 = vld [vmem:[#allocation5 + $0x1b0] sm:$0xff]
        %v2975 = vld [vmem:[#allocation5 + $0x1b8] sm:$0xff]
        %v2976 = vld [vmem:[#allocation5 + $0x1c0] sm:$0xff]
        %v2977 = vld [vmem:[#allocation5 + $0x1c8] sm:$0xff]
        %v2978 = vld [vmem:[#allocation5 + $0x1d0] sm:$0xff]
        %v2979 = vld [vmem:[#allocation5 + $0x1d8] sm:$0xff]
        %v2980 = vld [vmem:[#allocation5 + $0x1e0] sm:$0xff]
        %v2981 = vld [vmem:[#allocation5 + $0x1e8] sm:$0xff]
        %v2982 = vld [vmem:[#allocation5 + $0x1f0] sm:$0xff]
        %v2983 = vld [vmem:[#allocation5 + $0x1f8] sm:$0xff]
        %v2984 = vld [vmem:[%s12] sm:$0x3]
        %v2985 = vpack.c.bf16 %v2796, %v2792
        %v2986 = vpack.c.bf16 %v2797, %v2793
        %v2987 = vpack.c.bf16 %v2798, %v2794
        %v2988 = vpack.c.bf16 %v2799, %v2795
        %v2989 = vpack.c.bf16 %v2804, %v2800
        %v2990 = vpack.c.bf16 %v2805, %v2801
        %v2991 = vpack.c.bf16 %v2806, %v2802
        %v2992 = vpack.c.bf16 %v2807, %v2803
        %v2993 = vpack.c.bf16 %v2812, %v2808
        %v2994 = vpack.c.bf16 %v2813, %v2809
        %v2995 = vpack.c.bf16 %v2814, %v2810
        %v2996 = vpack.c.bf16 %v2815, %v2811
        %v2997 = vpack.c.bf16 %v2820, %v2816
        %v2998 = vpack.c.bf16 %v2821, %v2817
        %v2999 = vpack.c.bf16 %v2822, %v2818
        %v3000 = vpack.c.bf16 %v2823, %v2819
        %v3001 = vpack.c.bf16 %v2828, %v2824
        %v3002 = vpack.c.bf16 %v2829, %v2825
        %v3003 = vpack.c.bf16 %v2830, %v2826
        %v3004 = vpack.c.bf16 %v2831, %v2827
        %v3005 = vpack.c.bf16 %v2836, %v2832
        %v3006 = vpack.c.bf16 %v2837, %v2833
        %v3007 = vpack.c.bf16 %v2838, %v2834
        %v3008 = vpack.c.bf16 %v2839, %v2835
        %v3009 = vpack.c.bf16 %v2844, %v2840
        %v3010 = vpack.c.bf16 %v2845, %v2841
        %v3011 = vpack.c.bf16 %v2846, %v2842
        %v3012 = vpack.c.bf16 %v2847, %v2843
        %v3013 = vpack.c.bf16 %v2852, %v2848
        %v3014 = vpack.c.bf16 %v2853, %v2849
        %v3015 = vpack.c.bf16 %v2854, %v2850
        %v3016 = vpack.c.bf16 %v2855, %v2851
        %v3017 = vpack.c.bf16 %v2860, %v2856
        %v3018 = vpack.c.bf16 %v2861, %v2857
        %v3019 = vpack.c.bf16 %v2862, %v2858
        %v3020 = vpack.c.bf16 %v2863, %v2859
        %v3021 = vpack.c.bf16 %v2868, %v2864
        %v3022 = vpack.c.bf16 %v2869, %v2865
        %v3023 = vpack.c.bf16 %v2870, %v2866
        %v3024 = vpack.c.bf16 %v2871, %v2867
        %v3025 = vpack.c.bf16 %v2876, %v2872
        %v3026 = vpack.c.bf16 %v2877, %v2873
        %v3027 = vpack.c.bf16 %v2878, %v2874
        %v3028 = vpack.c.bf16 %v2879, %v2875
        %v3029 = vpack.c.bf16 %v2884, %v2880
        %v3030 = vpack.c.bf16 %v2885, %v2881
        %v3031 = vpack.c.bf16 %v2886, %v2882
        %v3032 = vpack.c.bf16 %v2887, %v2883
        %v3033 = vpack.c.bf16 %v2892, %v2888
        %v3034 = vpack.c.bf16 %v2893, %v2889
        %v3035 = vpack.c.bf16 %v2894, %v2890
        %v3036 = vpack.c.bf16 %v2895, %v2891
        %v3037 = vpack.c.bf16 %v2900, %v2896
        %v3038 = vpack.c.bf16 %v2901, %v2897
        %v3039 = vpack.c.bf16 %v2902, %v2898
        %v3040 = vpack.c.bf16 %v2903, %v2899
        %v3041 = vpack.c.bf16 %v2908, %v2904
        %v3042 = vpack.c.bf16 %v2909, %v2905
        %v3043 = vpack.c.bf16 %v2910, %v2906
        %v3044 = vpack.c.bf16 %v2911, %v2907
        %v3045 = vpack.c.bf16 %v2916, %v2912
        %v3046 = vpack.c.bf16 %v2917, %v2913
        %v3047 = vpack.c.bf16 %v2918, %v2914
        %v3048 = vpack.c.bf16 %v2919, %v2915
        %v3050 = vlaneseq
        %v3051 = vshrl.u32 %v3050, 7
        %v3052 = vsub.s32 0, %v3051
        %v3053 = vrot.slane %v2984, %v3052
        %v3054 = vlaneseq
        %v3055 = vshrl.u32 %v3054, 7
        %v3056 = vsub.s32 1, %v3055
        %v3057 = vrot.slane %v2984, %v3056
        %v3124 = vunpack.c.l.b16 %v2920
        %v3125 = vunpack.c.h.b16 %v2920
        %v3126 = vunpack.c.l.b16 %v2921
        %v3127 = vunpack.c.h.b16 %v2921
        %v3128 = vunpack.c.l.b16 %v2922
        %v3129 = vunpack.c.h.b16 %v2922
        %v3130 = vunpack.c.l.b16 %v2923
        %v3131 = vunpack.c.h.b16 %v2923
        %v3132 = vunpack.c.l.b16 %v2924
        %v3133 = vunpack.c.h.b16 %v2924
        %v3134 = vunpack.c.l.b16 %v2925
        %v3135 = vunpack.c.h.b16 %v2925
        %v3136 = vunpack.c.l.b16 %v2926
        %v3137 = vunpack.c.h.b16 %v2926
        %v3138 = vunpack.c.l.b16 %v2927
        %v3139 = vunpack.c.h.b16 %v2927
        %v3140 = vunpack.c.l.b16 %v2928
        %v3141 = vunpack.c.h.b16 %v2928
        %v3142 = vunpack.c.l.b16 %v2929
        %v3143 = vunpack.c.h.b16 %v2929
        %v3144 = vunpack.c.l.b16 %v2930
        %v3145 = vunpack.c.h.b16 %v2930
        %v3146 = vunpack.c.l.b16 %v2931
        %v3147 = vunpack.c.h.b16 %v2931
        %v3148 = vunpack.c.l.b16 %v2932
        %v3149 = vunpack.c.h.b16 %v2932
        %v3150 = vunpack.c.l.b16 %v2933
        %v3151 = vunpack.c.h.b16 %v2933
        %v3152 = vunpack.c.l.b16 %v2934
        %v3153 = vunpack.c.h.b16 %v2934
        %v3154 = vunpack.c.l.b16 %v2935
        %v3155 = vunpack.c.h.b16 %v2935
        %v3156 = vunpack.c.l.b16 %v2936
        %v3157 = vunpack.c.h.b16 %v2936
        %v3158 = vunpack.c.l.b16 %v2937
        %v3159 = vunpack.c.h.b16 %v2937
        %v3160 = vunpack.c.l.b16 %v2938
        %v3161 = vunpack.c.h.b16 %v2938
        %v3162 = vunpack.c.l.b16 %v2939
        %v3163 = vunpack.c.h.b16 %v2939
        %v3164 = vunpack.c.l.b16 %v2940
        %v3165 = vunpack.c.h.b16 %v2940
        %v3166 = vunpack.c.l.b16 %v2941
        %v3167 = vunpack.c.h.b16 %v2941
        %v3168 = vunpack.c.l.b16 %v2942
        %v3169 = vunpack.c.h.b16 %v2942
        %v3170 = vunpack.c.l.b16 %v2943
        %v3171 = vunpack.c.h.b16 %v2943
        %v3172 = vunpack.c.l.b16 %v2944
        %v3173 = vunpack.c.h.b16 %v2944
        %v3174 = vunpack.c.l.b16 %v2945
        %v3175 = vunpack.c.h.b16 %v2945
        %v3176 = vunpack.c.l.b16 %v2946
        %v3177 = vunpack.c.h.b16 %v2946
        %v3178 = vunpack.c.l.b16 %v2947
        %v3179 = vunpack.c.h.b16 %v2947
        %v3180 = vunpack.c.l.b16 %v2948
        %v3181 = vunpack.c.h.b16 %v2948
        %v3182 = vunpack.c.l.b16 %v2949
        %v3183 = vunpack.c.h.b16 %v2949
        %v3184 = vunpack.c.l.b16 %v2950
        %v3185 = vunpack.c.h.b16 %v2950
        %v3186 = vunpack.c.l.b16 %v2951
        %v3187 = vunpack.c.h.b16 %v2951
        %v3188 = vunpack.c.l.b16 %v2952
        %v3189 = vunpack.c.h.b16 %v2952
        %v3190 = vunpack.c.l.b16 %v2953
        %v3191 = vunpack.c.h.b16 %v2953
        %v3192 = vunpack.c.l.b16 %v2954
        %v3193 = vunpack.c.h.b16 %v2954
        %v3194 = vunpack.c.l.b16 %v2955
        %v3195 = vunpack.c.h.b16 %v2955
        %v3196 = vunpack.c.l.b16 %v2956
        %v3197 = vunpack.c.h.b16 %v2956
        %v3198 = vunpack.c.l.b16 %v2957
        %v3199 = vunpack.c.h.b16 %v2957
        %v3200 = vunpack.c.l.b16 %v2958
        %v3201 = vunpack.c.h.b16 %v2958
        %v3202 = vunpack.c.l.b16 %v2959
        %v3203 = vunpack.c.h.b16 %v2959
        %v3204 = vunpack.c.l.b16 %v2960
        %v3205 = vunpack.c.h.b16 %v2960
        %v3206 = vunpack.c.l.b16 %v2961
        %v3207 = vunpack.c.h.b16 %v2961
        %v3208 = vunpack.c.l.b16 %v2962
        %v3209 = vunpack.c.h.b16 %v2962
        %v3210 = vunpack.c.l.b16 %v2963
        %v3211 = vunpack.c.h.b16 %v2963
        %v3212 = vunpack.c.l.b16 %v2964
        %v3213 = vunpack.c.h.b16 %v2964
        %v3214 = vunpack.c.l.b16 %v2965
        %v3215 = vunpack.c.h.b16 %v2965
        %v3216 = vunpack.c.l.b16 %v2966
        %v3217 = vunpack.c.h.b16 %v2966
        %v3218 = vunpack.c.l.b16 %v2967
        %v3219 = vunpack.c.h.b16 %v2967
        %v3220 = vunpack.c.l.b16 %v2968
        %v3221 = vunpack.c.h.b16 %v2968
        %v3222 = vunpack.c.l.b16 %v2969
        %v3223 = vunpack.c.h.b16 %v2969
        %v3224 = vunpack.c.l.b16 %v2970
        %v3225 = vunpack.c.h.b16 %v2970
        %v3226 = vunpack.c.l.b16 %v2971
        %v3227 = vunpack.c.h.b16 %v2971
        %v3228 = vunpack.c.l.b16 %v2972
        %v3229 = vunpack.c.h.b16 %v2972
        %v3230 = vunpack.c.l.b16 %v2973
        %v3231 = vunpack.c.h.b16 %v2973
        %v3232 = vunpack.c.l.b16 %v2974
        %v3233 = vunpack.c.h.b16 %v2974
        %v3234 = vunpack.c.l.b16 %v2975
        %v3235 = vunpack.c.h.b16 %v2975
        %v3236 = vunpack.c.l.b16 %v2976
        %v3237 = vunpack.c.h.b16 %v2976
        %v3238 = vunpack.c.l.b16 %v2977
        %v3239 = vunpack.c.h.b16 %v2977
        %v3240 = vunpack.c.l.b16 %v2978
        %v3241 = vunpack.c.h.b16 %v2978
        %v3242 = vunpack.c.l.b16 %v2979
        %v3243 = vunpack.c.h.b16 %v2979
        %v3244 = vunpack.c.l.b16 %v2980
        %v3245 = vunpack.c.h.b16 %v2980
        %v3246 = vunpack.c.l.b16 %v2981
        %v3247 = vunpack.c.h.b16 %v2981
        %v3248 = vunpack.c.l.b16 %v2982
        %v3249 = vunpack.c.h.b16 %v2982
        %v3250 = vunpack.c.l.b16 %v2983
        %v3251 = vunpack.c.h.b16 %v2983
        %v3252 = vpack.c.b16 %v3126, %v3124
        %v3253 = vpack.c.b16 %v3127, %v3125
        %v3254 = vpack.c.b16 %v3130, %v3128
        %v3255 = vpack.c.b16 %v3131, %v3129
        %v3256 = vpack.c.b16 %v3134, %v3132
        %v3257 = vpack.c.b16 %v3135, %v3133
        %v3258 = vpack.c.b16 %v3138, %v3136
        %v3259 = vpack.c.b16 %v3139, %v3137
        %v3260 = vpack.c.b16 %v3142, %v3140
        %v3261 = vpack.c.b16 %v3143, %v3141
        %v3262 = vpack.c.b16 %v3146, %v3144
        %v3263 = vpack.c.b16 %v3147, %v3145
        %v3264 = vpack.c.b16 %v3150, %v3148
        %v3265 = vpack.c.b16 %v3151, %v3149
        %v3266 = vpack.c.b16 %v3154, %v3152
        %v3267 = vpack.c.b16 %v3155, %v3153
        %v3268 = vpack.c.b16 %v3158, %v3156
        %v3269 = vpack.c.b16 %v3159, %v3157
        %v3270 = vpack.c.b16 %v3162, %v3160
        %v3271 = vpack.c.b16 %v3163, %v3161
        %v3272 = vpack.c.b16 %v3166, %v3164
        %v3273 = vpack.c.b16 %v3167, %v3165
        %v3274 = vpack.c.b16 %v3170, %v3168
        %v3275 = vpack.c.b16 %v3171, %v3169
        %v3276 = vpack.c.b16 %v3174, %v3172
        %v3277 = vpack.c.b16 %v3175, %v3173
        %v3278 = vpack.c.b16 %v3178, %v3176
        %v3279 = vpack.c.b16 %v3179, %v3177
        %v3280 = vpack.c.b16 %v3182, %v3180
        %v3281 = vpack.c.b16 %v3183, %v3181
        %v3282 = vpack.c.b16 %v3186, %v3184
        %v3283 = vpack.c.b16 %v3187, %v3185
        %v3284 = vpack.c.b16 %v3190, %v3188
        %v3285 = vpack.c.b16 %v3191, %v3189
        %v3286 = vpack.c.b16 %v3194, %v3192
        %v3287 = vpack.c.b16 %v3195, %v3193
        %v3288 = vpack.c.b16 %v3198, %v3196
        %v3289 = vpack.c.b16 %v3199, %v3197
        %v3290 = vpack.c.b16 %v3202, %v3200
        %v3291 = vpack.c.b16 %v3203, %v3201
        %v3292 = vpack.c.b16 %v3206, %v3204
        %v3293 = vpack.c.b16 %v3207, %v3205
        %v3294 = vpack.c.b16 %v3210, %v3208
        %v3295 = vpack.c.b16 %v3211, %v3209
        %v3296 = vpack.c.b16 %v3214, %v3212
        %v3297 = vpack.c.b16 %v3215, %v3213
        %v3298 = vpack.c.b16 %v3218, %v3216
        %v3299 = vpack.c.b16 %v3219, %v3217
        %v3300 = vpack.c.b16 %v3222, %v3220
        %v3301 = vpack.c.b16 %v3223, %v3221
        %v3302 = vpack.c.b16 %v3226, %v3224
        %v3303 = vpack.c.b16 %v3227, %v3225
        %v3304 = vpack.c.b16 %v3230, %v3228
        %v3305 = vpack.c.b16 %v3231, %v3229
        %v3306 = vpack.c.b16 %v3234, %v3232
        %v3307 = vpack.c.b16 %v3235, %v3233
        %v3308 = vpack.c.b16 %v3238, %v3236
        %v3309 = vpack.c.b16 %v3239, %v3237
        %v3310 = vpack.c.b16 %v3242, %v3240
        %v3311 = vpack.c.b16 %v3243, %v3241
        %v3312 = vpack.c.b16 %v3246, %v3244
        %v3313 = vpack.c.b16 %v3247, %v3245
        %v3314 = vpack.c.b16 %v3250, %v3248
        %v3315 = vpack.c.b16 %v3251, %v3249
        %3380 = vmatprep.subr.bf16.mxu0 %v3253
        %3381 = vmatpush1.bf16.msra.mxu0 %v3252
        %3382 = vmatprep.subr.bf16.mxu0 %v3255
        %3383 = vmatpush1.bf16.msra.mxu0 %v3254
        %3384 = vmatprep.subr.bf16.mxu0 %v3257
        %3385 = vmatpush1.bf16.msra.mxu0 %v3256
        %3386 = vmatprep.subr.bf16.mxu0 %v3259
        %3387 = vmatpush1.bf16.msra.mxu0 %v3258
        %3388 = vmatprep.subr.bf16.mxu0 %v3261
        %3389 = vmatpush1.bf16.msra.mxu0 %v3260
        %3390 = vmatprep.subr.bf16.mxu0 %v3263
        %3391 = vmatpush1.bf16.msra.mxu0 %v3262
        %3392 = vmatprep.subr.bf16.mxu0 %v3265
        %3393 = vmatpush1.bf16.msra.mxu0 %v3264
        %3394 = vmatprep.subr.bf16.mxu0 %v3267
        %3395 = vmatpush1.bf16.msra.mxu0 %v3266
        %3396 = vmatprep.subr.bf16.mxu0 %v3269
        %3397 = vmatpush1.bf16.msra.mxu0 %v3268
        %3398 = vmatprep.subr.bf16.mxu0 %v3271
        %3399 = vmatpush1.bf16.msra.mxu0 %v3270
        %3400 = vmatprep.subr.bf16.mxu0 %v3273
        %3401 = vmatpush1.bf16.msra.mxu0 %v3272
        %3402 = vmatprep.subr.bf16.mxu0 %v3275
        %3403 = vmatpush1.bf16.msra.mxu0 %v3274
        %3404 = vmatprep.subr.bf16.mxu0 %v3277
        %3405 = vmatpush1.bf16.msra.mxu0 %v3276
        %3406 = vmatprep.subr.bf16.mxu0 %v3279
        %3407 = vmatpush1.bf16.msra.mxu0 %v3278
        %3408 = vmatprep.subr.bf16.mxu0 %v3281
        %3409 = vmatpush1.bf16.msra.mxu0 %v3280
        %3410 = vmatprep.subr.bf16.mxu0 %v3283
        %3411 = vmatpush1.bf16.msra.mxu0 %v3282
        %3412 = vmatprep.mubr.bf16.mxu0 %v2986
        %3413 = vmatmul.mubr.bf16.gmra.mrb[0].mxu0 %v2985
        %v3414 = vpop.f32.mrb[0].mxu0
        %v3415 = vadd.f32 %v3053, %v3414
        %v3416 = vpop.f32.mrb[0].mxu0
        %v3417 = vadd.f32 %v3057, %v3416
        %v3418 = vpop.f32.mrb[0].mxu0
        %v3419 = vadd.f32 %v3053, %v3418
        %v3420 = vpop.f32.mrb[0].mxu0
        %v3421 = vadd.f32 %v3057, %v3420
        %3422 = vmatprep.mubr.bf16.mxu0 %v2990
        %3423 = vmatmul.mubr.bf16.gmra.mrb[0].mxu0 %v2989
        %v3424 = vpop.f32.mrb[0].mxu0
        %v3425 = vadd.f32 %v3053, %v3424
        %v3426 = vpop.f32.mrb[0].mxu0
        %v3427 = vadd.f32 %v3057, %v3426
        %v3428 = vpop.f32.mrb[0].mxu0
        %v3429 = vadd.f32 %v3053, %v3428
        %v3430 = vpop.f32.mrb[0].mxu0
        %v3431 = vadd.f32 %v3057, %v3430
        %3432 = vmatprep.mubr.bf16.mxu0 %v2994
        %3433 = vmatmul.mubr.bf16.gmra.mrb[0].mxu0 %v2993
        %v3434 = vpop.f32.mrb[0].mxu0
        %v3435 = vadd.f32 %v3053, %v3434
        %v3436 = vpop.f32.mrb[0].mxu0
        %v3437 = vadd.f32 %v3057, %v3436
        %v3438 = vpop.f32.mrb[0].mxu0
        %v3439 = vadd.f32 %v3053, %v3438
        %v3440 = vpop.f32.mrb[0].mxu0
        %v3441 = vadd.f32 %v3057, %v3440
        %3442 = vmatprep.mubr.bf16.mxu0 %v2998
        %3443 = vmatmul.mubr.bf16.gmra.mrb[0].mxu0 %v2997
        %v3444 = vpop.f32.mrb[0].mxu0
        %v3445 = vadd.f32 %v3053, %v3444
        %v3446 = vpop.f32.mrb[0].mxu0
        %v3447 = vadd.f32 %v3057, %v3446
        %v3448 = vpop.f32.mrb[0].mxu0
        %v3449 = vadd.f32 %v3053, %v3448
        %v3450 = vpop.f32.mrb[0].mxu0
        %v3451 = vadd.f32 %v3057, %v3450
        %3452 = vmatprep.mubr.bf16.mxu0 %v3002
        %3453 = vmatmul.mubr.bf16.gmra.mrb[0].mxu0 %v3001
        %v3454 = vpop.f32.mrb[0].mxu0
        %v3455 = vadd.f32 %v3053, %v3454
        %v3456 = vpop.f32.mrb[0].mxu0
        %v3457 = vadd.f32 %v3057, %v3456
        %v3458 = vpop.f32.mrb[0].mxu0
        %v3459 = vadd.f32 %v3053, %v3458
        %v3460 = vpop.f32.mrb[0].mxu0
        %v3461 = vadd.f32 %v3057, %v3460
        %3462 = vmatprep.mubr.bf16.mxu0 %v3006
        %3463 = vmatmul.mubr.bf16.gmra.mrb[0].mxu0 %v3005
        %v3464 = vpop.f32.mrb[0].mxu0
        %v3465 = vadd.f32 %v3053, %v3464
        %v3466 = vpop.f32.mrb[0].mxu0
        %v3467 = vadd.f32 %v3057, %v3466
        %v3468 = vpop.f32.mrb[0].mxu0
        %v3469 = vadd.f32 %v3053, %v3468
        %v3470 = vpop.f32.mrb[0].mxu0
        %v3471 = vadd.f32 %v3057, %v3470
        %3472 = vmatprep.mubr.bf16.mxu0 %v3010
        %3473 = vmatmul.mubr.bf16.gmra.mrb[0].mxu0 %v3009
        %v3474 = vpop.f32.mrb[0].mxu0
        %v3475 = vadd.f32 %v3053, %v3474
        %v3476 = vpop.f32.mrb[0].mxu0
        %v3477 = vadd.f32 %v3057, %v3476
        %v3478 = vpop.f32.mrb[0].mxu0
        %v3479 = vadd.f32 %v3053, %v3478
        %v3480 = vpop.f32.mrb[0].mxu0
        %v3481 = vadd.f32 %v3057, %v3480
        %3482 = vmatprep.mubr.bf16.mxu0 %v3014
        %3483 = vmatmul.mubr.bf16.gmra.mrb[0].mxu0 %v3013
        %v3484 = vpop.f32.mrb[0].mxu0
        %v3485 = vadd.f32 %v3053, %v3484
        %v3486 = vpop.f32.mrb[0].mxu0
        %v3487 = vadd.f32 %v3057, %v3486
        %v3488 = vpop.f32.mrb[0].mxu0
        %v3489 = vadd.f32 %v3053, %v3488
        %v3490 = vpop.f32.mrb[0].mxu0
        %v3491 = vadd.f32 %v3057, %v3490
        %3492 = vmatprep.mubr.bf16.mxu0 %v3018
        %3493 = vmatmul.mubr.bf16.gmra.mrb[0].mxu0 %v3017
        %v3494 = vpop.f32.mrb[0].mxu0
        %v3495 = vadd.f32 %v3053, %v3494
        %v3496 = vpop.f32.mrb[0].mxu0
        %v3497 = vadd.f32 %v3057, %v3496
        %v3498 = vpop.f32.mrb[0].mxu0
        %v3499 = vadd.f32 %v3053, %v3498
        %v3500 = vpop.f32.mrb[0].mxu0
        %v3501 = vadd.f32 %v3057, %v3500
        %3502 = vmatprep.mubr.bf16.mxu0 %v3022
        %3503 = vmatmul.mubr.bf16.gmra.mrb[0].mxu0 %v3021
        %v3504 = vpop.f32.mrb[0].mxu0
        %v3505 = vadd.f32 %v3053, %v3504
        %v3506 = vpop.f32.mrb[0].mxu0
        %v3507 = vadd.f32 %v3057, %v3506
        %v3508 = vpop.f32.mrb[0].mxu0
        %v3509 = vadd.f32 %v3053, %v3508
        %v3510 = vpop.f32.mrb[0].mxu0
        %v3511 = vadd.f32 %v3057, %v3510
        %3512 = vmatprep.mubr.bf16.mxu0 %v3026
        %3513 = vmatmul.mubr.bf16.gmra.mrb[0].mxu0 %v3025
        %v3514 = vpop.f32.mrb[0].mxu0
        %v3515 = vadd.f32 %v3053, %v3514
        %v3516 = vpop.f32.mrb[0].mxu0
        %v3517 = vadd.f32 %v3057, %v3516
        %v3518 = vpop.f32.mrb[0].mxu0
        %v3519 = vadd.f32 %v3053, %v3518
        %v3520 = vpop.f32.mrb[0].mxu0
        %v3521 = vadd.f32 %v3057, %v3520
        %3522 = vmatprep.mubr.bf16.mxu0 %v3030
        %3523 = vmatmul.mubr.bf16.gmra.mrb[0].mxu0 %v3029
        %v3524 = vpop.f32.mrb[0].mxu0
        %v3525 = vadd.f32 %v3053, %v3524
        %v3526 = vpop.f32.mrb[0].mxu0
        %v3527 = vadd.f32 %v3057, %v3526
        %v3528 = vpop.f32.mrb[0].mxu0
        %v3529 = vadd.f32 %v3053, %v3528
        %v3530 = vpop.f32.mrb[0].mxu0
        %v3531 = vadd.f32 %v3057, %v3530
        %3532 = vmatprep.mubr.bf16.mxu0 %v3034
        %3533 = vmatmul.mubr.bf16.gmra.mrb[0].mxu0 %v3033
        %v3534 = vpop.f32.mrb[0].mxu0
        %v3535 = vadd.f32 %v3053, %v3534
        %v3536 = vpop.f32.mrb[0].mxu0
        %v3537 = vadd.f32 %v3057, %v3536
        %v3538 = vpop.f32.mrb[0].mxu0
        %v3539 = vadd.f32 %v3053, %v3538
        %v3540 = vpop.f32.mrb[0].mxu0
        %v3541 = vadd.f32 %v3057, %v3540
        %3542 = vmatprep.mubr.bf16.mxu0 %v3038
        %3543 = vmatmul.mubr.bf16.gmra.mrb[0].mxu0 %v3037
        %v3544 = vpop.f32.mrb[0].mxu0
        %v3545 = vadd.f32 %v3053, %v3544
        %v3546 = vpop.f32.mrb[0].mxu0
        %v3547 = vadd.f32 %v3057, %v3546
        %v3548 = vpop.f32.mrb[0].mxu0
        %v3549 = vadd.f32 %v3053, %v3548
        %v3550 = vpop.f32.mrb[0].mxu0
        %v3551 = vadd.f32 %v3057, %v3550
        %3552 = vmatprep.mubr.bf16.mxu0 %v3042
        %3553 = vmatmul.mubr.bf16.gmra.mrb[0].mxu0 %v3041
        %v3554 = vpop.f32.mrb[0].mxu0
        %v3555 = vadd.f32 %v3053, %v3554
        %v3556 = vpop.f32.mrb[0].mxu0
        %v3557 = vadd.f32 %v3057, %v3556
        %v3558 = vpop.f32.mrb[0].mxu0
        %v3559 = vadd.f32 %v3053, %v3558
        %v3560 = vpop.f32.mrb[0].mxu0
        %v3561 = vadd.f32 %v3057, %v3560
        %3562 = vmatprep.mubr.bf16.mxu0 %v3046
        %3563 = vmatmul.mubr.bf16.gmra.mrb[0].mxu0 %v3045
        %v3564 = vpop.f32.mrb[0].mxu0
        %v3565 = vadd.f32 %v3053, %v3564
        %v3566 = vpop.f32.mrb[0].mxu0
        %v3567 = vadd.f32 %v3057, %v3566
        %v3568 = vpop.f32.mrb[0].mxu0
        %v3569 = vadd.f32 %v3053, %v3568
        %v3570 = vpop.f32.mrb[0].mxu0
        %v3571 = vadd.f32 %v3057, %v3570
        %3572 = vdwg.mxu0
        %3573 = vmatprep.subr.bf16.mxu0 %v3285
        %3574 = vmatpush1.bf16.msra.mxu0 %v3284
        %3575 = vmatprep.subr.bf16.mxu0 %v3287
        %3576 = vmatpush1.bf16.msra.mxu0 %v3286
        %3577 = vmatprep.subr.bf16.mxu0 %v3289
        %3578 = vmatpush1.bf16.msra.mxu0 %v3288
        %3579 = vmatprep.subr.bf16.mxu0 %v3291
        %3580 = vmatpush1.bf16.msra.mxu0 %v3290
        %3581 = vmatprep.subr.bf16.mxu0 %v3293
        %3582 = vmatpush1.bf16.msra.mxu0 %v3292
        %3583 = vmatprep.subr.bf16.mxu0 %v3295
        %3584 = vmatpush1.bf16.msra.mxu0 %v3294
        %3585 = vmatprep.subr.bf16.mxu0 %v3297
        %3586 = vmatpush1.bf16.msra.mxu0 %v3296
        %3587 = vmatprep.subr.bf16.mxu0 %v3299
        %3588 = vmatpush1.bf16.msra.mxu0 %v3298
        %3589 = vmatprep.subr.bf16.mxu0 %v3301
        %3590 = vmatpush1.bf16.msra.mxu0 %v3300
        %3591 = vmatprep.subr.bf16.mxu0 %v3303
        %3592 = vmatpush1.bf16.msra.mxu0 %v3302
        %3593 = vmatprep.subr.bf16.mxu0 %v3305
        %3594 = vmatpush1.bf16.msra.mxu0 %v3304
        %3595 = vmatprep.subr.bf16.mxu0 %v3307
        %3596 = vmatpush1.bf16.msra.mxu0 %v3306
        %3597 = vmatprep.subr.bf16.mxu0 %v3309
        %3598 = vmatpush1.bf16.msra.mxu0 %v3308
        %3599 = vmatprep.subr.bf16.mxu0 %v3311
        %3600 = vmatpush1.bf16.msra.mxu0 %v3310
        %3601 = vmatprep.subr.bf16.mxu0 %v3313
        %3602 = vmatpush1.bf16.msra.mxu0 %v3312
        %3603 = vmatprep.subr.bf16.mxu0 %v3315
        %3604 = vmatpush1.bf16.msra.mxu0 %v3314
        %3605 = vmatprep.mubr.bf16.mxu0 %v2988
        %3606 = vmatmul.mubr.bf16.gmra.mrb[0].mxu0 %v2987
        %v3607 = vpop.f32.mrb[0].mxu0
        %v3608 = vadd.f32 %v3415, %v3607
        %v3609 = vpop.f32.mrb[0].mxu0
        %v3610 = vadd.f32 %v3417, %v3609
        %v3611 = vpop.f32.mrb[0].mxu0
        %v3612 = vadd.f32 %v3419, %v3611
        %v3613 = vpop.f32.mrb[0].mxu0
        %v3614 = vadd.f32 %v3421, %v3613
        %3615 = vmatprep.mubr.bf16.mxu0 %v2992
        %3616 = vmatmul.mubr.bf16.gmra.mrb[0].mxu0 %v2991
        %v3617 = vpop.f32.mrb[0].mxu0
        %v3618 = vadd.f32 %v3425, %v3617
        %v3619 = vpop.f32.mrb[0].mxu0
        %v3620 = vadd.f32 %v3427, %v3619
        %v3621 = vpop.f32.mrb[0].mxu0
        %v3622 = vadd.f32 %v3429, %v3621
        %v3623 = vpop.f32.mrb[0].mxu0
        %v3624 = vadd.f32 %v3431, %v3623
        %3625 = vmatprep.mubr.bf16.mxu0 %v2996
        %3626 = vmatmul.mubr.bf16.gmra.mrb[0].mxu0 %v2995
        %v3627 = vpop.f32.mrb[0].mxu0
        %v3628 = vadd.f32 %v3435, %v3627
        %v3629 = vpop.f32.mrb[0].mxu0
        %v3630 = vadd.f32 %v3437, %v3629
        %v3631 = vpop.f32.mrb[0].mxu0
        %v3632 = vadd.f32 %v3439, %v3631
        %v3633 = vpop.f32.mrb[0].mxu0
        %v3634 = vadd.f32 %v3441, %v3633
        %3635 = vmatprep.mubr.bf16.mxu0 %v3000
        %3636 = vmatmul.mubr.bf16.gmra.mrb[0].mxu0 %v2999
        %v3637 = vpop.f32.mrb[0].mxu0
        %v3638 = vadd.f32 %v3445, %v3637
        %v3639 = vpop.f32.mrb[0].mxu0
        %v3640 = vadd.f32 %v3447, %v3639
        %v3641 = vpop.f32.mrb[0].mxu0
        %v3642 = vadd.f32 %v3449, %v3641
        %v3643 = vpop.f32.mrb[0].mxu0
        %v3644 = vadd.f32 %v3451, %v3643
        %3645 = vmatprep.mubr.bf16.mxu0 %v3004
        %3646 = vmatmul.mubr.bf16.gmra.mrb[0].mxu0 %v3003
        %v3647 = vpop.f32.mrb[0].mxu0
        %v3648 = vadd.f32 %v3455, %v3647
        %v3649 = vpop.f32.mrb[0].mxu0
        %v3650 = vadd.f32 %v3457, %v3649
        %v3651 = vpop.f32.mrb[0].mxu0
        %v3652 = vadd.f32 %v3459, %v3651
        %v3653 = vpop.f32.mrb[0].mxu0
        %v3654 = vadd.f32 %v3461, %v3653
        %3655 = vmatprep.mubr.bf16.mxu0 %v3008
        %3656 = vmatmul.mubr.bf16.gmra.mrb[0].mxu0 %v3007
        %v3657 = vpop.f32.mrb[0].mxu0
        %v3658 = vadd.f32 %v3465, %v3657
        %v3659 = vpop.f32.mrb[0].mxu0
        %v3660 = vadd.f32 %v3467, %v3659
        %v3661 = vpop.f32.mrb[0].mxu0
        %v3662 = vadd.f32 %v3469, %v3661
        %v3663 = vpop.f32.mrb[0].mxu0
        %v3664 = vadd.f32 %v3471, %v3663
        %3665 = vmatprep.mubr.bf16.mxu0 %v3012
        %3666 = vmatmul.mubr.bf16.gmra.mrb[0].mxu0 %v3011
        %v3667 = vpop.f32.mrb[0].mxu0
        %v3668 = vadd.f32 %v3475, %v3667
        %v3669 = vpop.f32.mrb[0].mxu0
        %v3670 = vadd.f32 %v3477, %v3669
        %v3671 = vpop.f32.mrb[0].mxu0
        %v3672 = vadd.f32 %v3479, %v3671
        %v3673 = vpop.f32.mrb[0].mxu0
        %v3674 = vadd.f32 %v3481, %v3673
        %3675 = vmatprep.mubr.bf16.mxu0 %v3016
        %3676 = vmatmul.mubr.bf16.gmra.mrb[0].mxu0 %v3015
        %v3677 = vpop.f32.mrb[0].mxu0
        %v3678 = vadd.f32 %v3485, %v3677
        %v3679 = vpop.f32.mrb[0].mxu0
        %v3680 = vadd.f32 %v3487, %v3679
        %v3681 = vpop.f32.mrb[0].mxu0
        %v3682 = vadd.f32 %v3489, %v3681
        %v3683 = vpop.f32.mrb[0].mxu0
        %v3684 = vadd.f32 %v3491, %v3683
        %3685 = vmatprep.mubr.bf16.mxu0 %v3020
        %3686 = vmatmul.mubr.bf16.gmra.mrb[0].mxu0 %v3019
        %v3687 = vpop.f32.mrb[0].mxu0
        %v3688 = vadd.f32 %v3495, %v3687
        %v3689 = vpop.f32.mrb[0].mxu0
        %v3690 = vadd.f32 %v3497, %v3689
        %v3691 = vpop.f32.mrb[0].mxu0
        %v3692 = vadd.f32 %v3499, %v3691
        %v3693 = vpop.f32.mrb[0].mxu0
        %v3694 = vadd.f32 %v3501, %v3693
        %3695 = vmatprep.mubr.bf16.mxu0 %v3024
        %3696 = vmatmul.mubr.bf16.gmra.mrb[0].mxu0 %v3023
        %v3697 = vpop.f32.mrb[0].mxu0
        %v3698 = vadd.f32 %v3505, %v3697
        %v3699 = vpop.f32.mrb[0].mxu0
        %v3700 = vadd.f32 %v3507, %v3699
        %v3701 = vpop.f32.mrb[0].mxu0
        %v3702 = vadd.f32 %v3509, %v3701
        %v3703 = vpop.f32.mrb[0].mxu0
        %v3704 = vadd.f32 %v3511, %v3703
        %3705 = vmatprep.mubr.bf16.mxu0 %v3028
        %3706 = vmatmul.mubr.bf16.gmra.mrb[0].mxu0 %v3027
        %v3707 = vpop.f32.mrb[0].mxu0
        %v3708 = vadd.f32 %v3515, %v3707
        %v3709 = vpop.f32.mrb[0].mxu0
        %v3710 = vadd.f32 %v3517, %v3709
        %v3711 = vpop.f32.mrb[0].mxu0
        %v3712 = vadd.f32 %v3519, %v3711
        %v3713 = vpop.f32.mrb[0].mxu0
        %v3714 = vadd.f32 %v3521, %v3713
        %3715 = vmatprep.mubr.bf16.mxu0 %v3032
        %3716 = vmatmul.mubr.bf16.gmra.mrb[0].mxu0 %v3031
        %v3717 = vpop.f32.mrb[0].mxu0
        %v3718 = vadd.f32 %v3525, %v3717
        %v3719 = vpop.f32.mrb[0].mxu0
        %v3720 = vadd.f32 %v3527, %v3719
        %v3721 = vpop.f32.mrb[0].mxu0
        %v3722 = vadd.f32 %v3529, %v3721
        %v3723 = vpop.f32.mrb[0].mxu0
        %v3724 = vadd.f32 %v3531, %v3723
        %3725 = vmatprep.mubr.bf16.mxu0 %v3036
        %3726 = vmatmul.mubr.bf16.gmra.mrb[0].mxu0 %v3035
        %v3727 = vpop.f32.mrb[0].mxu0
        %v3728 = vadd.f32 %v3535, %v3727
        %v3729 = vpop.f32.mrb[0].mxu0
        %v3730 = vadd.f32 %v3537, %v3729
        %v3731 = vpop.f32.mrb[0].mxu0
        %v3732 = vadd.f32 %v3539, %v3731
        %v3733 = vpop.f32.mrb[0].mxu0
        %v3734 = vadd.f32 %v3541, %v3733
        %3735 = vmatprep.mubr.bf16.mxu0 %v3040
        %3736 = vmatmul.mubr.bf16.gmra.mrb[0].mxu0 %v3039
        %v3737 = vpop.f32.mrb[0].mxu0
        %v3738 = vadd.f32 %v3545, %v3737
        %v3739 = vpop.f32.mrb[0].mxu0
        %v3740 = vadd.f32 %v3547, %v3739
        %v3741 = vpop.f32.mrb[0].mxu0
        %v3742 = vadd.f32 %v3549, %v3741
        %v3743 = vpop.f32.mrb[0].mxu0
        %v3744 = vadd.f32 %v3551, %v3743
        %3745 = vmatprep.mubr.bf16.mxu0 %v3044
        %3746 = vmatmul.mubr.bf16.gmra.mrb[0].mxu0 %v3043
        %v3747 = vpop.f32.mrb[0].mxu0
        %v3748 = vadd.f32 %v3555, %v3747
        %v3749 = vpop.f32.mrb[0].mxu0
        %v3750 = vadd.f32 %v3557, %v3749
        %v3751 = vpop.f32.mrb[0].mxu0
        %v3752 = vadd.f32 %v3559, %v3751
        %v3753 = vpop.f32.mrb[0].mxu0
        %v3754 = vadd.f32 %v3561, %v3753
        %3755 = vmatprep.mubr.bf16.mxu0 %v3048
        %3756 = vmatmul.mubr.bf16.gmra.mrb[0].mxu0 %v3047
        %v3757 = vpop.f32.mrb[0].mxu0
        %v3758 = vadd.f32 %v3565, %v3757
        %v3759 = vpop.f32.mrb[0].mxu0
        %v3760 = vadd.f32 %v3567, %v3759
        %v3761 = vpop.f32.mrb[0].mxu0
        %v3762 = vadd.f32 %v3569, %v3761
        %v3763 = vpop.f32.mrb[0].mxu0
        %v3764 = vadd.f32 %v3571, %v3763
        %3765 = vdwg.mxu0
        %v3766 = vmax.f32 %v3608, 0.0
        %v3767 = vmax.f32 %v3610, 0.0
        %v3768 = vmax.f32 %v3612, 0.0
        %v3769 = vmax.f32 %v3614, 0.0
        %v3770 = vmax.f32 %v3618, 0.0
        %v3771 = vmax.f32 %v3620, 0.0
        %v3772 = vmax.f32 %v3622, 0.0
        %v3773 = vmax.f32 %v3624, 0.0
        %v3774 = vmax.f32 %v3628, 0.0
        %v3775 = vmax.f32 %v3630, 0.0
        %v3776 = vmax.f32 %v3632, 0.0
        %v3777 = vmax.f32 %v3634, 0.0
        %v3778 = vmax.f32 %v3638, 0.0
        %v3779 = vmax.f32 %v3640, 0.0
        %v3780 = vmax.f32 %v3642, 0.0
        %v3781 = vmax.f32 %v3644, 0.0
        %v3782 = vmax.f32 %v3648, 0.0
        %v3783 = vmax.f32 %v3650, 0.0
        %v3784 = vmax.f32 %v3652, 0.0
        %v3785 = vmax.f32 %v3654, 0.0
        %v3786 = vmax.f32 %v3658, 0.0
        %v3787 = vmax.f32 %v3660, 0.0
        %v3788 = vmax.f32 %v3662, 0.0
        %v3789 = vmax.f32 %v3664, 0.0
        %v3790 = vmax.f32 %v3668, 0.0
        %v3791 = vmax.f32 %v3670, 0.0
        %v3792 = vmax.f32 %v3672, 0.0
        %v3793 = vmax.f32 %v3674, 0.0
        %v3794 = vmax.f32 %v3678, 0.0
        %v3795 = vmax.f32 %v3680, 0.0
        %v3796 = vmax.f32 %v3682, 0.0
        %v3797 = vmax.f32 %v3684, 0.0
        %v3798 = vmax.f32 %v3688, 0.0
        %v3799 = vmax.f32 %v3690, 0.0
        %v3800 = vmax.f32 %v3692, 0.0
        %v3801 = vmax.f32 %v3694, 0.0
        %v3802 = vmax.f32 %v3698, 0.0
        %v3803 = vmax.f32 %v3700, 0.0
        %v3804 = vmax.f32 %v3702, 0.0
        %v3805 = vmax.f32 %v3704, 0.0
        %v3806 = vmax.f32 %v3708, 0.0
        %v3807 = vmax.f32 %v3710, 0.0
        %v3808 = vmax.f32 %v3712, 0.0
        %v3809 = vmax.f32 %v3714, 0.0
        %v3810 = vmax.f32 %v3718, 0.0
        %v3811 = vmax.f32 %v3720, 0.0
        %v3812 = vmax.f32 %v3722, 0.0
        %v3813 = vmax.f32 %v3724, 0.0
        %v3814 = vmax.f32 %v3728, 0.0
        %v3815 = vmax.f32 %v3730, 0.0
        %v3816 = vmax.f32 %v3732, 0.0
        %v3817 = vmax.f32 %v3734, 0.0
        %v3818 = vmax.f32 %v3738, 0.0
        %v3819 = vmax.f32 %v3740, 0.0
        %v3820 = vmax.f32 %v3742, 0.0
        %v3821 = vmax.f32 %v3744, 0.0
        %v3822 = vmax.f32 %v3748, 0.0
        %v3823 = vmax.f32 %v3750, 0.0
        %v3824 = vmax.f32 %v3752, 0.0
        %v3825 = vmax.f32 %v3754, 0.0
        %v3826 = vmax.f32 %v3758, 0.0
        %v3827 = vmax.f32 %v3760, 0.0
        %v3828 = vmax.f32 %v3762, 0.0
        %v3829 = vmax.f32 %v3764, 0.0
        %v3830 = vld [vmem:[#allocation7] sm:$0xf]
        %v3831 = vld [vmem:[#allocation7 + $0x4] sm:$0xf]
        %v3832 = vld [vmem:[#allocation7 + $0x8] sm:$0xf]
        %v3833 = vld [vmem:[#allocation7 + $0xc] sm:$0xf]
        %v3834 = vld [vmem:[#allocation7 + $0x10] sm:$0xf]
        %v3835 = vld [vmem:[#allocation7 + $0x14] sm:$0xf]
        %v3836 = vld [vmem:[#allocation7 + $0x18] sm:$0xf]
        %v3837 = vld [vmem:[#allocation7 + $0x1c] sm:$0xf]
        %v3838 = vld [vmem:[#allocation7 + $0x20] sm:$0xf]
        %v3839 = vld [vmem:[#allocation7 + $0x24] sm:$0xf]
        %v3840 = vld [vmem:[#allocation7 + $0x28] sm:$0xf]
        %v3841 = vld [vmem:[#allocation7 + $0x2c] sm:$0xf]
        %v3842 = vld [vmem:[#allocation7 + $0x30] sm:$0xf]
        %v3843 = vld [vmem:[#allocation7 + $0x34] sm:$0xf]
        %v3844 = vld [vmem:[#allocation7 + $0x38] sm:$0xf]
        %v3845 = vld [vmem:[#allocation7 + $0x3c] sm:$0xf]
        %v3846 = vld [vmem:[#allocation7 + $0x40] sm:$0xf]
        %v3847 = vld [vmem:[#allocation7 + $0x44] sm:$0xf]
        %v3848 = vld [vmem:[#allocation7 + $0x48] sm:$0xf]
        %v3849 = vld [vmem:[#allocation7 + $0x4c] sm:$0xf]
        %v3850 = vld [vmem:[#allocation7 + $0x50] sm:$0xf]
        %v3851 = vld [vmem:[#allocation7 + $0x54] sm:$0xf]
        %v3852 = vld [vmem:[#allocation7 + $0x58] sm:$0xf]
        %v3853 = vld [vmem:[#allocation7 + $0x5c] sm:$0xf]
        %v3854 = vld [vmem:[#allocation7 + $0x60] sm:$0xf]
        %v3855 = vld [vmem:[#allocation7 + $0x64] sm:$0xf]
        %v3856 = vld [vmem:[#allocation7 + $0x68] sm:$0xf]
        %v3857 = vld [vmem:[#allocation7 + $0x6c] sm:$0xf]
        %v3858 = vld [vmem:[#allocation7 + $0x70] sm:$0xf]
        %v3859 = vld [vmem:[#allocation7 + $0x74] sm:$0xf]
        %v3860 = vld [vmem:[#allocation7 + $0x78] sm:$0xf]
        %v3861 = vld [vmem:[#allocation7 + $0x7c] sm:$0xf]
        %v3862 = vld [vmem:[%s14] sm:$0x1]
        %v3863 = vpack.c.bf16 %v3768, %v3766
        %v3864 = vpack.c.bf16 %v3769, %v3767
        %v3865 = vpack.c.bf16 %v3772, %v3770
        %v3866 = vpack.c.bf16 %v3773, %v3771
        %v3867 = vpack.c.bf16 %v3776, %v3774
        %v3868 = vpack.c.bf16 %v3777, %v3775
        %v3869 = vpack.c.bf16 %v3780, %v3778
        %v3870 = vpack.c.bf16 %v3781, %v3779
        %v3871 = vpack.c.bf16 %v3784, %v3782
        %v3872 = vpack.c.bf16 %v3785, %v3783
        %v3873 = vpack.c.bf16 %v3788, %v3786
        %v3874 = vpack.c.bf16 %v3789, %v3787
        %v3875 = vpack.c.bf16 %v3792, %v3790
        %v3876 = vpack.c.bf16 %v3793, %v3791
        %v3877 = vpack.c.bf16 %v3796, %v3794
        %v3878 = vpack.c.bf16 %v3797, %v3795
        %v3879 = vpack.c.bf16 %v3800, %v3798
        %v3880 = vpack.c.bf16 %v3801, %v3799
        %v3881 = vpack.c.bf16 %v3804, %v3802
        %v3882 = vpack.c.bf16 %v3805, %v3803
        %v3883 = vpack.c.bf16 %v3808, %v3806
        %v3884 = vpack.c.bf16 %v3809, %v3807
        %v3885 = vpack.c.bf16 %v3812, %v3810
        %v3886 = vpack.c.bf16 %v3813, %v3811
        %v3887 = vpack.c.bf16 %v3816, %v3814
        %v3888 = vpack.c.bf16 %v3817, %v3815
        %v3889 = vpack.c.bf16 %v3820, %v3818
        %v3890 = vpack.c.bf16 %v3821, %v3819
        %v3891 = vpack.c.bf16 %v3824, %v3822
        %v3892 = vpack.c.bf16 %v3825, %v3823
        %v3893 = vpack.c.bf16 %v3828, %v3826
        %v3894 = vpack.c.bf16 %v3829, %v3827
        %v3896 = vlaneseq
        %v3897 = vshrl.u32 %v3896, 7
        %v3898 = vsub.s32 0, %v3897
        %v3899 = vrot.slane %v3862, %v3898
        %v3933 = vunpack.c.l.b16 %v3830
        %v3934 = vunpack.c.l.b16 %v3831
        %v3935 = vunpack.c.l.b16 %v3832
        %v3936 = vunpack.c.l.b16 %v3833
        %v3937 = vunpack.c.l.b16 %v3834
        %v3938 = vunpack.c.l.b16 %v3835
        %v3939 = vunpack.c.l.b16 %v3836
        %v3940 = vunpack.c.l.b16 %v3837
        %v3941 = vunpack.c.l.b16 %v3838
        %v3942 = vunpack.c.l.b16 %v3839
        %v3943 = vunpack.c.l.b16 %v3840
        %v3944 = vunpack.c.l.b16 %v3841
        %v3945 = vunpack.c.l.b16 %v3842
        %v3946 = vunpack.c.l.b16 %v3843
        %v3947 = vunpack.c.l.b16 %v3844
        %v3948 = vunpack.c.l.b16 %v3845
        %v3949 = vunpack.c.l.b16 %v3846
        %v3950 = vunpack.c.l.b16 %v3847
        %v3951 = vunpack.c.l.b16 %v3848
        %v3952 = vunpack.c.l.b16 %v3849
        %v3953 = vunpack.c.l.b16 %v3850
        %v3954 = vunpack.c.l.b16 %v3851
        %v3955 = vunpack.c.l.b16 %v3852
        %v3956 = vunpack.c.l.b16 %v3853
        %v3957 = vunpack.c.l.b16 %v3854
        %v3958 = vunpack.c.l.b16 %v3855
        %v3959 = vunpack.c.l.b16 %v3856
        %v3960 = vunpack.c.l.b16 %v3857
        %v3961 = vunpack.c.l.b16 %v3858
        %v3962 = vunpack.c.l.b16 %v3859
        %v3963 = vunpack.c.l.b16 %v3860
        %v3964 = vunpack.c.l.b16 %v3861
        %v3965 = vpack.c.b16 %v3934, %v3933
        %v3966 = vpack.c.b16 %v3936, %v3935
        %v3967 = vpack.c.b16 %v3938, %v3937
        %v3968 = vpack.c.b16 %v3940, %v3939
        %v3969 = vpack.c.b16 %v3942, %v3941
        %v3970 = vpack.c.b16 %v3944, %v3943
        %v3971 = vpack.c.b16 %v3946, %v3945
        %v3972 = vpack.c.b16 %v3948, %v3947
        %v3973 = vpack.c.b16 %v3950, %v3949
        %v3974 = vpack.c.b16 %v3952, %v3951
        %v3975 = vpack.c.b16 %v3954, %v3953
        %v3976 = vpack.c.b16 %v3956, %v3955
        %v3977 = vpack.c.b16 %v3958, %v3957
        %v3978 = vpack.c.b16 %v3960, %v3959
        %v3979 = vpack.c.b16 %v3962, %v3961
        %v3980 = vpack.c.b16 %v3964, %v3963
        %3997 = vmatprep.subr.bf16.mxu0 0
        %3998 = vmatpush1.bf16.msra.mxu0 %v3965
        %3999 = vmatprep.subr.bf16.mxu0 0
        %4000 = vmatpush1.bf16.msra.mxu0 %v3966
        %4001 = vmatprep.subr.bf16.mxu0 0
        %4002 = vmatpush1.bf16.msra.mxu0 %v3967
        %4003 = vmatprep.subr.bf16.mxu0 0
        %4004 = vmatpush1.bf16.msra.mxu0 %v3968
        %4005 = vmatprep.subr.bf16.mxu0 0
        %4006 = vmatpush1.bf16.msra.mxu0 %v3969
        %4007 = vmatprep.subr.bf16.mxu0 0
        %4008 = vmatpush1.bf16.msra.mxu0 %v3970
        %4009 = vmatprep.subr.bf16.mxu0 0
        %4010 = vmatpush1.bf16.msra.mxu0 %v3971
        %4011 = vmatprep.subr.bf16.mxu0 0
        %4012 = vmatpush1.bf16.msra.mxu0 %v3972
        %4013 = vmatprep.subr.bf16.mxu0 0
        %4014 = vmatpush1.bf16.msra.mxu0 %v3973
        %4015 = vmatprep.subr.bf16.mxu0 0
        %4016 = vmatpush1.bf16.msra.mxu0 %v3974
        %4017 = vmatprep.subr.bf16.mxu0 0
        %4018 = vmatpush1.bf16.msra.mxu0 %v3975
        %4019 = vmatprep.subr.bf16.mxu0 0
        %4020 = vmatpush1.bf16.msra.mxu0 %v3976
        %4021 = vmatprep.subr.bf16.mxu0 0
        %4022 = vmatpush1.bf16.msra.mxu0 %v3977
        %4023 = vmatprep.subr.bf16.mxu0 0
        %4024 = vmatpush1.bf16.msra.mxu0 %v3978
        %4025 = vmatprep.subr.bf16.mxu0 0
        %4026 = vmatpush1.bf16.msra.mxu0 %v3979
        %4027 = vmatprep.subr.bf16.mxu0 0
        %4028 = vmatpush1.bf16.msra.mxu0 %v3980
        %4029 = vmatprep.mubr.bf16.mxu0 %v3864
        %4030 = vmatmul.mubr.bf16.gmra.mrb[0].mxu0 %v3863
        %v4031 = vpop.f32.mrb[0].mxu0
        %v4032 = vadd.f32 %v3899, %v4031
        %v4033 = vpop.f32.mrb[0].mxu0
        %v4034 = vpop.f32.mrb[0].mxu0
        %v4035 = vadd.f32 %v3899, %v4034
        %v4036 = vpop.f32.mrb[0].mxu0
        %4037 = vmatprep.mubr.bf16.mxu0 %v3866
        %4038 = vmatmul.mubr.bf16.gmra.mrb[0].mxu0 %v3865
        %v4039 = vpop.f32.mrb[0].mxu0
        %v4040 = vadd.f32 %v3899, %v4039
        %v4041 = vpop.f32.mrb[0].mxu0
        %v4042 = vpop.f32.mrb[0].mxu0
        %v4043 = vadd.f32 %v3899, %v4042
        %v4044 = vpop.f32.mrb[0].mxu0
        %4045 = vmatprep.mubr.bf16.mxu0 %v3868
        %4046 = vmatmul.mubr.bf16.gmra.mrb[0].mxu0 %v3867
        %v4047 = vpop.f32.mrb[0].mxu0
        %v4048 = vadd.f32 %v3899, %v4047
        %v4049 = vpop.f32.mrb[0].mxu0
        %v4050 = vpop.f32.mrb[0].mxu0
        %v4051 = vadd.f32 %v3899, %v4050
        %v4052 = vpop.f32.mrb[0].mxu0
        %4053 = vmatprep.mubr.bf16.mxu0 %v3870
        %4054 = vmatmul.mubr.bf16.gmra.mrb[0].mxu0 %v3869
        %v4055 = vpop.f32.mrb[0].mxu0
        %v4056 = vadd.f32 %v3899, %v4055
        %v4057 = vpop.f32.mrb[0].mxu0
        %v4058 = vpop.f32.mrb[0].mxu0
        %v4059 = vadd.f32 %v3899, %v4058
        %v4060 = vpop.f32.mrb[0].mxu0
        %4061 = vmatprep.mubr.bf16.mxu0 %v3872
        %4062 = vmatmul.mubr.bf16.gmra.mrb[0].mxu0 %v3871
        %v4063 = vpop.f32.mrb[0].mxu0
        %v4064 = vadd.f32 %v3899, %v4063
        %v4065 = vpop.f32.mrb[0].mxu0
        %v4066 = vpop.f32.mrb[0].mxu0
        %v4067 = vadd.f32 %v3899, %v4066
        %v4068 = vpop.f32.mrb[0].mxu0
        %4069 = vmatprep.mubr.bf16.mxu0 %v3874
        %4070 = vmatmul.mubr.bf16.gmra.mrb[0].mxu0 %v3873
        %v4071 = vpop.f32.mrb[0].mxu0
        %v4072 = vadd.f32 %v3899, %v4071
        %v4073 = vpop.f32.mrb[0].mxu0
        %v4074 = vpop.f32.mrb[0].mxu0
        %v4075 = vadd.f32 %v3899, %v4074
        %v4076 = vpop.f32.mrb[0].mxu0
        %4077 = vmatprep.mubr.bf16.mxu0 %v3876
        %4078 = vmatmul.mubr.bf16.gmra.mrb[0].mxu0 %v3875
        %v4079 = vpop.f32.mrb[0].mxu0
        %v4080 = vadd.f32 %v3899, %v4079
        %v4081 = vpop.f32.mrb[0].mxu0
        %v4082 = vpop.f32.mrb[0].mxu0
        %v4083 = vadd.f32 %v3899, %v4082
        %v4084 = vpop.f32.mrb[0].mxu0
        %4085 = vmatprep.mubr.bf16.mxu0 %v3878
        %4086 = vmatmul.mubr.bf16.gmra.mrb[0].mxu0 %v3877
        %v4087 = vpop.f32.mrb[0].mxu0
        %v4088 = vadd.f32 %v3899, %v4087
        %v4089 = vpop.f32.mrb[0].mxu0
        %v4090 = vpop.f32.mrb[0].mxu0
        %v4091 = vadd.f32 %v3899, %v4090
        %v4092 = vpop.f32.mrb[0].mxu0
        %4093 = vmatprep.mubr.bf16.mxu0 %v3880
        %4094 = vmatmul.mubr.bf16.gmra.mrb[0].mxu0 %v3879
        %v4095 = vpop.f32.mrb[0].mxu0
        %v4096 = vadd.f32 %v3899, %v4095
        %v4097 = vpop.f32.mrb[0].mxu0
        %v4098 = vpop.f32.mrb[0].mxu0
        %v4099 = vadd.f32 %v3899, %v4098
        %v4100 = vpop.f32.mrb[0].mxu0
        %4101 = vmatprep.mubr.bf16.mxu0 %v3882
        %4102 = vmatmul.mubr.bf16.gmra.mrb[0].mxu0 %v3881
        %v4103 = vpop.f32.mrb[0].mxu0
        %v4104 = vadd.f32 %v3899, %v4103
        %v4105 = vpop.f32.mrb[0].mxu0
        %v4106 = vpop.f32.mrb[0].mxu0
        %v4107 = vadd.f32 %v3899, %v4106
        %v4108 = vpop.f32.mrb[0].mxu0
        %4109 = vmatprep.mubr.bf16.mxu0 %v3884
        %4110 = vmatmul.mubr.bf16.gmra.mrb[0].mxu0 %v3883
        %v4111 = vpop.f32.mrb[0].mxu0
        %v4112 = vadd.f32 %v3899, %v4111
        %v4113 = vpop.f32.mrb[0].mxu0
        %v4114 = vpop.f32.mrb[0].mxu0
        %v4115 = vadd.f32 %v3899, %v4114
        %v4116 = vpop.f32.mrb[0].mxu0
        %4117 = vmatprep.mubr.bf16.mxu0 %v3886
        %4118 = vmatmul.mubr.bf16.gmra.mrb[0].mxu0 %v3885
        %v4119 = vpop.f32.mrb[0].mxu0
        %v4120 = vadd.f32 %v3899, %v4119
        %v4121 = vpop.f32.mrb[0].mxu0
        %v4122 = vpop.f32.mrb[0].mxu0
        %v4123 = vadd.f32 %v3899, %v4122
        %v4124 = vpop.f32.mrb[0].mxu0
        %4125 = vmatprep.mubr.bf16.mxu0 %v3888
        %4126 = vmatmul.mubr.bf16.gmra.mrb[0].mxu0 %v3887
        %v4127 = vpop.f32.mrb[0].mxu0
        %v4128 = vadd.f32 %v3899, %v4127
        %v4129 = vpop.f32.mrb[0].mxu0
        %v4130 = vpop.f32.mrb[0].mxu0
        %v4131 = vadd.f32 %v3899, %v4130
        %v4132 = vpop.f32.mrb[0].mxu0
        %4133 = vmatprep.mubr.bf16.mxu0 %v3890
        %4134 = vmatmul.mubr.bf16.gmra.mrb[0].mxu0 %v3889
        %v4135 = vpop.f32.mrb[0].mxu0
        %v4136 = vadd.f32 %v3899, %v4135
        %v4137 = vpop.f32.mrb[0].mxu0
        %v4138 = vpop.f32.mrb[0].mxu0
        %v4139 = vadd.f32 %v3899, %v4138
        %v4140 = vpop.f32.mrb[0].mxu0
        %4141 = vmatprep.mubr.bf16.mxu0 %v3892
        %4142 = vmatmul.mubr.bf16.gmra.mrb[0].mxu0 %v3891
        %v4143 = vpop.f32.mrb[0].mxu0
        %v4144 = vadd.f32 %v3899, %v4143
        %v4145 = vpop.f32.mrb[0].mxu0
        %v4146 = vpop.f32.mrb[0].mxu0
        %v4147 = vadd.f32 %v3899, %v4146
        %v4148 = vpop.f32.mrb[0].mxu0
        %4149 = vmatprep.mubr.bf16.mxu0 %v3894
        %4150 = vmatmul.mubr.bf16.gmra.mrb[0].mxu0 %v3893
        %v4151 = vpop.f32.mrb[0].mxu0
        %v4152 = vadd.f32 %v3899, %v4151
        %v4153 = vpop.f32.mrb[0].mxu0
        %v4154 = vpop.f32.mrb[0].mxu0
        %v4155 = vadd.f32 %v3899, %v4154
        %v4156 = vpop.f32.mrb[0].mxu0
        %4157 = vdwg.mxu0
        %v4158 = vmax.f32 %v4032, 0.0
        %v4159 = vmax.f32 %v4035, 0.0
        %v4160 = vmax.f32 %v4040, 0.0
        %v4161 = vmax.f32 %v4043, 0.0
        %v4162 = vmax.f32 %v4048, 0.0
        %v4163 = vmax.f32 %v4051, 0.0
        %v4164 = vmax.f32 %v4056, 0.0
        %v4165 = vmax.f32 %v4059, 0.0
        %v4166 = vmax.f32 %v4064, 0.0
        %v4167 = vmax.f32 %v4067, 0.0
        %v4168 = vmax.f32 %v4072, 0.0
        %v4169 = vmax.f32 %v4075, 0.0
        %v4170 = vmax.f32 %v4080, 0.0
        %v4171 = vmax.f32 %v4083, 0.0
        %v4172 = vmax.f32 %v4088, 0.0
        %v4173 = vmax.f32 %v4091, 0.0
        %v4174 = vmax.f32 %v4096, 0.0
        %v4175 = vmax.f32 %v4099, 0.0
        %v4176 = vmax.f32 %v4104, 0.0
        %v4177 = vmax.f32 %v4107, 0.0
        %v4178 = vmax.f32 %v4112, 0.0
        %v4179 = vmax.f32 %v4115, 0.0
        %v4180 = vmax.f32 %v4120, 0.0
        %v4181 = vmax.f32 %v4123, 0.0
        %v4182 = vmax.f32 %v4128, 0.0
        %v4183 = vmax.f32 %v4131, 0.0
        %v4184 = vmax.f32 %v4136, 0.0
        %v4185 = vmax.f32 %v4139, 0.0
        %v4186 = vmax.f32 %v4144, 0.0
        %v4187 = vmax.f32 %v4147, 0.0
        %v4188 = vmax.f32 %v4152, 0.0
        %v4189 = vmax.f32 %v4155, 0.0
        %v4190 = vld [vmem:[%s15] sm:$0xf]
        %v4191 = vld [vmem:[%s15 + $0x4] sm:$0xf]
        %v4192 = vld [vmem:[%s15 + $0x8] sm:$0xf]
        %v4193 = vld [vmem:[%s15 + $0xc] sm:$0xf]
        %v4194 = vld [vmem:[%s15 + $0x10] sm:$0xf]
        %v4195 = vld [vmem:[%s15 + $0x14] sm:$0xf]
        %v4196 = vld [vmem:[%s15 + $0x18] sm:$0xf]
        %v4197 = vld [vmem:[%s15 + $0x1c] sm:$0xf]
        %v4198 = vld [vmem:[%s15 + $0x20] sm:$0xf]
        %v4199 = vld [vmem:[%s15 + $0x24] sm:$0xf]
        %v4200 = vld [vmem:[%s15 + $0x28] sm:$0xf]
        %v4201 = vld [vmem:[%s15 + $0x2c] sm:$0xf]
        %v4202 = vld [vmem:[%s15 + $0x30] sm:$0xf]
        %v4203 = vld [vmem:[%s15 + $0x34] sm:$0xf]
        %v4204 = vld [vmem:[%s15 + $0x38] sm:$0xf]
        %v4205 = vld [vmem:[%s15 + $0x3c] sm:$0xf]
        %v4206 = vld [vmem:[%s16] sm:$0x1]
        %v4207 = vpack.c.bf16 %v4159, %v4158
        %v4208 = vpack.c.bf16 %v4161, %v4160
        %v4209 = vpack.c.bf16 %v4163, %v4162
        %v4210 = vpack.c.bf16 %v4165, %v4164
        %v4211 = vpack.c.bf16 %v4167, %v4166
        %v4212 = vpack.c.bf16 %v4169, %v4168
        %v4213 = vpack.c.bf16 %v4171, %v4170
        %v4214 = vpack.c.bf16 %v4173, %v4172
        %v4215 = vpack.c.bf16 %v4175, %v4174
        %v4216 = vpack.c.bf16 %v4177, %v4176
        %v4217 = vpack.c.bf16 %v4179, %v4178
        %v4218 = vpack.c.bf16 %v4181, %v4180
        %v4219 = vpack.c.bf16 %v4183, %v4182
        %v4220 = vpack.c.bf16 %v4185, %v4184
        %v4221 = vpack.c.bf16 %v4187, %v4186
        %v4222 = vpack.c.bf16 %v4189, %v4188
        %v4224 = vlaneseq
        %v4225 = vshrl.u32 %v4224, 7
        %v4226 = vsub.s32 0, %v4225
        %v4227 = vrot.slane %v4206, %v4226
        %v4245 = vunpack.c.l.b16 %v4190
        %v4246 = vunpack.c.l.b16 %v4191
        %v4247 = vunpack.c.l.b16 %v4192
        %v4248 = vunpack.c.l.b16 %v4193
        %v4249 = vunpack.c.l.b16 %v4194
        %v4250 = vunpack.c.l.b16 %v4195
        %v4251 = vunpack.c.l.b16 %v4196
        %v4252 = vunpack.c.l.b16 %v4197
        %v4253 = vunpack.c.l.b16 %v4198
        %v4254 = vunpack.c.l.b16 %v4199
        %v4255 = vunpack.c.l.b16 %v4200
        %v4256 = vunpack.c.l.b16 %v4201
        %v4257 = vunpack.c.l.b16 %v4202
        %v4258 = vunpack.c.l.b16 %v4203
        %v4259 = vunpack.c.l.b16 %v4204
        %v4260 = vunpack.c.l.b16 %v4205
        %v4261 = vpack.c.b16 %v4246, %v4245
        %v4262 = vpack.c.b16 %v4248, %v4247
        %v4263 = vpack.c.b16 %v4250, %v4249
        %v4264 = vpack.c.b16 %v4252, %v4251
        %v4265 = vpack.c.b16 %v4254, %v4253
        %v4266 = vpack.c.b16 %v4256, %v4255
        %v4267 = vpack.c.b16 %v4258, %v4257
        %v4268 = vpack.c.b16 %v4260, %v4259
        %4277 = vmatprep.subr.bf16.mxu0 0
        %4278 = vmatpush1.bf16.msra.mxu0 %v4261
        %4279 = vmatprep.subr.bf16.mxu0 0
        %4280 = vmatpush1.bf16.msra.mxu0 %v4262
        %4281 = vmatprep.subr.bf16.mxu0 0
        %4282 = vmatpush1.bf16.msra.mxu0 %v4263
        %4283 = vmatprep.subr.bf16.mxu0 0
        %4284 = vmatpush1.bf16.msra.mxu0 %v4264
        %4285 = vmatprep.subr.bf16.mxu0 0
        %4286 = vmatpush1.bf16.msra.mxu0 %v4265
        %4287 = vmatprep.subr.bf16.mxu0 0
        %4288 = vmatpush1.bf16.msra.mxu0 %v4266
        %4289 = vmatprep.subr.bf16.mxu0 0
        %4290 = vmatpush1.bf16.msra.mxu0 %v4267
        %4291 = vmatprep.subr.bf16.mxu0 0
        %4292 = vmatpush1.bf16.msra.mxu0 %v4268
        %4293 = vmatprep.subr.bf16.mxu0 0
        %4294 = vmatpush1.bf16.msra.mxu0 0
        %4295 = vmatprep.subr.bf16.mxu0 0
        %4296 = vmatpush1.bf16.msra.mxu0 0
        %4297 = vmatprep.subr.bf16.mxu0 0
        %4298 = vmatpush1.bf16.msra.mxu0 0
        %4299 = vmatprep.subr.bf16.mxu0 0
        %4300 = vmatpush1.bf16.msra.mxu0 0
        %4301 = vmatprep.subr.bf16.mxu0 0
        %4302 = vmatpush1.bf16.msra.mxu0 0
        %4303 = vmatprep.subr.bf16.mxu0 0
        %4304 = vmatpush1.bf16.msra.mxu0 0
        %4305 = vmatprep.subr.bf16.mxu0 0
        %4306 = vmatpush1.bf16.msra.mxu0 0
        %4307 = vmatprep.subr.bf16.mxu0 0
        %4308 = vmatpush1.bf16.msra.mxu0 0
        %4309 = vmatprep.mubr.bf16.mxu0 0
        %4310 = vmatmul.mubr.bf16.gmra.mrb[0].mxu0 %v4207
        %v4311 = vpop.f32.mrb[0].mxu0
        %v4312 = vadd.f32 %v4227, %v4311
        %v4313 = vpop.f32.mrb[0].mxu0
        %v4314 = vpop.f32.mrb[0].mxu0
        %v4315 = vadd.f32 %v4227, %v4314
        %v4316 = vpop.f32.mrb[0].mxu0
        %4317 = vmatprep.mubr.bf16.mxu0 0
        %4318 = vmatmul.mubr.bf16.gmra.mrb[0].mxu0 %v4208
        %v4319 = vpop.f32.mrb[0].mxu0
        %v4320 = vadd.f32 %v4227, %v4319
        %v4321 = vpop.f32.mrb[0].mxu0
        %v4322 = vpop.f32.mrb[0].mxu0
        %v4323 = vadd.f32 %v4227, %v4322
        %v4324 = vpop.f32.mrb[0].mxu0
        %4325 = vmatprep.mubr.bf16.mxu0 0
        %4326 = vmatmul.mubr.bf16.gmra.mrb[0].mxu0 %v4209
        %v4327 = vpop.f32.mrb[0].mxu0
        %v4328 = vadd.f32 %v4227, %v4327
        %v4329 = vpop.f32.mrb[0].mxu0
        %v4330 = vpop.f32.mrb[0].mxu0
        %v4331 = vadd.f32 %v4227, %v4330
        %v4332 = vpop.f32.mrb[0].mxu0
        %4333 = vmatprep.mubr.bf16.mxu0 0
        %4334 = vmatmul.mubr.bf16.gmra.mrb[0].mxu0 %v4210
        %v4335 = vpop.f32.mrb[0].mxu0
        %v4336 = vadd.f32 %v4227, %v4335
        %v4337 = vpop.f32.mrb[0].mxu0
        %v4338 = vpop.f32.mrb[0].mxu0
        %v4339 = vadd.f32 %v4227, %v4338
        %v4340 = vpop.f32.mrb[0].mxu0
        %4341 = vmatprep.mubr.bf16.mxu0 0
        %4342 = vmatmul.mubr.bf16.gmra.mrb[0].mxu0 %v4211
        %v4343 = vpop.f32.mrb[0].mxu0
        %v4344 = vadd.f32 %v4227, %v4343
        %v4345 = vpop.f32.mrb[0].mxu0
        %v4346 = vpop.f32.mrb[0].mxu0
        %v4347 = vadd.f32 %v4227, %v4346
        %v4348 = vpop.f32.mrb[0].mxu0
        %4349 = vmatprep.mubr.bf16.mxu0 0
        %4350 = vmatmul.mubr.bf16.gmra.mrb[0].mxu0 %v4212
        %v4351 = vpop.f32.mrb[0].mxu0
        %v4352 = vadd.f32 %v4227, %v4351
        %v4353 = vpop.f32.mrb[0].mxu0
        %v4354 = vpop.f32.mrb[0].mxu0
        %v4355 = vadd.f32 %v4227, %v4354
        %v4356 = vpop.f32.mrb[0].mxu0
        %4357 = vmatprep.mubr.bf16.mxu0 0
        %4358 = vmatmul.mubr.bf16.gmra.mrb[0].mxu0 %v4213
        %v4359 = vpop.f32.mrb[0].mxu0
        %v4360 = vadd.f32 %v4227, %v4359
        %v4361 = vpop.f32.mrb[0].mxu0
        %v4362 = vpop.f32.mrb[0].mxu0
        %v4363 = vadd.f32 %v4227, %v4362
        %v4364 = vpop.f32.mrb[0].mxu0
        %4365 = vmatprep.mubr.bf16.mxu0 0
        %4366 = vmatmul.mubr.bf16.gmra.mrb[0].mxu0 %v4214
        %v4367 = vpop.f32.mrb[0].mxu0
        %v4368 = vadd.f32 %v4227, %v4367
        %v4369 = vpop.f32.mrb[0].mxu0
        %v4370 = vpop.f32.mrb[0].mxu0
        %v4371 = vadd.f32 %v4227, %v4370
        %v4372 = vpop.f32.mrb[0].mxu0
        %4373 = vmatprep.mubr.bf16.mxu0 0
        %4374 = vmatmul.mubr.bf16.gmra.mrb[0].mxu0 %v4215
        %v4375 = vpop.f32.mrb[0].mxu0
        %v4376 = vadd.f32 %v4227, %v4375
        %v4377 = vpop.f32.mrb[0].mxu0
        %v4378 = vpop.f32.mrb[0].mxu0
        %v4379 = vadd.f32 %v4227, %v4378
        %v4380 = vpop.f32.mrb[0].mxu0
        %4381 = vmatprep.mubr.bf16.mxu0 0
        %4382 = vmatmul.mubr.bf16.gmra.mrb[0].mxu0 %v4216
        %v4383 = vpop.f32.mrb[0].mxu0
        %v4384 = vadd.f32 %v4227, %v4383
        %v4385 = vpop.f32.mrb[0].mxu0
        %v4386 = vpop.f32.mrb[0].mxu0
        %v4387 = vadd.f32 %v4227, %v4386
        %v4388 = vpop.f32.mrb[0].mxu0
        %4389 = vmatprep.mubr.bf16.mxu0 0
        %4390 = vmatmul.mubr.bf16.gmra.mrb[0].mxu0 %v4217
        %v4391 = vpop.f32.mrb[0].mxu0
        %v4392 = vadd.f32 %v4227, %v4391
        %v4393 = vpop.f32.mrb[0].mxu0
        %v4394 = vpop.f32.mrb[0].mxu0
        %v4395 = vadd.f32 %v4227, %v4394
        %v4396 = vpop.f32.mrb[0].mxu0
        %4397 = vmatprep.mubr.bf16.mxu0 0
        %4398 = vmatmul.mubr.bf16.gmra.mrb[0].mxu0 %v4218
        %v4399 = vpop.f32.mrb[0].mxu0
        %v4400 = vadd.f32 %v4227, %v4399
        %v4401 = vpop.f32.mrb[0].mxu0
        %v4402 = vpop.f32.mrb[0].mxu0
        %v4403 = vadd.f32 %v4227, %v4402
        %v4404 = vpop.f32.mrb[0].mxu0
        %4405 = vmatprep.mubr.bf16.mxu0 0
        %4406 = vmatmul.mubr.bf16.gmra.mrb[0].mxu0 %v4219
        %v4407 = vpop.f32.mrb[0].mxu0
        %v4408 = vadd.f32 %v4227, %v4407
        %v4409 = vpop.f32.mrb[0].mxu0
        %v4410 = vpop.f32.mrb[0].mxu0
        %v4411 = vadd.f32 %v4227, %v4410
        %v4412 = vpop.f32.mrb[0].mxu0
        %4413 = vmatprep.mubr.bf16.mxu0 0
        %4414 = vmatmul.mubr.bf16.gmra.mrb[0].mxu0 %v4220
        %v4415 = vpop.f32.mrb[0].mxu0
        %v4416 = vadd.f32 %v4227, %v4415
        %v4417 = vpop.f32.mrb[0].mxu0
        %v4418 = vpop.f32.mrb[0].mxu0
        %v4419 = vadd.f32 %v4227, %v4418
        %v4420 = vpop.f32.mrb[0].mxu0
        %4421 = vmatprep.mubr.bf16.mxu0 0
        %4422 = vmatmul.mubr.bf16.gmra.mrb[0].mxu0 %v4221
        %v4423 = vpop.f32.mrb[0].mxu0
        %v4424 = vadd.f32 %v4227, %v4423
        %v4425 = vpop.f32.mrb[0].mxu0
        %v4426 = vpop.f32.mrb[0].mxu0
        %v4427 = vadd.f32 %v4227, %v4426
        %v4428 = vpop.f32.mrb[0].mxu0
        %4429 = vmatprep.mubr.bf16.mxu0 0
        %4430 = vmatmul.mubr.bf16.gmra.mrb[0].mxu0 %v4222
        %v4431 = vpop.f32.mrb[0].mxu0
        %v4432 = vadd.f32 %v4227, %v4431
        %v4433 = vpop.f32.mrb[0].mxu0
        %v4434 = vpop.f32.mrb[0].mxu0
        %v4435 = vadd.f32 %v4227, %v4434
        %v4436 = vpop.f32.mrb[0].mxu0
        %4437 = vdwg.mxu0
        %v4438 = vmax.f32 %v4312, 0.0
        %v4439 = vmax.f32 %v4315, 0.0
        %v4440 = vmax.f32 %v4320, 0.0
        %v4441 = vmax.f32 %v4323, 0.0
        %v4442 = vmax.f32 %v4328, 0.0
        %v4443 = vmax.f32 %v4331, 0.0
        %v4444 = vmax.f32 %v4336, 0.0
        %v4445 = vmax.f32 %v4339, 0.0
        %v4446 = vmax.f32 %v4344, 0.0
        %v4447 = vmax.f32 %v4347, 0.0
        %v4448 = vmax.f32 %v4352, 0.0
        %v4449 = vmax.f32 %v4355, 0.0
        %v4450 = vmax.f32 %v4360, 0.0
        %v4451 = vmax.f32 %v4363, 0.0
        %v4452 = vmax.f32 %v4368, 0.0
        %v4453 = vmax.f32 %v4371, 0.0
        %v4454 = vmax.f32 %v4376, 0.0
        %v4455 = vmax.f32 %v4379, 0.0
        %v4456 = vmax.f32 %v4384, 0.0
        %v4457 = vmax.f32 %v4387, 0.0
        %v4458 = vmax.f32 %v4392, 0.0
        %v4459 = vmax.f32 %v4395, 0.0
        %v4460 = vmax.f32 %v4400, 0.0
        %v4461 = vmax.f32 %v4403, 0.0
        %v4462 = vmax.f32 %v4408, 0.0
        %v4463 = vmax.f32 %v4411, 0.0
        %v4464 = vmax.f32 %v4416, 0.0
        %v4465 = vmax.f32 %v4419, 0.0
        %v4466 = vmax.f32 %v4424, 0.0
        %v4467 = vmax.f32 %v4427, 0.0
        %v4468 = vmax.f32 %v4432, 0.0
        %v4469 = vmax.f32 %v4435, 0.0
        %v4470 = vld [vmem:[%s17] sm:$0xf]
        %v4471 = vld [vmem:[%s17 + $0x4] sm:$0xf]
        %v4472 = vld [vmem:[%s17 + $0x8] sm:$0xf]
        %v4473 = vld [vmem:[%s17 + $0xc] sm:$0xf]
        %v4474 = vld [vmem:[%s17 + $0x10] sm:$0xf]
        %v4475 = vld [vmem:[%s17 + $0x14] sm:$0xf]
        %v4476 = vld [vmem:[%s17 + $0x18] sm:$0xf]
        %v4477 = vld [vmem:[%s17 + $0x1c] sm:$0xf]
        %v4478 = vld [vmem:[%s18] sm:$0x1]
        %v4479 = vpack.c.bf16 %v4439, %v4438
        %v4480 = vpack.c.bf16 %v4441, %v4440
        %v4481 = vpack.c.bf16 %v4443, %v4442
        %v4482 = vpack.c.bf16 %v4445, %v4444
        %v4483 = vpack.c.bf16 %v4447, %v4446
        %v4484 = vpack.c.bf16 %v4449, %v4448
        %v4485 = vpack.c.bf16 %v4451, %v4450
        %v4486 = vpack.c.bf16 %v4453, %v4452
        %v4487 = vpack.c.bf16 %v4455, %v4454
        %v4488 = vpack.c.bf16 %v4457, %v4456
        %v4489 = vpack.c.bf16 %v4459, %v4458
        %v4490 = vpack.c.bf16 %v4461, %v4460
        %v4491 = vpack.c.bf16 %v4463, %v4462
        %v4492 = vpack.c.bf16 %v4465, %v4464
        %v4493 = vpack.c.bf16 %v4467, %v4466
        %v4494 = vpack.c.bf16 %v4469, %v4468
        %v4496 = vlaneseq
        %v4497 = vshrl.u32 %v4496, 7
        %v4498 = vsub.s32 0, %v4497
        %v4499 = vrot.slane %v4478, %v4498
        %v4509 = vunpack.c.l.b16 %v4470
        %v4510 = vunpack.c.l.b16 %v4471
        %v4511 = vunpack.c.l.b16 %v4472
        %v4512 = vunpack.c.l.b16 %v4473
        %v4513 = vunpack.c.l.b16 %v4474
        %v4514 = vunpack.c.l.b16 %v4475
        %v4515 = vunpack.c.l.b16 %v4476
        %v4516 = vunpack.c.l.b16 %v4477
        %v4517 = vpack.c.b16 %v4510, %v4509
        %v4518 = vpack.c.b16 %v4512, %v4511
        %v4519 = vpack.c.b16 %v4514, %v4513
        %v4520 = vpack.c.b16 %v4516, %v4515
        %v4526 = vsel %vm1345, %v4479, 0
        %v4529 = vsel %vm1345, %v4480, 0
        %v4532 = vsel %vm1345, %v4481, 0
        %v4535 = vsel %vm1345, %v4482, 0
        %v4538 = vsel %vm1345, %v4483, 0
        %v4541 = vsel %vm1345, %v4484, 0
        %v4544 = vsel %vm1345, %v4485, 0
        %v4547 = vsel %vm1345, %v4486, 0
        %v4550 = vsel %vm1345, %v4487, 0
        %v4553 = vsel %vm1345, %v4488, 0
        %v4556 = vsel %vm1345, %v4489, 0
        %v4559 = vsel %vm1345, %v4490, 0
        %v4562 = vsel %vm1345, %v4491, 0
        %v4565 = vsel %vm1345, %v4492, 0
        %v4568 = vsel %vm1345, %v4493, 0
        %v4571 = vsel %vm1345, %v4494, 0
        %4573 = vmatprep.subr.bf16.mxu0 0
        %4574 = vmatpush1.bf16.msra.mxu0 %v4517
        %4575 = vmatprep.subr.bf16.mxu0 0
        %4576 = vmatpush1.bf16.msra.mxu0 %v4518
        %4577 = vmatprep.subr.bf16.mxu0 0
        %4578 = vmatpush1.bf16.msra.mxu0 %v4519
        %4579 = vmatprep.subr.bf16.mxu0 0
        %4580 = vmatpush1.bf16.msra.mxu0 %v4520
        %4581 = vmatprep.subr.bf16.mxu0 0
        %4582 = vmatpush1.bf16.msra.mxu0 0
        %4583 = vmatprep.subr.bf16.mxu0 0
        %4584 = vmatpush1.bf16.msra.mxu0 0
        %4585 = vmatprep.subr.bf16.mxu0 0
        %4586 = vmatpush1.bf16.msra.mxu0 0
        %4587 = vmatprep.subr.bf16.mxu0 0
        %4588 = vmatpush1.bf16.msra.mxu0 0
        %4589 = vmatprep.subr.bf16.mxu0 0
        %4590 = vmatpush1.bf16.msra.mxu0 0
        %4591 = vmatprep.subr.bf16.mxu0 0
        %4592 = vmatpush1.bf16.msra.mxu0 0
        %4593 = vmatprep.subr.bf16.mxu0 0
        %4594 = vmatpush1.bf16.msra.mxu0 0
        %4595 = vmatprep.subr.bf16.mxu0 0
        %4596 = vmatpush1.bf16.msra.mxu0 0
        %4597 = vmatprep.subr.bf16.mxu0 0
        %4598 = vmatpush1.bf16.msra.mxu0 0
        %4599 = vmatprep.subr.bf16.mxu0 0
        %4600 = vmatpush1.bf16.msra.mxu0 0
        %4601 = vmatprep.subr.bf16.mxu0 0
        %4602 = vmatpush1.bf16.msra.mxu0 0
        %4603 = vmatprep.subr.bf16.mxu0 0
        %4604 = vmatpush1.bf16.msra.mxu0 0
        %4605 = vmatprep.mubr.bf16.mxu0 0
        %4606 = vmatmul.mubr.bf16.gmra.mrb[0].mxu0 %v4526
        %v4607 = vpop.f32.mrb[0].mxu0
        %v4608 = vadd.f32 %v4499, %v4607
        %v4609 = vpop.f32.mrb[0].mxu0
        %v4610 = vpop.f32.mrb[0].mxu0
        %v4611 = vadd.f32 %v4499, %v4610
        %v4612 = vpop.f32.mrb[0].mxu0
        %4613 = vmatprep.mubr.bf16.mxu0 0
        %4614 = vmatmul.mubr.bf16.gmra.mrb[0].mxu0 %v4529
        %v4615 = vpop.f32.mrb[0].mxu0
        %v4616 = vadd.f32 %v4499, %v4615
        %v4617 = vpop.f32.mrb[0].mxu0
        %v4618 = vpop.f32.mrb[0].mxu0
        %v4619 = vadd.f32 %v4499, %v4618
        %v4620 = vpop.f32.mrb[0].mxu0
        %4621 = vmatprep.mubr.bf16.mxu0 0
        %4622 = vmatmul.mubr.bf16.gmra.mrb[0].mxu0 %v4532
        %v4623 = vpop.f32.mrb[0].mxu0
        %v4624 = vadd.f32 %v4499, %v4623
        %v4625 = vpop.f32.mrb[0].mxu0
        %v4626 = vpop.f32.mrb[0].mxu0
        %v4627 = vadd.f32 %v4499, %v4626
        %v4628 = vpop.f32.mrb[0].mxu0
        %4629 = vmatprep.mubr.bf16.mxu0 0
        %4630 = vmatmul.mubr.bf16.gmra.mrb[0].mxu0 %v4535
        %v4631 = vpop.f32.mrb[0].mxu0
        %v4632 = vadd.f32 %v4499, %v4631
        %v4633 = vpop.f32.mrb[0].mxu0
        %v4634 = vpop.f32.mrb[0].mxu0
        %v4635 = vadd.f32 %v4499, %v4634
        %v4636 = vpop.f32.mrb[0].mxu0
        %4637 = vmatprep.mubr.bf16.mxu0 0
        %4638 = vmatmul.mubr.bf16.gmra.mrb[0].mxu0 %v4538
        %v4639 = vpop.f32.mrb[0].mxu0
        %v4640 = vadd.f32 %v4499, %v4639
        %v4641 = vpop.f32.mrb[0].mxu0
        %v4642 = vpop.f32.mrb[0].mxu0
        %v4643 = vadd.f32 %v4499, %v4642
        %v4644 = vpop.f32.mrb[0].mxu0
        %4645 = vmatprep.mubr.bf16.mxu0 0
        %4646 = vmatmul.mubr.bf16.gmra.mrb[0].mxu0 %v4541
        %v4647 = vpop.f32.mrb[0].mxu0
        %v4648 = vadd.f32 %v4499, %v4647
        %v4649 = vpop.f32.mrb[0].mxu0
        %v4650 = vpop.f32.mrb[0].mxu0
        %v4651 = vadd.f32 %v4499, %v4650
        %v4652 = vpop.f32.mrb[0].mxu0
        %4653 = vmatprep.mubr.bf16.mxu0 0
        %4654 = vmatmul.mubr.bf16.gmra.mrb[0].mxu0 %v4544
        %v4655 = vpop.f32.mrb[0].mxu0
        %v4656 = vadd.f32 %v4499, %v4655
        %v4657 = vpop.f32.mrb[0].mxu0
        %v4658 = vpop.f32.mrb[0].mxu0
        %v4659 = vadd.f32 %v4499, %v4658
        %v4660 = vpop.f32.mrb[0].mxu0
        %4661 = vmatprep.mubr.bf16.mxu0 0
        %4662 = vmatmul.mubr.bf16.gmra.mrb[0].mxu0 %v4547
        %v4663 = vpop.f32.mrb[0].mxu0
        %v4664 = vadd.f32 %v4499, %v4663
        %v4665 = vpop.f32.mrb[0].mxu0
        %v4666 = vpop.f32.mrb[0].mxu0
        %v4667 = vadd.f32 %v4499, %v4666
        %v4668 = vpop.f32.mrb[0].mxu0
        %4669 = vmatprep.mubr.bf16.mxu0 0
        %4670 = vmatmul.mubr.bf16.gmra.mrb[0].mxu0 %v4550
        %v4671 = vpop.f32.mrb[0].mxu0
        %v4672 = vadd.f32 %v4499, %v4671
        %v4673 = vpop.f32.mrb[0].mxu0
        %v4674 = vpop.f32.mrb[0].mxu0
        %v4675 = vadd.f32 %v4499, %v4674
        %v4676 = vpop.f32.mrb[0].mxu0
        %4677 = vmatprep.mubr.bf16.mxu0 0
        %4678 = vmatmul.mubr.bf16.gmra.mrb[0].mxu0 %v4553
        %v4679 = vpop.f32.mrb[0].mxu0
        %v4680 = vadd.f32 %v4499, %v4679
        %v4681 = vpop.f32.mrb[0].mxu0
        %v4682 = vpop.f32.mrb[0].mxu0
        %v4683 = vadd.f32 %v4499, %v4682
        %v4684 = vpop.f32.mrb[0].mxu0
        %4685 = vmatprep.mubr.bf16.mxu0 0
        %4686 = vmatmul.mubr.bf16.gmra.mrb[0].mxu0 %v4556
        %v4687 = vpop.f32.mrb[0].mxu0
        %v4688 = vadd.f32 %v4499, %v4687
        %v4689 = vpop.f32.mrb[0].mxu0
        %v4690 = vpop.f32.mrb[0].mxu0
        %v4691 = vadd.f32 %v4499, %v4690
        %v4692 = vpop.f32.mrb[0].mxu0
        %4693 = vmatprep.mubr.bf16.mxu0 0
        %4694 = vmatmul.mubr.bf16.gmra.mrb[0].mxu0 %v4559
        %v4695 = vpop.f32.mrb[0].mxu0
        %v4696 = vadd.f32 %v4499, %v4695
        %v4697 = vpop.f32.mrb[0].mxu0
        %v4698 = vpop.f32.mrb[0].mxu0
        %v4699 = vadd.f32 %v4499, %v4698
        %v4700 = vpop.f32.mrb[0].mxu0
        %4701 = vmatprep.mubr.bf16.mxu0 0
        %4702 = vmatmul.mubr.bf16.gmra.mrb[0].mxu0 %v4562
        %v4703 = vpop.f32.mrb[0].mxu0
        %v4704 = vadd.f32 %v4499, %v4703
        %v4705 = vpop.f32.mrb[0].mxu0
        %v4706 = vpop.f32.mrb[0].mxu0
        %v4707 = vadd.f32 %v4499, %v4706
        %v4708 = vpop.f32.mrb[0].mxu0
        %4709 = vmatprep.mubr.bf16.mxu0 0
        %4710 = vmatmul.mubr.bf16.gmra.mrb[0].mxu0 %v4565
        %v4711 = vpop.f32.mrb[0].mxu0
        %v4712 = vadd.f32 %v4499, %v4711
        %v4713 = vpop.f32.mrb[0].mxu0
        %v4714 = vpop.f32.mrb[0].mxu0
        %v4715 = vadd.f32 %v4499, %v4714
        %v4716 = vpop.f32.mrb[0].mxu0
        %4717 = vmatprep.mubr.bf16.mxu0 0
        %4718 = vmatmul.mubr.bf16.gmra.mrb[0].mxu0 %v4568
        %v4719 = vpop.f32.mrb[0].mxu0
        %v4720 = vadd.f32 %v4499, %v4719
        %v4721 = vpop.f32.mrb[0].mxu0
        %v4722 = vpop.f32.mrb[0].mxu0
        %v4723 = vadd.f32 %v4499, %v4722
        %v4724 = vpop.f32.mrb[0].mxu0
        %4725 = vmatprep.mubr.bf16.mxu0 0
        %4726 = vmatmul.mubr.bf16.gmra.mrb[0].mxu0 %v4571
        %v4727 = vpop.f32.mrb[0].mxu0
        %v4728 = vadd.f32 %v4499, %v4727
        %v4729 = vpop.f32.mrb[0].mxu0
        %v4730 = vpop.f32.mrb[0].mxu0
        %v4731 = vadd.f32 %v4499, %v4730
        %v4732 = vpop.f32.mrb[0].mxu0
        %4733 = vdwg.mxu0
        %v4734 = vmax.f32 %v4608, 0.0
        %v4735 = vmax.f32 %v4611, 0.0
        %v4736 = vmax.f32 %v4616, 0.0
        %v4737 = vmax.f32 %v4619, 0.0
        %v4738 = vmax.f32 %v4624, 0.0
        %v4739 = vmax.f32 %v4627, 0.0
        %v4740 = vmax.f32 %v4632, 0.0
        %v4741 = vmax.f32 %v4635, 0.0
        %v4742 = vmax.f32 %v4640, 0.0
        %v4743 = vmax.f32 %v4643, 0.0
        %v4744 = vmax.f32 %v4648, 0.0
        %v4745 = vmax.f32 %v4651, 0.0
        %v4746 = vmax.f32 %v4656, 0.0
        %v4747 = vmax.f32 %v4659, 0.0
        %v4748 = vmax.f32 %v4664, 0.0
        %v4749 = vmax.f32 %v4667, 0.0
        %v4750 = vmax.f32 %v4672, 0.0
        %v4751 = vmax.f32 %v4675, 0.0
        %v4752 = vmax.f32 %v4680, 0.0
        %v4753 = vmax.f32 %v4683, 0.0
        %v4754 = vmax.f32 %v4688, 0.0
        %v4755 = vmax.f32 %v4691, 0.0
        %v4756 = vmax.f32 %v4696, 0.0
        %v4757 = vmax.f32 %v4699, 0.0
        %v4758 = vmax.f32 %v4704, 0.0
        %v4759 = vmax.f32 %v4707, 0.0
        %v4760 = vmax.f32 %v4712, 0.0
        %v4761 = vmax.f32 %v4715, 0.0
        %v4762 = vmax.f32 %v4720, 0.0
        %v4763 = vmax.f32 %v4723, 0.0
        %v4764 = vmax.f32 %v4728, 0.0
        %v4765 = vmax.f32 %v4731, 0.0
        %v4766 = vld [vmem:[%s19] sm:$0x1]
        %v4767 = vld [vmem:[#allocation2] sm:$0x1]
        %v4769 = vlaneseq
        %v4770 = vshrl.u32 %v4769, 7
        %v4771 = vsub.s32 0, %v4770
        %v4772 = vrot.slane %v4766, %v4771
        %v4774 = vmul.f32 %v4734, %v4772
        %v4775 = vmul.f32 %v4735, %v4772
        %v4776 = vmul.f32 %v4736, %v4772
        %v4777 = vmul.f32 %v4737, %v4772
        %v4778 = vmul.f32 %v4738, %v4772
        %v4779 = vmul.f32 %v4739, %v4772
        %v4780 = vmul.f32 %v4740, %v4772
        %v4781 = vmul.f32 %v4741, %v4772
        %v4782 = vmul.f32 %v4742, %v4772
        %v4783 = vmul.f32 %v4743, %v4772
        %v4784 = vmul.f32 %v4744, %v4772
        %v4785 = vmul.f32 %v4745, %v4772
        %v4786 = vmul.f32 %v4746, %v4772
        %v4787 = vmul.f32 %v4747, %v4772
        %v4788 = vmul.f32 %v4748, %v4772
        %v4789 = vmul.f32 %v4749, %v4772
        %v4790 = vmul.f32 %v4750, %v4772
        %v4791 = vmul.f32 %v4751, %v4772
        %v4792 = vmul.f32 %v4752, %v4772
        %v4793 = vmul.f32 %v4753, %v4772
        %v4794 = vmul.f32 %v4754, %v4772
        %v4795 = vmul.f32 %v4755, %v4772
        %v4796 = vmul.f32 %v4756, %v4772
        %v4797 = vmul.f32 %v4757, %v4772
        %v4798 = vmul.f32 %v4758, %v4772
        %v4799 = vmul.f32 %v4759, %v4772
        %v4800 = vmul.f32 %v4760, %v4772
        %v4801 = vmul.f32 %v4761, %v4772
        %v4802 = vmul.f32 %v4762, %v4772
        %v4803 = vmul.f32 %v4763, %v4772
        %v4804 = vmul.f32 %v4764, %v4772
        %v4805 = vmul.f32 %v4765, %v4772
        %v4806 = vsel %vm1048, %v4774, 0.0
        %4807 = vadd.xlane.f32.xlu0 %v4806
        %v4808 = vpop.xlane.xlu0 %4807
        %v4809 = vsel %vm1048, %v4775, 0.0
        %4810 = vadd.xlane.f32.xlu0 %v4809
        %v4811 = vpop.xlane.xlu0 %4810
        %v4812 = vsel %vm1048, %v4776, 0.0
        %4813 = vadd.xlane.f32.xlu0 %v4812
        %v4814 = vpop.xlane.xlu0 %4813
        %v4815 = vsel %vm1048, %v4777, 0.0
        %4816 = vadd.xlane.f32.xlu0 %v4815
        %v4817 = vpop.xlane.xlu0 %4816
        %v4818 = vsel %vm1048, %v4778, 0.0
        %4819 = vadd.xlane.f32.xlu0 %v4818
        %v4820 = vpop.xlane.xlu0 %4819
        %v4821 = vsel %vm1048, %v4779, 0.0
        %4822 = vadd.xlane.f32.xlu0 %v4821
        %v4823 = vpop.xlane.xlu0 %4822
        %v4824 = vsel %vm1048, %v4780, 0.0
        %4825 = vadd.xlane.f32.xlu0 %v4824
        %v4826 = vpop.xlane.xlu0 %4825
        %v4827 = vsel %vm1048, %v4781, 0.0
        %4828 = vadd.xlane.f32.xlu0 %v4827
        %v4829 = vpop.xlane.xlu0 %4828
        %v4830 = vsel %vm1048, %v4782, 0.0
        %4831 = vadd.xlane.f32.xlu0 %v4830
        %v4832 = vpop.xlane.xlu0 %4831
        %v4833 = vsel %vm1048, %v4783, 0.0
        %4834 = vadd.xlane.f32.xlu0 %v4833
        %v4835 = vpop.xlane.xlu0 %4834
        %v4836 = vsel %vm1048, %v4784, 0.0
        %4837 = vadd.xlane.f32.xlu0 %v4836
        %v4838 = vpop.xlane.xlu0 %4837
        %v4839 = vsel %vm1048, %v4785, 0.0
        %4840 = vadd.xlane.f32.xlu0 %v4839
        %v4841 = vpop.xlane.xlu0 %4840
        %v4842 = vsel %vm1048, %v4786, 0.0
        %4843 = vadd.xlane.f32.xlu0 %v4842
        %v4844 = vpop.xlane.xlu0 %4843
        %v4845 = vsel %vm1048, %v4787, 0.0
        %4846 = vadd.xlane.f32.xlu0 %v4845
        %v4847 = vpop.xlane.xlu0 %4846
        %v4848 = vsel %vm1048, %v4788, 0.0
        %4849 = vadd.xlane.f32.xlu0 %v4848
        %v4850 = vpop.xlane.xlu0 %4849
        %v4851 = vsel %vm1048, %v4789, 0.0
        %4852 = vadd.xlane.f32.xlu0 %v4851
        %v4853 = vpop.xlane.xlu0 %4852
        %v4854 = vsel %vm1048, %v4790, 0.0
        %4855 = vadd.xlane.f32.xlu0 %v4854
        %v4856 = vpop.xlane.xlu0 %4855
        %v4857 = vsel %vm1048, %v4791, 0.0
        %4858 = vadd.xlane.f32.xlu0 %v4857
        %v4859 = vpop.xlane.xlu0 %4858
        %v4860 = vsel %vm1048, %v4792, 0.0
        %4861 = vadd.xlane.f32.xlu0 %v4860
        %v4862 = vpop.xlane.xlu0 %4861
        %v4863 = vsel %vm1048, %v4793, 0.0
        %4864 = vadd.xlane.f32.xlu0 %v4863
        %v4865 = vpop.xlane.xlu0 %4864
        %v4866 = vsel %vm1048, %v4794, 0.0
        %4867 = vadd.xlane.f32.xlu0 %v4866
        %v4868 = vpop.xlane.xlu0 %4867
        %v4869 = vsel %vm1048, %v4795, 0.0
        %4870 = vadd.xlane.f32.xlu0 %v4869
        %v4871 = vpop.xlane.xlu0 %4870
        %v4872 = vsel %vm1048, %v4796, 0.0
        %4873 = vadd.xlane.f32.xlu0 %v4872
        %v4874 = vpop.xlane.xlu0 %4873
        %v4875 = vsel %vm1048, %v4797, 0.0
        %4876 = vadd.xlane.f32.xlu0 %v4875
        %v4877 = vpop.xlane.xlu0 %4876
        %v4878 = vsel %vm1048, %v4798, 0.0
        %4879 = vadd.xlane.f32.xlu0 %v4878
        %v4880 = vpop.xlane.xlu0 %4879
        %v4881 = vsel %vm1048, %v4799, 0.0
        %4882 = vadd.xlane.f32.xlu0 %v4881
        %v4883 = vpop.xlane.xlu0 %4882
        %v4884 = vsel %vm1048, %v4800, 0.0
        %4885 = vadd.xlane.f32.xlu0 %v4884
        %v4886 = vpop.xlane.xlu0 %4885
        %v4887 = vsel %vm1048, %v4801, 0.0
        %4888 = vadd.xlane.f32.xlu0 %v4887
        %v4889 = vpop.xlane.xlu0 %4888
        %v4890 = vsel %vm1048, %v4802, 0.0
        %4891 = vadd.xlane.f32.xlu0 %v4890
        %v4892 = vpop.xlane.xlu0 %4891
        %v4893 = vsel %vm1048, %v4803, 0.0
        %4894 = vadd.xlane.f32.xlu0 %v4893
        %v4895 = vpop.xlane.xlu0 %4894
        %v4896 = vsel %vm1048, %v4804, 0.0
        %4897 = vadd.xlane.f32.xlu0 %v4896
        %v4898 = vpop.xlane.xlu0 %4897
        %v4899 = vsel %vm1048, %v4805, 0.0
        %4900 = vadd.xlane.f32.xlu0 %v4899
        %v4901 = vpop.xlane.xlu0 %4900
        %v4903 = vlaneseq
        %v4904 = vshrl.u32 %v4903, 7
        %v4905 = vsub.s32 0, %v4904
        %v4906 = vrot.slane %v4767, %v4905
        %v4908 = vadd.f32 %v4808, %v4906
        %v4909 = vadd.f32 %v4811, %v4906
        %v4910 = vadd.f32 %v4814, %v4906
        %v4911 = vadd.f32 %v4817, %v4906
        %v4912 = vadd.f32 %v4820, %v4906
        %v4913 = vadd.f32 %v4823, %v4906
        %v4914 = vadd.f32 %v4826, %v4906
        %v4915 = vadd.f32 %v4829, %v4906
        %v4916 = vadd.f32 %v4832, %v4906
        %v4917 = vadd.f32 %v4835, %v4906
        %v4918 = vadd.f32 %v4838, %v4906
        %v4919 = vadd.f32 %v4841, %v4906
        %v4920 = vadd.f32 %v4844, %v4906
        %v4921 = vadd.f32 %v4847, %v4906
        %v4922 = vadd.f32 %v4850, %v4906
        %v4923 = vadd.f32 %v4853, %v4906
        %v4924 = vadd.f32 %v4856, %v4906
        %v4925 = vadd.f32 %v4859, %v4906
        %v4926 = vadd.f32 %v4862, %v4906
        %v4927 = vadd.f32 %v4865, %v4906
        %v4928 = vadd.f32 %v4868, %v4906
        %v4929 = vadd.f32 %v4871, %v4906
        %v4930 = vadd.f32 %v4874, %v4906
        %v4931 = vadd.f32 %v4877, %v4906
        %v4932 = vadd.f32 %v4880, %v4906
        %v4933 = vadd.f32 %v4883, %v4906
        %v4934 = vadd.f32 %v4886, %v4906
        %v4935 = vadd.f32 %v4889, %v4906
        %v4936 = vadd.f32 %v4892, %v4906
        %v4937 = vadd.f32 %v4895, %v4906
        %v4938 = vadd.f32 %v4898, %v4906
        %v4939 = vadd.f32 %v4901, %v4906
        %vm4940 = vcmask 7168
        %4941 = vst.msk [vmem:[%s704] sm:$0xff] %vm4940, %v4908
        %4942 = vst.msk [vmem:[%s704 + $0x8] sm:$0xff] %vm4940, %v4909
        %4943 = vst.msk [vmem:[%s704 + $0x10] sm:$0xff] %vm4940, %v4910
        %4944 = vst.msk [vmem:[%s704 + $0x18] sm:$0xff] %vm4940, %v4911
        %4945 = vst.msk [vmem:[%s704 + $0x20] sm:$0xff] %vm4940, %v4912
        %4946 = vst.msk [vmem:[%s704 + $0x28] sm:$0xff] %vm4940, %v4913
        %4947 = vst.msk [vmem:[%s704 + $0x30] sm:$0xff] %vm4940, %v4914
        %4948 = vst.msk [vmem:[%s704 + $0x38] sm:$0xff] %vm4940, %v4915
        %4949 = vst.msk [vmem:[%s704 + $0x40] sm:$0xff] %vm4940, %v4916
        %4950 = vst.msk [vmem:[%s704 + $0x48] sm:$0xff] %vm4940, %v4917
        %4951 = vst.msk [vmem:[%s704 + $0x50] sm:$0xff] %vm4940, %v4918
        %4952 = vst.msk [vmem:[%s704 + $0x58] sm:$0xff] %vm4940, %v4919
        %4953 = vst.msk [vmem:[%s704 + $0x60] sm:$0xff] %vm4940, %v4920
        %4954 = vst.msk [vmem:[%s704 + $0x68] sm:$0xff] %vm4940, %v4921
        %4955 = vst.msk [vmem:[%s704 + $0x70] sm:$0xff] %vm4940, %v4922
        %4956 = vst.msk [vmem:[%s704 + $0x78] sm:$0xff] %vm4940, %v4923
        %4957 = vst.msk [vmem:[%s704 + $0x80] sm:$0xff] %vm4940, %v4924
        %4958 = vst.msk [vmem:[%s704 + $0x88] sm:$0xff] %vm4940, %v4925
        %4959 = vst.msk [vmem:[%s704 + $0x90] sm:$0xff] %vm4940, %v4926
        %4960 = vst.msk [vmem:[%s704 + $0x98] sm:$0xff] %vm4940, %v4927
        %4961 = vst.msk [vmem:[%s704 + $0xa0] sm:$0xff] %vm4940, %v4928
        %4962 = vst.msk [vmem:[%s704 + $0xa8] sm:$0xff] %vm4940, %v4929
        %4963 = vst.msk [vmem:[%s704 + $0xb0] sm:$0xff] %vm4940, %v4930
        %4964 = vst.msk [vmem:[%s704 + $0xb8] sm:$0xff] %vm4940, %v4931
        %4965 = vst.msk [vmem:[%s704 + $0xc0] sm:$0xff] %vm4940, %v4932
        %4966 = vst.msk [vmem:[%s704 + $0xc8] sm:$0xff] %vm4940, %v4933
        %4967 = vst.msk [vmem:[%s704 + $0xd0] sm:$0xff] %vm4940, %v4934
        %4968 = vst.msk [vmem:[%s704 + $0xd8] sm:$0xff] %vm4940, %v4935
        %4969 = vst.msk [vmem:[%s704 + $0xe0] sm:$0xff] %vm4940, %v4936
        %4970 = vst.msk [vmem:[%s704 + $0xe8] sm:$0xff] %vm4940, %v4937
        %4971 = vst.msk [vmem:[%s704 + $0xf0] sm:$0xff] %vm4940, %v4938
        %4972 = vst.msk [vmem:[%s704 + $0xf8] sm:$0xff] %vm4940, %v4939
        %s4973 = smul.u32 32, %s36
        %p4974 = scmp.lt.s32.totalorder %s4973, 63
        %s4975 = scalar_select %p4974, %s4973, 63
        %s4976 = smul.addr %s4975, 8
        %s4977 = scalar_lea.vmem %s21, %s4976
        // Predicated region
        $region117: #{tpu_custom_call.1} parent=103 // pred_check
          %p4978 = pneg %p500
        $region118: #{tpu_custom_call.1} parent=103 // pred_check_branch
          %4980 = sbr.rel (%p4978) target = $region120
        $region119: #{tpu_custom_call.1} parent=103 // pred_region
          %s4981 = smul.u32 32, %s36
        $region120: #{tpu_custom_call.1} parent=103 // pred_fallthru
          _
      $region104: #{tpu_custom_call.1} parent=5 // pred_fallthru
        _
      %p4982 = scmp.le.s32.totalorder 2, %s31
      // Predicated region
      $region121: #{tpu_custom_call.1} parent=5 // pred_check
        %p4983 = pneg %p4982
      $region122: #{tpu_custom_call.1} parent=5 // pred_check_branch
        %4985 = sbr.rel (%p4983) target = $region124
      $region123: #{tpu_custom_call.1} parent=5 // pred_region
        %s4986 = ssub.s32 %s31, 2
        // Predicated region
        $region125: #{tpu_custom_call.1} parent=123 // pred_check
          %p4987 = pneg %p506
        $region126: #{tpu_custom_call.1} parent=123 // pred_check_branch
          %4989 = sbr.rel (%p4987) target = $region128
        $region127: #{tpu_custom_call.1} parent=123 // pred_region
          %s4990 = smul.u32 32, %s37
          %p4991 = scmp.lt.s32.totalorder %s4990, 63
          %s4992 = scalar_select %p4991, %s4990, 63
          %s4993 = smul.addr %s4992, 8
          %s4994 = scalar_lea.vmem %s21, %s4993
        $region128: #{tpu_custom_call.1} parent=123 // pred_fallthru
          _
      $region124: #{tpu_custom_call.1} parent=5 // pred_fallthru
        _
    $region6: #{tpu_custom_call.1} parent=1 // loop_footer
      %s35 = sadd.s32 1, %s31
    $region7: #{tpu_custom_call.1} parent=1 // loop_footer_branch
      %30 = sbr.rel target = $region3
    $region8: #{tpu_custom_call.1} parent=1 // loop_exit
      _
    %4995 = vsyncpa [#allocation4], 1
    %s4996 = scalar_lea.sflag [#allocation4], 1
    %4997 = vsyncpa %s4996, 1
    %4998 = vsyncpa [#allocation6], 1

</llo_original>
